<compile_context>
chip_gen: v7x
topology: tpu7x:2x2x1
jax: 0.10.0
libtpu: 0.0.40
codegen_flags: <defaults>
</compile_context>

<pallas_src>
import functools

import jax
import jax.numpy as jnp
import numpy as np
from jax.experimental import pallas as pl
from jax.experimental.pallas import tpu as pltpu


@functools.lru_cache(maxsize=None)
def _vmem_limit_bytes():
    """Generation-aware VMEM budget: ~85% of physical, with headroom.
    ~109 MiB on v5e/v6e (128 MiB physical), ~54 MiB per TC on v7x (64 MiB)."""
    cap = 128 * 1024 * 1024
    try:
        info = pltpu.get_tpu_info()
        cap = int(getattr(info, "vmem_capacity_bytes", cap) or cap)
    except Exception:
        pass
    return max(32 * 1024 * 1024, min(int(cap * 0.85), 112 * 1024 * 1024))


# --------------------------------------------------------------------------
# Pallas kernel: one pyramid layer, full batch, time-major flat layout.
# --------------------------------------------------------------------------
def pyramid_layer_kernel(x_ref, m_ref, wih_ref, bih_ref, whhf_ref, whhb_ref,
                         wc0_ref, wc1_ref, bc_ref,
                         h_out_ref, xnext_ref,
                         gx_scr,
                         *, seq_len, batch, hidden_size, mxu_dtype):
    T, B, H = seq_len, batch, hidden_size

    # ---- LayerNorm statistics only (gamma/beta are folded into W'/b') -----
    x = x_ref[...]                                        # (T*B, C) f32
    mean = jnp.mean(x, axis=-1, keepdims=True)
    var = jnp.mean(jnp.square(x - mean), axis=-1, keepdims=True)
    xn = (x - mean) * jax.lax.rsqrt(var + 1e-5)
    # (dropout == identity, eval mode)

    # ---- fused input projection for BOTH LSTM directions, written straight
    #      into the single (T*B, 8H) gate scratch (no extra full-slab copy) --
    gx_scr[...] = jnp.dot(xn.astype(mxu_dtype), wih_ref[...],
                          preferred_element_type=jnp.float32) + bih_ref[...]

    whh_f = whhf_ref[...]                                 # (H, 4H), mxu_dtype
    whh_b = whhb_ref[...]                                 # hoisted out of loop

    def lstm_step(g, c_prev, m):
        i = jax.nn.sigmoid(g[:, 0:H])
        f = jax.nn.sigmoid(g[:, H:2 * H])
        gg = jnp.tanh(g[:, 2 * H:3 * H])
        o = jax.nn.sigmoid(g[:, 3 * H:4 * H])
        c_new = (f * c_prev + i * gg) * m                 # mask == {0,1}
        h_new = o * jnp.tanh(c_new) * m
        return h_new, c_new

    zero = jnp.zeros((B, H), jnp.float32)
    unroll = True if T <= 32 else 8                       # LLO visibility

    # ---- fwd + bwd recurrences interleaved in ONE loop: two independent
    #      dependency chains per iteration (fwd at t=i, bwd at t=T-1-i) ------
    def step(i, carry):
        hf, cf, hb, cb = carry
        rf = pl.multiple_of(i * B, 8)                     # B is sublane-padded
        rb = pl.multiple_of((T - 1 - i) * B, 8)
        gf = gx_scr[pl.ds(rf, B), pl.ds(0, 4 * H)] + jnp.dot(
            hf.astype(mxu_dtype), whh_f, preferred_element_type=jnp.float32)
        gb = gx_scr[pl.ds(rb, B), pl.ds(4 * H, 4 * H)] + jnp.dot(
            hb.astype(mxu_dtype), whh_b, preferred_element_type=jnp.float32)
        hf_n, cf_n = lstm_step(gf, cf, m_ref[pl.ds(rf, B), :])
        hb_n, cb_n = lstm_step(gb, cb, m_ref[pl.ds(rb, B), :])
        h_out_ref[pl.ds(rf, B), pl.ds(0, H)] = hf_n       # lanes [0, H)
        h_out_ref[pl.ds(rb, B), pl.ds(H, H)] = hb_n       # lanes [H, 2H)
        return hf_n, cf_n, hb_n, cb_n

    jax.lax.fori_loop(0, T, step, (zero, zero, zero, zero), unroll=unroll)

    # ---- Conv1d(k=2), channels-last: slice the matmul INPUTS (no full-length
    #      f32 intermediates, no B-row shifted add) --------------------------
    #   x_next[t] = h[t] @ Wc[:,:,0]^T + h[t+1] @ Wc[:,:,1]^T + b_c
    h_all = h_out_ref[...].astype(mxu_dtype)              # (T*B, 2H)
    xnext_ref[...] = (
        jnp.dot(h_all[0:(T - 1) * B, :], wc0_ref[...],
                preferred_element_type=jnp.float32)
        + jnp.dot(h_all[B:T * B, :], wc1_ref[...],
                  preferred_element_type=jnp.float32)
        + bc_ref[...])


# --------------------------------------------------------------------------
# Wrapper for one pyramid layer: LN -> BiLSTM -> Conv1d(k=2), full batch.
# --------------------------------------------------------------------------
def pyramid_layer(x_flat, tmask_flat, kp, T, B, H, mxu_dtype=jnp.float32):
    C = x_flat.shape[-1]
    orig_T = T
    if T == 1:
        # Pad a zero timestep so the conv output keeps >= 1 row; the padded
        # rows are masked out (tmask == 0 there) and the conv result unused.
        x_flat = jnp.concatenate([x_flat, jnp.zeros_like(x_flat)], axis=0)
        tmask_flat = jnp.concatenate([tmask_flat, jnp.zeros_like(tmask_flat)],
                                     axis=0)
        T = 2

    f32 = jnp.float32
    kernel = functools.partial(pyramid_layer_kernel, seq_len=T, batch=B,
                               hidden_size=H, mxu_dtype=mxu_dtype)
    full = lambda i: (0, 0)    # noqa: E731   (single full block, grid=(1,))

    h_flat, xnext_flat = pl.pallas_call(
        kernel,
        grid=(1,),
        in_specs=[
            pl.BlockSpec((T * B, C), full),            # x (time-major flat)
            pl.BlockSpec((T * B, 1), full),            # validity mask
            pl.BlockSpec((C, 8 * H), full),            # W' = gamma^T * W_ih (fwd|bwd)^T
            pl.BlockSpec((1, 8 * H), full),            # b' = b + beta @ W_ih^T
            pl.BlockSpec((H, 4 * H), full),            # W_hh fwd ^T
            pl.BlockSpec((H, 4 * H), full),            # W_hh bwd ^T
            pl.BlockSpec((2 * H, 2 * H), full),        # conv W[:, :, 0]^T
            pl.BlockSpec((2 * H, 2 * H), full),        # conv W[:, :, 1]^T
            pl.BlockSpec((1, 2 * H), full),            # conv bias
        ],
        out_specs=(
            pl.BlockSpec((T * B, 2 * H), full),
            pl.BlockSpec(((T - 1) * B, 2 * H), full),
        ),
        out_shape=(jax.ShapeDtypeStruct((T * B, 2 * H), f32),
                   jax.ShapeDtypeStruct(((T - 1) * B, 2 * H), f32)),
        scratch_shapes=[pltpu.VMEM((T * B, 8 * H), f32)],   # fused gate preacts
        compiler_params=pltpu.CompilerParams(
            dimension_semantics=("arbitrary",),
            vmem_limit_bytes=_vmem_limit_bytes()),
    )(x_flat, tmask_flat, kp['wih_eff'], kp['b_eff'], kp['whh_f'],
      kp['whh_b'], kp['wc0'], kp['wc1'], kp['bc'])

    if orig_T == 1:
        return h_flat[:B], None
    return h_flat, xnext_flat


# --------------------------------------------------------------------------
# Full PyramidDecoder.forward
# --------------------------------------------------------------------------
def pyramid_decoder_forward(x, mask, params, hidden_size, max_depth=None,
                            mxu_dtype=jnp.float32):
    B, T, C = x.shape
    H = hidden_size

    # Sublane-align the batch: pad B up to a multiple of 8.  Padded samples
    # have length 0 (fully masked) and are stripped again at the end, so they
    # never influence real rows (all row mixing is within the same b).
    B_pad = max(8, ((B + 7) // 8) * 8)
    if B_pad != B:
        x = jnp.concatenate([x, jnp.zeros((B_pad - B, T, C), x.dtype)], axis=0)
        mask = jnp.concatenate(
            [mask, jnp.zeros((B_pad - B, T), mask.dtype)], axis=0)

    lengths = jnp.sum(mask.astype(jnp.int32), axis=1)          # (B_pad,)
    # Single host sync BEFORE the layer loop (layer count), instead of one
    # device->host round trip per layer.
    max_len = int(jnp.max(lengths))
    cap = T if max_depth is None else max_depth + 1
    n_layers = max(1, min(cap, max_len))

    # Host-side, once per forward (weights are shared across all layers):
    #  * fuse the fwd|bwd LSTM input projections into a single (C, 8H) matmul
    #  * fold LayerNorm gamma/beta into that projection
    #  * pre-cast every MXU weight operand to mxu_dtype (bf16 in production)
    #    -> halves per-layer weight DMA and removes in-kernel full-width casts.
    wih_cat = jnp.concatenate([params['wih_f_T'], params['wih_b_T']], axis=1)
    b_cat = jnp.concatenate([params['b_f'], params['b_b']], axis=1)
    kp = {
        'wih_eff': (params['gamma'].T * wih_cat).astype(mxu_dtype),  # (C, 8H)
        'b_eff':   b_cat + params['beta'] @ wih_cat,                 # (1, 8H) f32
        'whh_f':   params['whh_f_T'].astype(mxu_dtype),
        'whh_b':   params['whh_b_T'].astype(mxu_dtype),
        'wc0':     params['wc0_T'].astype(mxu_dtype),
        'wc1':     params['wc1_T'].astype(mxu_dtype),
        'bc':      params['bc'],
    }

    # Time-major flat layout: row r = t * B_pad + b.
    x_flat = jnp.transpose(x, (1, 0, 2)).reshape(T * B_pad, C)

    h_list = []
    for l in range(n_layers):
        T_l = T - l
        lengths_l = jnp.maximum(lengths - l, 0)
        tmask = (jnp.arange(T_l)[:, None] < lengths_l[None, :]).astype(jnp.float32)
        h_flat, x_flat = pyramid_layer(x_flat, tmask.reshape(T_l * B_pad, 1),
                                       kp, T_l, B_pad, H, mxu_dtype=mxu_dtype)
        h_list.append(
            h_flat.reshape(T_l, B_pad, 2 * H).transpose(1, 0, 2)[:B])

    if max_depth is not None and len(h_list) > max_depth:
        return (h_list[:-1] or None), h_list[-1]
    return h_list, None


# --------------------------------------------------------------------------
# Pure-JAX reference (same math, no Pallas) for verification.
# --------------------------------------------------------------------------
def _reference_layer(x, lengths, p, H):
    mean = x.mean(-1, keepdims=True)
    var = ((x - mean) ** 2).mean(-1, keepdims=True)
    xn = (x - mean) / jnp.sqrt(var + 1e-5) * p['gamma'] + p['beta']
    B, T, C = x.shape

    def run_dir(wih_T, whh_T, bias, reverse):
        outs = []
        for b in range(B):
            L = lengths[b]
            gx = xn[b] @ wih_T + bias
            h = jnp.zeros((H,), jnp.float32)
            c = jnp.zeros((H,), jnp.float32)
            out = jnp.zeros((T, H), jnp.float32)
            order = range(T - 1, -1, -1) if reverse else range(T)
            for t in order:
                g = gx[t] + h @ whh_T
                i = jax.nn.sigmoid(g[:H]); f = jax.nn.sigmoid(g[H:2 * H])
                gg = jnp.tanh(g[2 * H:3 * H]); o = jax.nn.sigmoid(g[3 * H:])
                c_new = f * c + i * gg
                h_new = o * jnp.tanh(c_new)
                valid = t < L
                h = jnp.where(valid, h_new, 0.0)
                c = jnp.where(valid, c_new, 0.0)
                out = out.at[t].set(h)
            outs.append(out)
        return jnp.stack(outs)

    hf = run_dir(p['wih_f_T'], p['whh_f_T'], p['b_f'][0], False)
    hb = run_dir(p['wih_b_T'], p['whh_b_T'], p['b_b'][0], True)
    h = jnp.concatenate([hf, hb], axis=-1)
    x_next = h[:, :-1] @ p['wc0_T'] + h[:, 1:] @ p['wc1_T'] + p['bc'][0]
    return h, x_next


def _reference_decoder(x, mask, p, H, max_depth=None):
    B, T, C = x.shape
    n_layers = T if max_depth is None else max_depth + 1
    h_list = []
    for l in range(n_layers):
        lengths_l = jnp.sum(mask[:, l:].astype(jnp.int32), axis=1)
        h_l, x = _reference_layer(x, lengths_l, p, H)
        h_list.append(h_l)
        if int(jnp.max(lengths_l)) <= 1:
            break
    return h_list


# --------------------------------------------------------------------------
if __name__ == "__main__":
    key = jax.random.PRNGKey(0)
    B, T, H = 2, 8, 16
    C = 2 * H                      # LayerNorm(channels) forces input_size == 2*H

    keys = jax.random.split(key, 16)

    def rnd(k, shape, scale=0.1):
        return jax.random.normal(k, shape, dtype=jnp.float32) * scale

    # Deterministic synthetic parameters (shapes follow nn.LSTM / nn.Conv1d /
    # nn.LayerNorm in the module's __init__).  LSTM biases b_ih+b_hh are
    # pre-summed; weights are stored transposed for right-multiplication.
    params = {
        'gamma':   1.0 + rnd(keys[0], (1, C)),
        'beta':    rnd(keys[1], (1, C)),
        'wih_f_T': rnd(keys[2], (C, 4 * H)),
        'whh_f_T': rnd(keys[3], (H, 4 * H)),
        'b_f':     rnd(keys[4], (1, 4 * H)),
        'wih_b_T': rnd(keys[5], (C, 4 * H)),
        'whh_b_T': rnd(keys[6], (H, 4 * H)),
        'b_b':     rnd(keys[7], (1, 4 * H)),
        'wc0_T':   rnd(keys[8], (2 * H, 2 * H)),
        'wc1_T':   rnd(keys[9], (2 * H, 2 * H)),
        'bc':      rnd(keys[10], (1, 2 * H)),
    }

    x = jax.random.normal(keys[11], (B, T, C), dtype=jnp.float32)
    lengths = jnp.array([6, 4], dtype=jnp.int32)
    mask = (jnp.arange(T)[None, :] < lengths[:, None]).astype(jnp.float32)

    # ---- f32 path: tight comparison against the pure-JAX reference --------
    h_layers, remedy = pyramid_decoder_forward(x, mask, params, hidden_size=H,
                                               max_depth=None,
                                               mxu_dtype=jnp.float32)
    h_layers = [jax.block_until_ready(h) for h in h_layers]
    assert remedy is None

    ref_layers = _reference_decoder(x, mask, params, H, max_depth=None)
    assert len(h_layers) == len(ref_layers), (len(h_layers), len(ref_layers))
    for l, (hk, hr) in enumerate(zip(h_layers, ref_layers)):
        assert hk.shape == (B, T - l, 2 * H), hk.shape
        np.testing.assert_allclose(np.asarray(hk), np.asarray(hr),
                                   rtol=1e-4, atol=1e-4)

    # ---- bf16 MXU path: exercised and validated at looser tolerance -------
    h_bf16, _ = pyramid_decoder_forward(x, mask, params, hidden_size=H,
                                        max_depth=None,
                                        mxu_dtype=jnp.bfloat16)
    h_bf16 = [jax.block_until_ready(h) for h in h_bf16]
    for hk, hr in zip(h_bf16, ref_layers):
        np.testing.assert_allclose(np.asarray(hk), np.asarray(hr),
                                   rtol=1e-1, atol=1e-1)

    print("KERNEL_OK")
</pallas_src>

<mosaic_0001>
module attributes {stable_mosaic.version = 11 : i64} {
  func.func @pyramid_layer_kernel(%arg0: i32, %arg1: memref<64x32xf32, #tpu.memory_space<vmem>>, %arg2: memref<64x1xf32, #tpu.memory_space<vmem>>, %arg3: memref<32x128xf32, #tpu.memory_space<vmem>>, %arg4: memref<1x128xf32, #tpu.memory_space<vmem>>, %arg5: memref<16x64xf32, #tpu.memory_space<vmem>>, %arg6: memref<16x64xf32, #tpu.memory_space<vmem>>, %arg7: memref<32x32xf32, #tpu.memory_space<vmem>>, %arg8: memref<32x32xf32, #tpu.memory_space<vmem>>, %arg9: memref<1x32xf32, #tpu.memory_space<vmem>>, %arg10: memref<64x32xf32, #tpu.memory_space<vmem>>, %arg11: memref<56x32xf32, #tpu.memory_space<vmem>>, %arg12: memref<64x128xf32, #tpu.memory_space<vmem>>) attributes {dimension_semantics = [#tpu.dimension_semantics<arbitrary>], iteration_bounds = array<i64: 1>, scalar_prefetch = 0 : i64, scratch_operands = 1 : i64, tpu.core_type = #tpu.core_type<tc>, window_params = [{pipeline_mode = #tpu.pipeline_mode<synchronous>, transform_indices = @transform_0, window_bounds = array<i64: 64, 32>}, {pipeline_mode = #tpu.pipeline_mode<synchronous>, transform_indices = @transform_1, window_bounds = array<i64: 64, 1>}, {pipeline_mode = #tpu.pipeline_mode<synchronous>, transform_indices = @transform_2, window_bounds = array<i64: 32, 128>}, {pipeline_mode = #tpu.pipeline_mode<synchronous>, transform_indices = @transform_3, window_bounds = array<i64: 1, 128>}, {pipeline_mode = #tpu.pipeline_mode<synchronous>, transform_indices = @transform_4, window_bounds = array<i64: 16, 64>}, {pipeline_mode = #tpu.pipeline_mode<synchronous>, transform_indices = @transform_5, window_bounds = array<i64: 16, 64>}, {pipeline_mode = #tpu.pipeline_mode<synchronous>, transform_indices = @transform_6, window_bounds = array<i64: 32, 32>}, {pipeline_mode = #tpu.pipeline_mode<synchronous>, transform_indices = @transform_7, window_bounds = array<i64: 32, 32>}, {pipeline_mode = #tpu.pipeline_mode<synchronous>, transform_indices = @transform_8, window_bounds = array<i64: 1, 32>}, {pipeline_mode = #tpu.pipeline_mode<synchronous>, transform_indices = @transform_9, window_bounds = array<i64: 64, 32>}, {pipeline_mode = #tpu.pipeline_mode<synchronous>, transform_indices = @transform_10, window_bounds = array<i64: 56, 32>}]} {
    %c0 = arith.constant 0 : index
    %c0_0 = arith.constant 0 : index
    %0 = vector.load %arg1[%c0, %c0_0] : memref<64x32xf32, #tpu.memory_space<vmem>>, vector<64x32xf32>
    %cst = arith.constant dense<0.000000e+00> : vector<64xf32>
    %1 = vector.multi_reduction <add>, %0, %cst [1] : vector<64x32xf32> to vector<64xf32>
    %2 = vector.shape_cast %1 : vector<64xf32> to vector<64x1xf32>
    %cst_1 = arith.constant 3.200000e+01 : f32
    %3 = vector.broadcast %cst_1 : f32 to vector<64x1xf32>
    %4 = arith.divf %2, %3 : vector<64x1xf32>
    %5 = vector.broadcast %4 : vector<64x1xf32> to vector<64x32xf32>
    %6 = arith.subf %0, %5 : vector<64x32xf32>
    %7 = arith.mulf %6, %6 : vector<64x32xf32>
    %cst_2 = arith.constant dense<0.000000e+00> : vector<64xf32>
    %8 = vector.multi_reduction <add>, %7, %cst_2 [1] : vector<64x32xf32> to vector<64xf32>
    %9 = vector.shape_cast %8 : vector<64xf32> to vector<64x1xf32>
    %cst_3 = arith.constant 3.200000e+01 : f32
    %10 = vector.broadcast %cst_3 : f32 to vector<64x1xf32>
    %11 = arith.divf %9, %10 : vector<64x1xf32>
    %12 = vector.broadcast %4 : vector<64x1xf32> to vector<64x32xf32>
    %13 = arith.subf %0, %12 : vector<64x32xf32>
    %cst_4 = arith.constant 9.99999974E-6 : f32
    %14 = vector.broadcast %cst_4 : f32 to vector<64x1xf32>
    %15 = arith.addf %11, %14 : vector<64x1xf32>
    %16 = math.rsqrt %15 : vector<64x1xf32>
    %17 = vector.broadcast %16 : vector<64x1xf32> to vector<64x32xf32>
    %18 = arith.mulf %13, %17 : vector<64x32xf32>
    %c0_5 = arith.constant 0 : index
    %c0_6 = arith.constant 0 : index
    %19 = vector.load %arg3[%c0_5, %c0_6] : memref<32x128xf32, #tpu.memory_space<vmem>>, vector<32x128xf32>
    %cst_7 = arith.constant dense<0.000000e+00> : vector<64x128xf32>
    %20 = tpu.matmul %18, %19, %cst_7 {dimension_numbers = #tpu.dot_dimension_numbers<[1], [0], [0], [1], [0, 0, 1, 1], [], []>} : vector<64x32xf32>, vector<32x128xf32>, vector<64x128xf32> -> vector<64x128xf32>
    %c0_8 = arith.constant 0 : index
    %c0_9 = arith.constant 0 : index
    %21 = vector.load %arg4[%c0_8, %c0_9] : memref<1x128xf32, #tpu.memory_space<vmem>>, vector<1x128xf32>
    %22 = vector.broadcast %21 : vector<1x128xf32> to vector<64x128xf32>
    %23 = arith.addf %20, %22 : vector<64x128xf32>
    %c0_10 = arith.constant 0 : index
    %c0_11 = arith.constant 0 : index
    %24 = vector.load %arg12[%c0_10, %c0_11] : memref<64x128xf32, #tpu.memory_space<vmem>>, vector<64x128xf32>
    tpu.vector_store %arg12[%c0_10, %c0_11], %23 {strides = array<i32>} : memref<64x128xf32, #tpu.memory_space<vmem>>, vector<64x128xf32>,
    %c0_12 = arith.constant 0 : index
    %c0_13 = arith.constant 0 : index
    %25 = vector.load %arg5[%c0_12, %c0_13] : memref<16x64xf32, #tpu.memory_space<vmem>>, vector<16x64xf32>
    %c0_14 = arith.constant 0 : index
    %c0_15 = arith.constant 0 : index
    %26 = vector.load %arg6[%c0_14, %c0_15] : memref<16x64xf32, #tpu.memory_space<vmem>>, vector<16x64xf32>
    %cst_16 = arith.constant 0.000000e+00 : f32
    %27 = vector.broadcast %cst_16 : f32 to vector<8x16xf32>
    %c0_i32 = arith.constant 0 : i32
    %c8_i32 = arith.constant 8 : i32
    %28 = arith.muli %c0_i32, %c8_i32 : i32
    %29 = tpu.assume_multiple %28, 8 : i32
    %c7_i32 = arith.constant 7 : i32
    %30 = arith.subi %c7_i32, %c0_i32 : i32
    %c8_i32_17 = arith.constant 8 : i32
    %31 = arith.muli %30, %c8_i32_17 : i32
    %32 = tpu.assume_multiple %31, 8 : i32
    %33 = arith.index_cast %29 : i32 to index
    %c0_18 = arith.constant 0 : index
    %34 = vector.load %arg12[%33, %c0_18] : memref<64x128xf32, #tpu.memory_space<vmem>>, vector<8x64xf32>
    %cst_19 = arith.constant dense<0.000000e+00> : vector<8x64xf32>
    %35 = tpu.matmul %27, %25, %cst_19 {dimension_numbers = #tpu.dot_dimension_numbers<[1], [0], [0], [1], [0, 0, 1, 1], [], []>} : vector<8x16xf32>, vector<16x64xf32>, vector<8x64xf32> -> vector<8x64xf32>
    %36 = arith.addf %34, %35 : vector<8x64xf32>
    %37 = arith.index_cast %32 : i32 to index
    %c64 = arith.constant 64 : index
    %38 = vector.load %arg12[%37, %c64] : memref<64x128xf32, #tpu.memory_space<vmem>>, vector<8x64xf32>
    %cst_20 = arith.constant dense<0.000000e+00> : vector<8x64xf32>
    %39 = tpu.matmul %27, %26, %cst_20 {dimension_numbers = #tpu.dot_dimension_numbers<[1], [0], [0], [1], [0, 0, 1, 1], [], []>} : vector<8x16xf32>, vector<16x64xf32>, vector<8x64xf32> -> vector<8x64xf32>
    %40 = arith.addf %38, %39 : vector<8x64xf32>
    %41 = arith.index_cast %29 : i32 to index
    %c0_21 = arith.constant 0 : index
    %42 = vector.load %arg2[%41, %c0_21] : memref<64x1xf32, #tpu.memory_space<vmem>>, vector<8x1xf32>
    %43 = vector.extract_strided_slice %36 {offsets = [0, 0], sizes = [8, 16], strides = [1, 1]} : vector<8x64xf32> to vector<8x16xf32>
    %44 = arith.negf %43 : vector<8x16xf32>
    %45 = math.exp %44 : vector<8x16xf32>
    %cst_22 = arith.constant 1.000000e+00 : f32
    %46 = vector.broadcast %cst_22 : f32 to vector<8x16xf32>
    %47 = arith.addf %46, %45 : vector<8x16xf32>
    %48 = arith.divf %46, %47 : vector<8x16xf32>
    %49 = vector.extract_strided_slice %36 {offsets = [0, 16], sizes = [8, 16], strides = [1, 1]} : vector<8x64xf32> to vector<8x16xf32>
    %50 = arith.negf %49 : vector<8x16xf32>
    %51 = math.exp %50 : vector<8x16xf32>
    %cst_23 = arith.constant 1.000000e+00 : f32
    %52 = vector.broadcast %cst_23 : f32 to vector<8x16xf32>
    %53 = arith.addf %52, %51 : vector<8x16xf32>
    %54 = arith.divf %52, %53 : vector<8x16xf32>
    %55 = vector.extract_strided_slice %36 {offsets = [0, 32], sizes = [8, 16], strides = [1, 1]} : vector<8x64xf32> to vector<8x16xf32>
    %56 = math.tanh %55 : vector<8x16xf32>
    %57 = vector.extract_strided_slice %36 {offsets = [0, 48], sizes = [8, 16], strides = [1, 1]} : vector<8x64xf32> to vector<8x16xf32>
    %58 = arith.negf %57 : vector<8x16xf32>
    %59 = math.exp %58 : vector<8x16xf32>
    %cst_24 = arith.constant 1.000000e+00 : f32
    %60 = vector.broadcast %cst_24 : f32 to vector<8x16xf32>
    %61 = arith.addf %60, %59 : vector<8x16xf32>
    %62 = arith.divf %60, %61 : vector<8x16xf32>
    %63 = arith.mulf %54, %27 : vector<8x16xf32>
    %64 = arith.mulf %48, %56 : vector<8x16xf32>
    %65 = arith.addf %63, %64 : vector<8x16xf32>
    %66 = vector.broadcast %42 : vector<8x1xf32> to vector<8x16xf32>
    %67 = arith.mulf %65, %66 : vector<8x16xf32>
    %68 = math.tanh %67 : vector<8x16xf32>
    %69 = arith.mulf %62, %68 : vector<8x16xf32>
    %70 = vector.broadcast %42 : vector<8x1xf32> to vector<8x16xf32>
    %71 = arith.mulf %69, %70 : vector<8x16xf32>
    %72 = arith.index_cast %32 : i32 to index
    %c0_25 = arith.constant 0 : index
    %73 = vector.load %arg2[%72, %c0_25] : memref<64x1xf32, #tpu.memory_space<vmem>>, vector<8x1xf32>
    %74 = vector.extract_strided_slice %40 {offsets = [0, 0], sizes = [8, 16], strides = [1, 1]} : vector<8x64xf32> to vector<8x16xf32>
    %75 = arith.negf %74 : vector<8x16xf32>
    %76 = math.exp %75 : vector<8x16xf32>
    %cst_26 = arith.constant 1.000000e+00 : f32
    %77 = vector.broadcast %cst_26 : f32 to vector<8x16xf32>
    %78 = arith.addf %77, %76 : vector<8x16xf32>
    %79 = arith.divf %77, %78 : vector<8x16xf32>
    %80 = vector.extract_strided_slice %40 {offsets = [0, 16], sizes = [8, 16], strides = [1, 1]} : vector<8x64xf32> to vector<8x16xf32>
    %81 = arith.negf %80 : vector<8x16xf32>
    %82 = math.exp %81 : vector<8x16xf32>
    %cst_27 = arith.constant 1.000000e+00 : f32
    %83 = vector.broadcast %cst_27 : f32 to vector<8x16xf32>
    %84 = arith.addf %83, %82 : vector<8x16xf32>
    %85 = arith.divf %83, %84 : vector<8x16xf32>
    %86 = vector.extract_strided_slice %40 {offsets = [0, 32], sizes = [8, 16], strides = [1, 1]} : vector<8x64xf32> to vector<8x16xf32>
    %87 = math.tanh %86 : vector<8x16xf32>
    %88 = vector.extract_strided_slice %40 {offsets = [0, 48], sizes = [8, 16], strides = [1, 1]} : vector<8x64xf32> to vector<8x16xf32>
    %89 = arith.negf %88 : vector<8x16xf32>
    %90 = math.exp %89 : vector<8x16xf32>
    %cst_28 = arith.constant 1.000000e+00 : f32
    %91 = vector.broadcast %cst_28 : f32 to vector<8x16xf32>
    %92 = arith.addf %91, %90 : vector<8x16xf32>
    %93 = arith.divf %91, %92 : vector<8x16xf32>
    %94 = arith.mulf %85, %27 : vector<8x16xf32>
    %95 = arith.mulf %79, %87 : vector<8x16xf32>
    %96 = arith.addf %94, %95 : vector<8x16xf32>
    %97 = vector.broadcast %73 : vector<8x1xf32> to vector<8x16xf32>
    %98 = arith.mulf %96, %97 : vector<8x16xf32>
    %99 = math.tanh %98 : vector<8x16xf32>
    %100 = arith.mulf %93, %99 : vector<8x16xf32>
    %101 = vector.broadcast %73 : vector<8x1xf32> to vector<8x16xf32>
    %102 = arith.mulf %100, %101 : vector<8x16xf32>
    %103 = arith.index_cast %29 : i32 to index
    %c0_29 = arith.constant 0 : index
    %104 = vector.load %arg10[%103, %c0_29] : memref<64x32xf32, #tpu.memory_space<vmem>>, vector<8x16xf32>
    tpu.vector_store %arg10[%103, %c0_29], %71 {strides = array<i32>} : memref<64x32xf32, #tpu.memory_space<vmem>>, vector<8x16xf32>,
    %105 = arith.index_cast %32 : i32 to index
    %c16 = arith.constant 16 : index
    %106 = vector.load %arg10[%105, %c16] : memref<64x32xf32, #tpu.memory_space<vmem>>, vector<8x16xf32>
    tpu.vector_store %arg10[%105, %c16], %102 {strides = array<i32>} : memref<64x32xf32, #tpu.memory_space<vmem>>, vector<8x16xf32>,
    %c1_i32 = arith.constant 1 : i32
    %c8_i32_30 = arith.constant 8 : i32
    %107 = arith.muli %c1_i32, %c8_i32_30 : i32
    %108 = tpu.assume_multiple %107, 8 : i32
    %c7_i32_31 = arith.constant 7 : i32
    %109 = arith.subi %c7_i32_31, %c1_i32 : i32
    %c8_i32_32 = arith.constant 8 : i32
    %110 = arith.muli %109, %c8_i32_32 : i32
    %111 = tpu.assume_multiple %110, 8 : i32
    %112 = arith.index_cast %108 : i32 to index
    %c0_33 = arith.constant 0 : index
    %113 = vector.load %arg12[%112, %c0_33] : memref<64x128xf32, #tpu.memory_space<vmem>>, vector<8x64xf32>
    %cst_34 = arith.constant dense<0.000000e+00> : vector<8x64xf32>
    %114 = tpu.matmul %71, %25, %cst_34 {dimension_numbers = #tpu.dot_dimension_numbers<[1], [0], [0], [1], [0, 0, 1, 1], [], []>} : vector<8x16xf32>, vector<16x64xf32>, vector<8x64xf32> -> vector<8x64xf32>
    %115 = arith.addf %113, %114 : vector<8x64xf32>
    %116 = arith.index_cast %111 : i32 to index
    %c64_35 = arith.constant 64 : index
    %117 = vector.load %arg12[%116, %c64_35] : memref<64x128xf32, #tpu.memory_space<vmem>>, vector<8x64xf32>
    %cst_36 = arith.constant dense<0.000000e+00> : vector<8x64xf32>
    %118 = tpu.matmul %102, %26, %cst_36 {dimension_numbers = #tpu.dot_dimension_numbers<[1], [0], [0], [1], [0, 0, 1, 1], [], []>} : vector<8x16xf32>, vector<16x64xf32>, vector<8x64xf32> -> vector<8x64xf32>
    %119 = arith.addf %117, %118 : vector<8x64xf32>
    %120 = arith.index_cast %108 : i32 to index
    %c0_37 = arith.constant 0 : index
    %121 = vector.load %arg2[%120, %c0_37] : memref<64x1xf32, #tpu.memory_space<vmem>>, vector<8x1xf32>
    %122 = vector.extract_strided_slice %115 {offsets = [0, 0], sizes = [8, 16], strides = [1, 1]} : vector<8x64xf32> to vector<8x16xf32>
    %123 = arith.negf %122 : vector<8x16xf32>
    %124 = math.exp %123 : vector<8x16xf32>
    %cst_38 = arith.constant 1.000000e+00 : f32
    %125 = vector.broadcast %cst_38 : f32 to vector<8x16xf32>
    %126 = arith.addf %125, %124 : vector<8x16xf32>
    %127 = arith.divf %125, %126 : vector<8x16xf32>
    %128 = vector.extract_strided_slice %115 {offsets = [0, 16], sizes = [8, 16], strides = [1, 1]} : vector<8x64xf32> to vector<8x16xf32>
    %129 = arith.negf %128 : vector<8x16xf32>
    %130 = math.exp %129 : vector<8x16xf32>
    %cst_39 = arith.constant 1.000000e+00 : f32
    %131 = vector.broadcast %cst_39 : f32 to vector<8x16xf32>
    %132 = arith.addf %131, %130 : vector<8x16xf32>
    %133 = arith.divf %131, %132 : vector<8x16xf32>
    %134 = vector.extract_strided_slice %115 {offsets = [0, 32], sizes = [8, 16], strides = [1, 1]} : vector<8x64xf32> to vector<8x16xf32>
    %135 = math.tanh %134 : vector<8x16xf32>
    %136 = vector.extract_strided_slice %115 {offsets = [0, 48], sizes = [8, 16], strides = [1, 1]} : vector<8x64xf32> to vector<8x16xf32>
    %137 = arith.negf %136 : vector<8x16xf32>
    %138 = math.exp %137 : vector<8x16xf32>
    %cst_40 = arith.constant 1.000000e+00 : f32
    %139 = vector.broadcast %cst_40 : f32 to vector<8x16xf32>
    %140 = arith.addf %139, %138 : vector<8x16xf32>
    %141 = arith.divf %139, %140 : vector<8x16xf32>
    %142 = arith.mulf %133, %67 : vector<8x16xf32>
    %143 = arith.mulf %127, %135 : vector<8x16xf32>
    %144 = arith.addf %142, %143 : vector<8x16xf32>
    %145 = vector.broadcast %121 : vector<8x1xf32> to vector<8x16xf32>
    %146 = arith.mulf %144, %145 : vector<8x16xf32>
    %147 = math.tanh %146 : vector<8x16xf32>
    %148 = arith.mulf %141, %147 : vector<8x16xf32>
    %149 = vector.broadcast %121 : vector<8x1xf32> to vector<8x16xf32>
    %150 = arith.mulf %148, %149 : vector<8x16xf32>
    %151 = arith.index_cast %111 : i32 to index
    %c0_41 = arith.constant 0 : index
    %152 = vector.load %arg2[%151, %c0_41] : memref<64x1xf32, #tpu.memory_space<vmem>>, vector<8x1xf32>
    %153 = vector.extract_strided_slice %119 {offsets = [0, 0], sizes = [8, 16], strides = [1, 1]} : vector<8x64xf32> to vector<8x16xf32>
    %154 = arith.negf %153 : vector<8x16xf32>
    %155 = math.exp %154 : vector<8x16xf32>
    %cst_42 = arith.constant 1.000000e+00 : f32
    %156 = vector.broadcast %cst_42 : f32 to vector<8x16xf32>
    %157 = arith.addf %156, %155 : vector<8x16xf32>
    %158 = arith.divf %156, %157 : vector<8x16xf32>
    %159 = vector.extract_strided_slice %119 {offsets = [0, 16], sizes = [8, 16], strides = [1, 1]} : vector<8x64xf32> to vector<8x16xf32>
    %160 = arith.negf %159 : vector<8x16xf32>
    %161 = math.exp %160 : vector<8x16xf32>
    %cst_43 = arith.constant 1.000000e+00 : f32
    %162 = vector.broadcast %cst_43 : f32 to vector<8x16xf32>
    %163 = arith.addf %162, %161 : vector<8x16xf32>
    %164 = arith.divf %162, %163 : vector<8x16xf32>
    %165 = vector.extract_strided_slice %119 {offsets = [0, 32], sizes = [8, 16], strides = [1, 1]} : vector<8x64xf32> to vector<8x16xf32>
    %166 = math.tanh %165 : vector<8x16xf32>
    %167 = vector.extract_strided_slice %119 {offsets = [0, 48], sizes = [8, 16], strides = [1, 1]} : vector<8x64xf32> to vector<8x16xf32>
    %168 = arith.negf %167 : vector<8x16xf32>
    %169 = math.exp %168 : vector<8x16xf32>
    %cst_44 = arith.constant 1.000000e+00 : f32
    %170 = vector.broadcast %cst_44 : f32 to vector<8x16xf32>
    %171 = arith.addf %170, %169 : vector<8x16xf32>
    %172 = arith.divf %170, %171 : vector<8x16xf32>
    %173 = arith.mulf %164, %98 : vector<8x16xf32>
    %174 = arith.mulf %158, %166 : vector<8x16xf32>
    %175 = arith.addf %173, %174 : vector<8x16xf32>
    %176 = vector.broadcast %152 : vector<8x1xf32> to vector<8x16xf32>
    %177 = arith.mulf %175, %176 : vector<8x16xf32>
    %178 = math.tanh %177 : vector<8x16xf32>
    %179 = arith.mulf %172, %178 : vector<8x16xf32>
    %180 = vector.broadcast %152 : vector<8x1xf32> to vector<8x16xf32>
    %181 = arith.mulf %179, %180 : vector<8x16xf32>
    %182 = arith.index_cast %108 : i32 to index
    %c0_45 = arith.constant 0 : index
    %183 = vector.load %arg10[%182, %c0_45] : memref<64x32xf32, #tpu.memory_space<vmem>>, vector<8x16xf32>
    tpu.vector_store %arg10[%182, %c0_45], %150 {strides = array<i32>} : memref<64x32xf32, #tpu.memory_space<vmem>>, vector<8x16xf32>,
    %184 = arith.index_cast %111 : i32 to index
    %c16_46 = arith.constant 16 : index
    %185 = vector.load %arg10[%184, %c16_46] : memref<64x32xf32, #tpu.memory_space<vmem>>, vector<8x16xf32>
    tpu.vector_store %arg10[%184, %c16_46], %181 {strides = array<i32>} : memref<64x32xf32, #tpu.memory_space<vmem>>, vector<8x16xf32>,
    %c2_i32 = arith.constant 2 : i32
    %c8_i32_47 = arith.constant 8 : i32
    %186 = arith.muli %c2_i32, %c8_i32_47 : i32
    %187 = tpu.assume_multiple %186, 8 : i32
    %c7_i32_48 = arith.constant 7 : i32
    %188 = arith.subi %c7_i32_48, %c2_i32 : i32
    %c8_i32_49 = arith.constant 8 : i32
    %189 = arith.muli %188, %c8_i32_49 : i32
    %190 = tpu.assume_multiple %189, 8 : i32
    %191 = arith.index_cast %187 : i32 to index
    %c0_50 = arith.constant 0 : index
    %192 = vector.load %arg12[%191, %c0_50] : memref<64x128xf32, #tpu.memory_space<vmem>>, vector<8x64xf32>
    %cst_51 = arith.constant dense<0.000000e+00> : vector<8x64xf32>
    %193 = tpu.matmul %150, %25, %cst_51 {dimension_numbers = #tpu.dot_dimension_numbers<[1], [0], [0], [1], [0, 0, 1, 1], [], []>} : vector<8x16xf32>, vector<16x64xf32>, vector<8x64xf32> -> vector<8x64xf32>
    %194 = arith.addf %192, %193 : vector<8x64xf32>
    %195 = arith.index_cast %190 : i32 to index
    %c64_52 = arith.constant 64 : index
    %196 = vector.load %arg12[%195, %c64_52] : memref<64x128xf32, #tpu.memory_space<vmem>>, vector<8x64xf32>
    %cst_53 = arith.constant dense<0.000000e+00> : vector<8x64xf32>
    %197 = tpu.matmul %181, %26, %cst_53 {dimension_numbers = #tpu.dot_dimension_numbers<[1], [0], [0], [1], [0, 0, 1, 1], [], []>} : vector<8x16xf32>, vector<16x64xf32>, vector<8x64xf32> -> vector<8x64xf32>
    %198 = arith.addf %196, %197 : vector<8x64xf32>
    %199 = arith.index_cast %187 : i32 to index
    %c0_54 = arith.constant 0 : index
    %200 = vector.load %arg2[%199, %c0_54] : memref<64x1xf32, #tpu.memory_space<vmem>>, vector<8x1xf32>
    %201 = vector.extract_strided_slice %194 {offsets = [0, 0], sizes = [8, 16], strides = [1, 1]} : vector<8x64xf32> to vector<8x16xf32>
    %202 = arith.negf %201 : vector<8x16xf32>
    %203 = math.exp %202 : vector<8x16xf32>
    %cst_55 = arith.constant 1.000000e+00 : f32
    %204 = vector.broadcast %cst_55 : f32 to vector<8x16xf32>
    %205 = arith.addf %204, %203 : vector<8x16xf32>
    %206 = arith.divf %204, %205 : vector<8x16xf32>
    %207 = vector.extract_strided_slice %194 {offsets = [0, 16], sizes = [8, 16], strides = [1, 1]} : vector<8x64xf32> to vector<8x16xf32>
    %208 = arith.negf %207 : vector<8x16xf32>
    %209 = math.exp %208 : vector<8x16xf32>
    %cst_56 = arith.constant 1.000000e+00 : f32
    %210 = vector.broadcast %cst_56 : f32 to vector<8x16xf32>
    %211 = arith.addf %210, %209 : vector<8x16xf32>
    %212 = arith.divf %210, %211 : vector<8x16xf32>
    %213 = vector.extract_strided_slice %194 {offsets = [0, 32], sizes = [8, 16], strides = [1, 1]} : vector<8x64xf32> to vector<8x16xf32>
    %214 = math.tanh %213 : vector<8x16xf32>
    %215 = vector.extract_strided_slice %194 {offsets = [0, 48], sizes = [8, 16], strides = [1, 1]} : vector<8x64xf32> to vector<8x16xf32>
    %216 = arith.negf %215 : vector<8x16xf32>
    %217 = math.exp %216 : vector<8x16xf32>
    %cst_57 = arith.constant 1.000000e+00 : f32
    %218 = vector.broadcast %cst_57 : f32 to vector<8x16xf32>
    %219 = arith.addf %218, %217 : vector<8x16xf32>
    %220 = arith.divf %218, %219 : vector<8x16xf32>
    %221 = arith.mulf %212, %146 : vector<8x16xf32>
    %222 = arith.mulf %206, %214 : vector<8x16xf32>
    %223 = arith.addf %221, %222 : vector<8x16xf32>
    %224 = vector.broadcast %200 : vector<8x1xf32> to vector<8x16xf32>
    %225 = arith.mulf %223, %224 : vector<8x16xf32>
    %226 = math.tanh %225 : vector<8x16xf32>
    %227 = arith.mulf %220, %226 : vector<8x16xf32>
    %228 = vector.broadcast %200 : vector<8x1xf32> to vector<8x16xf32>
    %229 = arith.mulf %227, %228 : vector<8x16xf32>
    %230 = arith.index_cast %190 : i32 to index
    %c0_58 = arith.constant 0 : index
    %231 = vector.load %arg2[%230, %c0_58] : memref<64x1xf32, #tpu.memory_space<vmem>>, vector<8x1xf32>
    %232 = vector.extract_strided_slice %198 {offsets = [0, 0], sizes = [8, 16], strides = [1, 1]} : vector<8x64xf32> to vector<8x16xf32>
    %233 = arith.negf %232 : vector<8x16xf32>
    %234 = math.exp %233 : vector<8x16xf32>
    %cst_59 = arith.constant 1.000000e+00 : f32
    %235 = vector.broadcast %cst_59 : f32 to vector<8x16xf32>
    %236 = arith.addf %235, %234 : vector<8x16xf32>
    %237 = arith.divf %235, %236 : vector<8x16xf32>
    %238 = vector.extract_strided_slice %198 {offsets = [0, 16], sizes = [8, 16], strides = [1, 1]} : vector<8x64xf32> to vector<8x16xf32>
    %239 = arith.negf %238 : vector<8x16xf32>
    %240 = math.exp %239 : vector<8x16xf32>
    %cst_60 = arith.constant 1.000000e+00 : f32
    %241 = vector.broadcast %cst_60 : f32 to vector<8x16xf32>
    %242 = arith.addf %241, %240 : vector<8x16xf32>
    %243 = arith.divf %241, %242 : vector<8x16xf32>
    %244 = vector.extract_strided_slice %198 {offsets = [0, 32], sizes = [8, 16], strides = [1, 1]} : vector<8x64xf32> to vector<8x16xf32>
    %245 = math.tanh %244 : vector<8x16xf32>
    %246 = vector.extract_strided_slice %198 {offsets = [0, 48], sizes = [8, 16], strides = [1, 1]} : vector<8x64xf32> to vector<8x16xf32>
    %247 = arith.negf %246 : vector<8x16xf32>
    %248 = math.exp %247 : vector<8x16xf32>
    %cst_61 = arith.constant 1.000000e+00 : f32
    %249 = vector.broadcast %cst_61 : f32 to vector<8x16xf32>
    %250 = arith.addf %249, %248 : vector<8x16xf32>
    %251 = arith.divf %249, %250 : vector<8x16xf32>
    %252 = arith.mulf %243, %177 : vector<8x16xf32>
    %253 = arith.mulf %237, %245 : vector<8x16xf32>
    %254 = arith.addf %252, %253 : vector<8x16xf32>
    %255 = vector.broadcast %231 : vector<8x1xf32> to vector<8x16xf32>
    %256 = arith.mulf %254, %255 : vector<8x16xf32>
    %257 = math.tanh %256 : vector<8x16xf32>
    %258 = arith.mulf %251, %257 : vector<8x16xf32>
    %259 = vector.broadcast %231 : vector<8x1xf32> to vector<8x16xf32>
    %260 = arith.mulf %258, %259 : vector<8x16xf32>
    %261 = arith.index_cast %187 : i32 to index
    %c0_62 = arith.constant 0 : index
    %262 = vector.load %arg10[%261, %c0_62] : memref<64x32xf32, #tpu.memory_space<vmem>>, vector<8x16xf32>
    tpu.vector_store %arg10[%261, %c0_62], %229 {strides = array<i32>} : memref<64x32xf32, #tpu.memory_space<vmem>>, vector<8x16xf32>,
    %263 = arith.index_cast %190 : i32 to index
    %c16_63 = arith.constant 16 : index
    %264 = vector.load %arg10[%263, %c16_63] : memref<64x32xf32, #tpu.memory_space<vmem>>, vector<8x16xf32>
    tpu.vector_store %arg10[%263, %c16_63], %260 {strides = array<i32>} : memref<64x32xf32, #tpu.memory_space<vmem>>, vector<8x16xf32>,
    %c3_i32 = arith.constant 3 : i32
    %c8_i32_64 = arith.constant 8 : i32
    %265 = arith.muli %c3_i32, %c8_i32_64 : i32
    %266 = tpu.assume_multiple %265, 8 : i32
    %c7_i32_65 = arith.constant 7 : i32
    %267 = arith.subi %c7_i32_65, %c3_i32 : i32
    %c8_i32_66 = arith.constant 8 : i32
    %268 = arith.muli %267, %c8_i32_66 : i32
    %269 = tpu.assume_multiple %268, 8 : i32
    %270 = arith.index_cast %266 : i32 to index
    %c0_67 = arith.constant 0 : index
    %271 = vector.load %arg12[%270, %c0_67] : memref<64x128xf32, #tpu.memory_space<vmem>>, vector<8x64xf32>
    %cst_68 = arith.constant dense<0.000000e+00> : vector<8x64xf32>
    %272 = tpu.matmul %229, %25, %cst_68 {dimension_numbers = #tpu.dot_dimension_numbers<[1], [0], [0], [1], [0, 0, 1, 1], [], []>} : vector<8x16xf32>, vector<16x64xf32>, vector<8x64xf32> -> vector<8x64xf32>
    %273 = arith.addf %271, %272 : vector<8x64xf32>
    %274 = arith.index_cast %269 : i32 to index
    %c64_69 = arith.constant 64 : index
    %275 = vector.load %arg12[%274, %c64_69] : memref<64x128xf32, #tpu.memory_space<vmem>>, vector<8x64xf32>
    %cst_70 = arith.constant dense<0.000000e+00> : vector<8x64xf32>
    %276 = tpu.matmul %260, %26, %cst_70 {dimension_numbers = #tpu.dot_dimension_numbers<[1], [0], [0], [1], [0, 0, 1, 1], [], []>} : vector<8x16xf32>, vector<16x64xf32>, vector<8x64xf32> -> vector<8x64xf32>
    %277 = arith.addf %275, %276 : vector<8x64xf32>
    %278 = arith.index_cast %266 : i32 to index
    %c0_71 = arith.constant 0 : index
    %279 = vector.load %arg2[%278, %c0_71] : memref<64x1xf32, #tpu.memory_space<vmem>>, vector<8x1xf32>
    %280 = vector.extract_strided_slice %273 {offsets = [0, 0], sizes = [8, 16], strides = [1, 1]} : vector<8x64xf32> to vector<8x16xf32>
    %281 = arith.negf %280 : vector<8x16xf32>
    %282 = math.exp %281 : vector<8x16xf32>
    %cst_72 = arith.constant 1.000000e+00 : f32
    %283 = vector.broadcast %cst_72 : f32 to vector<8x16xf32>
    %284 = arith.addf %283, %282 : vector<8x16xf32>
    %285 = arith.divf %283, %284 : vector<8x16xf32>
    %286 = vector.extract_strided_slice %273 {offsets = [0, 16], sizes = [8, 16], strides = [1, 1]} : vector<8x64xf32> to vector<8x16xf32>
    %287 = arith.negf %286 : vector<8x16xf32>
    %288 = math.exp %287 : vector<8x16xf32>
    %cst_73 = arith.constant 1.000000e+00 : f32
    %289 = vector.broadcast %cst_73 : f32 to vector<8x16xf32>
    %290 = arith.addf %289, %288 : vector<8x16xf32>
    %291 = arith.divf %289, %290 : vector<8x16xf32>
    %292 = vector.extract_strided_slice %273 {offsets = [0, 32], sizes = [8, 16], strides = [1, 1]} : vector<8x64xf32> to vector<8x16xf32>
    %293 = math.tanh %292 : vector<8x16xf32>
    %294 = vector.extract_strided_slice %273 {offsets = [0, 48], sizes = [8, 16], strides = [1, 1]} : vector<8x64xf32> to vector<8x16xf32>
    %295 = arith.negf %294 : vector<8x16xf32>
    %296 = math.exp %295 : vector<8x16xf32>
    %cst_74 = arith.constant 1.000000e+00 : f32
    %297 = vector.broadcast %cst_74 : f32 to vector<8x16xf32>
    %298 = arith.addf %297, %296 : vector<8x16xf32>
    %299 = arith.divf %297, %298 : vector<8x16xf32>
    %300 = arith.mulf %291, %225 : vector<8x16xf32>
    %301 = arith.mulf %285, %293 : vector<8x16xf32>
    %302 = arith.addf %300, %301 : vector<8x16xf32>
    %303 = vector.broadcast %279 : vector<8x1xf32> to vector<8x16xf32>
    %304 = arith.mulf %302, %303 : vector<8x16xf32>
    %305 = math.tanh %304 : vector<8x16xf32>
    %306 = arith.mulf %299, %305 : vector<8x16xf32>
    %307 = vector.broadcast %279 : vector<8x1xf32> to vector<8x16xf32>
    %308 = arith.mulf %306, %307 : vector<8x16xf32>
    %309 = arith.index_cast %269 : i32 to index
    %c0_75 = arith.constant 0 : index
    %310 = vector.load %arg2[%309, %c0_75] : memref<64x1xf32, #tpu.memory_space<vmem>>, vector<8x1xf32>
    %311 = vector.extract_strided_slice %277 {offsets = [0, 0], sizes = [8, 16], strides = [1, 1]} : vector<8x64xf32> to vector<8x16xf32>
    %312 = arith.negf %311 : vector<8x16xf32>
    %313 = math.exp %312 : vector<8x16xf32>
    %cst_76 = arith.constant 1.000000e+00 : f32
    %314 = vector.broadcast %cst_76 : f32 to vector<8x16xf32>
    %315 = arith.addf %314, %313 : vector<8x16xf32>
    %316 = arith.divf %314, %315 : vector<8x16xf32>
    %317 = vector.extract_strided_slice %277 {offsets = [0, 16], sizes = [8, 16], strides = [1, 1]} : vector<8x64xf32> to vector<8x16xf32>
    %318 = arith.negf %317 : vector<8x16xf32>
    %319 = math.exp %318 : vector<8x16xf32>
    %cst_77 = arith.constant 1.000000e+00 : f32
    %320 = vector.broadcast %cst_77 : f32 to vector<8x16xf32>
    %321 = arith.addf %320, %319 : vector<8x16xf32>
    %322 = arith.divf %320, %321 : vector<8x16xf32>
    %323 = vector.extract_strided_slice %277 {offsets = [0, 32], sizes = [8, 16], strides = [1, 1]} : vector<8x64xf32> to vector<8x16xf32>
    %324 = math.tanh %323 : vector<8x16xf32>
    %325 = vector.extract_strided_slice %277 {offsets = [0, 48], sizes = [8, 16], strides = [1, 1]} : vector<8x64xf32> to vector<8x16xf32>
    %326 = arith.negf %325 : vector<8x16xf32>
    %327 = math.exp %326 : vector<8x16xf32>
    %cst_78 = arith.constant 1.000000e+00 : f32
    %328 = vector.broadcast %cst_78 : f32 to vector<8x16xf32>
    %329 = arith.addf %328, %327 : vector<8x16xf32>
    %330 = arith.divf %328, %329 : vector<8x16xf32>
    %331 = arith.mulf %322, %256 : vector<8x16xf32>
    %332 = arith.mulf %316, %324 : vector<8x16xf32>
    %333 = arith.addf %331, %332 : vector<8x16xf32>
    %334 = vector.broadcast %310 : vector<8x1xf32> to vector<8x16xf32>
    %335 = arith.mulf %333, %334 : vector<8x16xf32>
    %336 = math.tanh %335 : vector<8x16xf32>
    %337 = arith.mulf %330, %336 : vector<8x16xf32>
    %338 = vector.broadcast %310 : vector<8x1xf32> to vector<8x16xf32>
    %339 = arith.mulf %337, %338 : vector<8x16xf32>
    %340 = arith.index_cast %266 : i32 to index
    %c0_79 = arith.constant 0 : index
    %341 = vector.load %arg10[%340, %c0_79] : memref<64x32xf32, #tpu.memory_space<vmem>>, vector<8x16xf32>
    tpu.vector_store %arg10[%340, %c0_79], %308 {strides = array<i32>} : memref<64x32xf32, #tpu.memory_space<vmem>>, vector<8x16xf32>,
    %342 = arith.index_cast %269 : i32 to index
    %c16_80 = arith.constant 16 : index
    %343 = vector.load %arg10[%342, %c16_80] : memref<64x32xf32, #tpu.memory_space<vmem>>, vector<8x16xf32>
    tpu.vector_store %arg10[%342, %c16_80], %339 {strides = array<i32>} : memref<64x32xf32, #tpu.memory_space<vmem>>, vector<8x16xf32>,
    %c4_i32 = arith.constant 4 : i32
    %c8_i32_81 = arith.constant 8 : i32
    %344 = arith.muli %c4_i32, %c8_i32_81 : i32
    %345 = tpu.assume_multiple %344, 8 : i32
    %c7_i32_82 = arith.constant 7 : i32
    %346 = arith.subi %c7_i32_82, %c4_i32 : i32
    %c8_i32_83 = arith.constant 8 : i32
    %347 = arith.muli %346, %c8_i32_83 : i32
    %348 = tpu.assume_multiple %347, 8 : i32
    %349 = arith.index_cast %345 : i32 to index
    %c0_84 = arith.constant 0 : index
    %350 = vector.load %arg12[%349, %c0_84] : memref<64x128xf32, #tpu.memory_space<vmem>>, vector<8x64xf32>
    %cst_85 = arith.constant dense<0.000000e+00> : vector<8x64xf32>
    %351 = tpu.matmul %308, %25, %cst_85 {dimension_numbers = #tpu.dot_dimension_numbers<[1], [0], [0], [1], [0, 0, 1, 1], [], []>} : vector<8x16xf32>, vector<16x64xf32>, vector<8x64xf32> -> vector<8x64xf32>
    %352 = arith.addf %350, %351 : vector<8x64xf32>
    %353 = arith.index_cast %348 : i32 to index
    %c64_86 = arith.constant 64 : index
    %354 = vector.load %arg12[%353, %c64_86] : memref<64x128xf32, #tpu.memory_space<vmem>>, vector<8x64xf32>
    %cst_87 = arith.constant dense<0.000000e+00> : vector<8x64xf32>
    %355 = tpu.matmul %339, %26, %cst_87 {dimension_numbers = #tpu.dot_dimension_numbers<[1], [0], [0], [1], [0, 0, 1, 1], [], []>} : vector<8x16xf32>, vector<16x64xf32>, vector<8x64xf32> -> vector<8x64xf32>
    %356 = arith.addf %354, %355 : vector<8x64xf32>
    %357 = arith.index_cast %345 : i32 to index
    %c0_88 = arith.constant 0 : index
    %358 = vector.load %arg2[%357, %c0_88] : memref<64x1xf32, #tpu.memory_space<vmem>>, vector<8x1xf32>
    %359 = vector.extract_strided_slice %352 {offsets = [0, 0], sizes = [8, 16], strides = [1, 1]} : vector<8x64xf32> to vector<8x16xf32>
    %360 = arith.negf %359 : vector<8x16xf32>
    %361 = math.exp %360 : vector<8x16xf32>
    %cst_89 = arith.constant 1.000000e+00 : f32
    %362 = vector.broadcast %cst_89 : f32 to vector<8x16xf32>
    %363 = arith.addf %362, %361 : vector<8x16xf32>
    %364 = arith.divf %362, %363 : vector<8x16xf32>
    %365 = vector.extract_strided_slice %352 {offsets = [0, 16], sizes = [8, 16], strides = [1, 1]} : vector<8x64xf32> to vector<8x16xf32>
    %366 = arith.negf %365 : vector<8x16xf32>
    %367 = math.exp %366 : vector<8x16xf32>
    %cst_90 = arith.constant 1.000000e+00 : f32
    %368 = vector.broadcast %cst_90 : f32 to vector<8x16xf32>
    %369 = arith.addf %368, %367 : vector<8x16xf32>
    %370 = arith.divf %368, %369 : vector<8x16xf32>
    %371 = vector.extract_strided_slice %352 {offsets = [0, 32], sizes = [8, 16], strides = [1, 1]} : vector<8x64xf32> to vector<8x16xf32>
    %372 = math.tanh %371 : vector<8x16xf32>
    %373 = vector.extract_strided_slice %352 {offsets = [0, 48], sizes = [8, 16], strides = [1, 1]} : vector<8x64xf32> to vector<8x16xf32>
    %374 = arith.negf %373 : vector<8x16xf32>
    %375 = math.exp %374 : vector<8x16xf32>
    %cst_91 = arith.constant 1.000000e+00 : f32
    %376 = vector.broadcast %cst_91 : f32 to vector<8x16xf32>
    %377 = arith.addf %376, %375 : vector<8x16xf32>
    %378 = arith.divf %376, %377 : vector<8x16xf32>
    %379 = arith.mulf %370, %304 : vector<8x16xf32>
    %380 = arith.mulf %364, %372 : vector<8x16xf32>
    %381 = arith.addf %379, %380 : vector<8x16xf32>
    %382 = vector.broadcast %358 : vector<8x1xf32> to vector<8x16xf32>
    %383 = arith.mulf %381, %382 : vector<8x16xf32>
    %384 = math.tanh %383 : vector<8x16xf32>
    %385 = arith.mulf %378, %384 : vector<8x16xf32>
    %386 = vector.broadcast %358 : vector<8x1xf32> to vector<8x16xf32>
    %387 = arith.mulf %385, %386 : vector<8x16xf32>
    %388 = arith.index_cast %348 : i32 to index
    %c0_92 = arith.constant 0 : index
    %389 = vector.load %arg2[%388, %c0_92] : memref<64x1xf32, #tpu.memory_space<vmem>>, vector<8x1xf32>
    %390 = vector.extract_strided_slice %356 {offsets = [0, 0], sizes = [8, 16], strides = [1, 1]} : vector<8x64xf32> to vector<8x16xf32>
    %391 = arith.negf %390 : vector<8x16xf32>
    %392 = math.exp %391 : vector<8x16xf32>
    %cst_93 = arith.constant 1.000000e+00 : f32
    %393 = vector.broadcast %cst_93 : f32 to vector<8x16xf32>
    %394 = arith.addf %393, %392 : vector<8x16xf32>
    %395 = arith.divf %393, %394 : vector<8x16xf32>
    %396 = vector.extract_strided_slice %356 {offsets = [0, 16], sizes = [8, 16], strides = [1, 1]} : vector<8x64xf32> to vector<8x16xf32>
    %397 = arith.negf %396 : vector<8x16xf32>
    %398 = math.exp %397 : vector<8x16xf32>
    %cst_94 = arith.constant 1.000000e+00 : f32
    %399 = vector.broadcast %cst_94 : f32 to vector<8x16xf32>
    %400 = arith.addf %399, %398 : vector<8x16xf32>
    %401 = arith.divf %399, %400 : vector<8x16xf32>
    %402 = vector.extract_strided_slice %356 {offsets = [0, 32], sizes = [8, 16], strides = [1, 1]} : vector<8x64xf32> to vector<8x16xf32>
    %403 = math.tanh %402 : vector<8x16xf32>
    %404 = vector.extract_strided_slice %356 {offsets = [0, 48], sizes = [8, 16], strides = [1, 1]} : vector<8x64xf32> to vector<8x16xf32>
    %405 = arith.negf %404 : vector<8x16xf32>
    %406 = math.exp %405 : vector<8x16xf32>
    %cst_95 = arith.constant 1.000000e+00 : f32
    %407 = vector.broadcast %cst_95 : f32 to vector<8x16xf32>
    %408 = arith.addf %407, %406 : vector<8x16xf32>
    %409 = arith.divf %407, %408 : vector<8x16xf32>
    %410 = arith.mulf %401, %335 : vector<8x16xf32>
    %411 = arith.mulf %395, %403 : vector<8x16xf32>
    %412 = arith.addf %410, %411 : vector<8x16xf32>
    %413 = vector.broadcast %389 : vector<8x1xf32> to vector<8x16xf32>
    %414 = arith.mulf %412, %413 : vector<8x16xf32>
    %415 = math.tanh %414 : vector<8x16xf32>
    %416 = arith.mulf %409, %415 : vector<8x16xf32>
    %417 = vector.broadcast %389 : vector<8x1xf32> to vector<8x16xf32>
    %418 = arith.mulf %416, %417 : vector<8x16xf32>
    %419 = arith.index_cast %345 : i32 to index
    %c0_96 = arith.constant 0 : index
    %420 = vector.load %arg10[%419, %c0_96] : memref<64x32xf32, #tpu.memory_space<vmem>>, vector<8x16xf32>
    tpu.vector_store %arg10[%419, %c0_96], %387 {strides = array<i32>} : memref<64x32xf32, #tpu.memory_space<vmem>>, vector<8x16xf32>,
    %421 = arith.index_cast %348 : i32 to index
    %c16_97 = arith.constant 16 : index
    %422 = vector.load %arg10[%421, %c16_97] : memref<64x32xf32, #tpu.memory_space<vmem>>, vector<8x16xf32>
    tpu.vector_store %arg10[%421, %c16_97], %418 {strides = array<i32>} : memref<64x32xf32, #tpu.memory_space<vmem>>, vector<8x16xf32>,
    %c5_i32 = arith.constant 5 : i32
    %c8_i32_98 = arith.constant 8 : i32
    %423 = arith.muli %c5_i32, %c8_i32_98 : i32
    %424 = tpu.assume_multiple %423, 8 : i32
    %c7_i32_99 = arith.constant 7 : i32
    %425 = arith.subi %c7_i32_99, %c5_i32 : i32
    %c8_i32_100 = arith.constant 8 : i32
    %426 = arith.muli %425, %c8_i32_100 : i32
    %427 = tpu.assume_multiple %426, 8 : i32
    %428 = arith.index_cast %424 : i32 to index
    %c0_101 = arith.constant 0 : index
    %429 = vector.load %arg12[%428, %c0_101] : memref<64x128xf32, #tpu.memory_space<vmem>>, vector<8x64xf32>
    %cst_102 = arith.constant dense<0.000000e+00> : vector<8x64xf32>
    %430 = tpu.matmul %387, %25, %cst_102 {dimension_numbers = #tpu.dot_dimension_numbers<[1], [0], [0], [1], [0, 0, 1, 1], [], []>} : vector<8x16xf32>, vector<16x64xf32>, vector<8x64xf32> -> vector<8x64xf32>
    %431 = arith.addf %429, %430 : vector<8x64xf32>
    %432 = arith.index_cast %427 : i32 to index
    %c64_103 = arith.constant 64 : index
    %433 = vector.load %arg12[%432, %c64_103] : memref<64x128xf32, #tpu.memory_space<vmem>>, vector<8x64xf32>
    %cst_104 = arith.constant dense<0.000000e+00> : vector<8x64xf32>
    %434 = tpu.matmul %418, %26, %cst_104 {dimension_numbers = #tpu.dot_dimension_numbers<[1], [0], [0], [1], [0, 0, 1, 1], [], []>} : vector<8x16xf32>, vector<16x64xf32>, vector<8x64xf32> -> vector<8x64xf32>
    %435 = arith.addf %433, %434 : vector<8x64xf32>
    %436 = arith.index_cast %424 : i32 to index
    %c0_105 = arith.constant 0 : index
    %437 = vector.load %arg2[%436, %c0_105] : memref<64x1xf32, #tpu.memory_space<vmem>>, vector<8x1xf32>
    %438 = vector.extract_strided_slice %431 {offsets = [0, 0], sizes = [8, 16], strides = [1, 1]} : vector<8x64xf32> to vector<8x16xf32>
    %439 = arith.negf %438 : vector<8x16xf32>
    %440 = math.exp %439 : vector<8x16xf32>
    %cst_106 = arith.constant 1.000000e+00 : f32
    %441 = vector.broadcast %cst_106 : f32 to vector<8x16xf32>
    %442 = arith.addf %441, %440 : vector<8x16xf32>
    %443 = arith.divf %441, %442 : vector<8x16xf32>
    %444 = vector.extract_strided_slice %431 {offsets = [0, 16], sizes = [8, 16], strides = [1, 1]} : vector<8x64xf32> to vector<8x16xf32>
    %445 = arith.negf %444 : vector<8x16xf32>
    %446 = math.exp %445 : vector<8x16xf32>
    %cst_107 = arith.constant 1.000000e+00 : f32
    %447 = vector.broadcast %cst_107 : f32 to vector<8x16xf32>
    %448 = arith.addf %447, %446 : vector<8x16xf32>
    %449 = arith.divf %447, %448 : vector<8x16xf32>
    %450 = vector.extract_strided_slice %431 {offsets = [0, 32], sizes = [8, 16], strides = [1, 1]} : vector<8x64xf32> to vector<8x16xf32>
    %451 = math.tanh %450 : vector<8x16xf32>
    %452 = vector.extract_strided_slice %431 {offsets = [0, 48], sizes = [8, 16], strides = [1, 1]} : vector<8x64xf32> to vector<8x16xf32>
    %453 = arith.negf %452 : vector<8x16xf32>
    %454 = math.exp %453 : vector<8x16xf32>
    %cst_108 = arith.constant 1.000000e+00 : f32
    %455 = vector.broadcast %cst_108 : f32 to vector<8x16xf32>
    %456 = arith.addf %455, %454 : vector<8x16xf32>
    %457 = arith.divf %455, %456 : vector<8x16xf32>
    %458 = arith.mulf %449, %383 : vector<8x16xf32>
    %459 = arith.mulf %443, %451 : vector<8x16xf32>
    %460 = arith.addf %458, %459 : vector<8x16xf32>
    %461 = vector.broadcast %437 : vector<8x1xf32> to vector<8x16xf32>
    %462 = arith.mulf %460, %461 : vector<8x16xf32>
    %463 = math.tanh %462 : vector<8x16xf32>
    %464 = arith.mulf %457, %463 : vector<8x16xf32>
    %465 = vector.broadcast %437 : vector<8x1xf32> to vector<8x16xf32>
    %466 = arith.mulf %464, %465 : vector<8x16xf32>
    %467 = arith.index_cast %427 : i32 to index
    %c0_109 = arith.constant 0 : index
    %468 = vector.load %arg2[%467, %c0_109] : memref<64x1xf32, #tpu.memory_space<vmem>>, vector<8x1xf32>
    %469 = vector.extract_strided_slice %435 {offsets = [0, 0], sizes = [8, 16], strides = [1, 1]} : vector<8x64xf32> to vector<8x16xf32>
    %470 = arith.negf %469 : vector<8x16xf32>
    %471 = math.exp %470 : vector<8x16xf32>
    %cst_110 = arith.constant 1.000000e+00 : f32
    %472 = vector.broadcast %cst_110 : f32 to vector<8x16xf32>
    %473 = arith.addf %472, %471 : vector<8x16xf32>
    %474 = arith.divf %472, %473 : vector<8x16xf32>
    %475 = vector.extract_strided_slice %435 {offsets = [0, 16], sizes = [8, 16], strides = [1, 1]} : vector<8x64xf32> to vector<8x16xf32>
    %476 = arith.negf %475 : vector<8x16xf32>
    %477 = math.exp %476 : vector<8x16xf32>
    %cst_111 = arith.constant 1.000000e+00 : f32
    %478 = vector.broadcast %cst_111 : f32 to vector<8x16xf32>
    %479 = arith.addf %478, %477 : vector<8x16xf32>
    %480 = arith.divf %478, %479 : vector<8x16xf32>
    %481 = vector.extract_strided_slice %435 {offsets = [0, 32], sizes = [8, 16], strides = [1, 1]} : vector<8x64xf32> to vector<8x16xf32>
    %482 = math.tanh %481 : vector<8x16xf32>
    %483 = vector.extract_strided_slice %435 {offsets = [0, 48], sizes = [8, 16], strides = [1, 1]} : vector<8x64xf32> to vector<8x16xf32>
    %484 = arith.negf %483 : vector<8x16xf32>
    %485 = math.exp %484 : vector<8x16xf32>
    %cst_112 = arith.constant 1.000000e+00 : f32
    %486 = vector.broadcast %cst_112 : f32 to vector<8x16xf32>
    %487 = arith.addf %486, %485 : vector<8x16xf32>
    %488 = arith.divf %486, %487 : vector<8x16xf32>
    %489 = arith.mulf %480, %414 : vector<8x16xf32>
    %490 = arith.mulf %474, %482 : vector<8x16xf32>
    %491 = arith.addf %489, %490 : vector<8x16xf32>
    %492 = vector.broadcast %468 : vector<8x1xf32> to vector<8x16xf32>
    %493 = arith.mulf %491, %492 : vector<8x16xf32>
    %494 = math.tanh %493 : vector<8x16xf32>
    %495 = arith.mulf %488, %494 : vector<8x16xf32>
    %496 = vector.broadcast %468 : vector<8x1xf32> to vector<8x16xf32>
    %497 = arith.mulf %495, %496 : vector<8x16xf32>
    %498 = arith.index_cast %424 : i32 to index
    %c0_113 = arith.constant 0 : index
    %499 = vector.load %arg10[%498, %c0_113] : memref<64x32xf32, #tpu.memory_space<vmem>>, vector<8x16xf32>
    tpu.vector_store %arg10[%498, %c0_113], %466 {strides = array<i32>} : memref<64x32xf32, #tpu.memory_space<vmem>>, vector<8x16xf32>,
    %500 = arith.index_cast %427 : i32 to index
    %c16_114 = arith.constant 16 : index
    %501 = vector.load %arg10[%500, %c16_114] : memref<64x32xf32, #tpu.memory_space<vmem>>, vector<8x16xf32>
    tpu.vector_store %arg10[%500, %c16_114], %497 {strides = array<i32>} : memref<64x32xf32, #tpu.memory_space<vmem>>, vector<8x16xf32>,
    %c6_i32 = arith.constant 6 : i32
    %c8_i32_115 = arith.constant 8 : i32
    %502 = arith.muli %c6_i32, %c8_i32_115 : i32
    %503 = tpu.assume_multiple %502, 8 : i32
    %c7_i32_116 = arith.constant 7 : i32
    %504 = arith.subi %c7_i32_116, %c6_i32 : i32
    %c8_i32_117 = arith.constant 8 : i32
    %505 = arith.muli %504, %c8_i32_117 : i32
    %506 = tpu.assume_multiple %505, 8 : i32
    %507 = arith.index_cast %503 : i32 to index
    %c0_118 = arith.constant 0 : index
    %508 = vector.load %arg12[%507, %c0_118] : memref<64x128xf32, #tpu.memory_space<vmem>>, vector<8x64xf32>
    %cst_119 = arith.constant dense<0.000000e+00> : vector<8x64xf32>
    %509 = tpu.matmul %466, %25, %cst_119 {dimension_numbers = #tpu.dot_dimension_numbers<[1], [0], [0], [1], [0, 0, 1, 1], [], []>} : vector<8x16xf32>, vector<16x64xf32>, vector<8x64xf32> -> vector<8x64xf32>
    %510 = arith.addf %508, %509 : vector<8x64xf32>
    %511 = arith.index_cast %506 : i32 to index
    %c64_120 = arith.constant 64 : index
    %512 = vector.load %arg12[%511, %c64_120] : memref<64x128xf32, #tpu.memory_space<vmem>>, vector<8x64xf32>
    %cst_121 = arith.constant dense<0.000000e+00> : vector<8x64xf32>
    %513 = tpu.matmul %497, %26, %cst_121 {dimension_numbers = #tpu.dot_dimension_numbers<[1], [0], [0], [1], [0, 0, 1, 1], [], []>} : vector<8x16xf32>, vector<16x64xf32>, vector<8x64xf32> -> vector<8x64xf32>
    %514 = arith.addf %512, %513 : vector<8x64xf32>
    %515 = arith.index_cast %503 : i32 to index
    %c0_122 = arith.constant 0 : index
    %516 = vector.load %arg2[%515, %c0_122] : memref<64x1xf32, #tpu.memory_space<vmem>>, vector<8x1xf32>
    %517 = vector.extract_strided_slice %510 {offsets = [0, 0], sizes = [8, 16], strides = [1, 1]} : vector<8x64xf32> to vector<8x16xf32>
    %518 = arith.negf %517 : vector<8x16xf32>
    %519 = math.exp %518 : vector<8x16xf32>
    %cst_123 = arith.constant 1.000000e+00 : f32
    %520 = vector.broadcast %cst_123 : f32 to vector<8x16xf32>
    %521 = arith.addf %520, %519 : vector<8x16xf32>
    %522 = arith.divf %520, %521 : vector<8x16xf32>
    %523 = vector.extract_strided_slice %510 {offsets = [0, 16], sizes = [8, 16], strides = [1, 1]} : vector<8x64xf32> to vector<8x16xf32>
    %524 = arith.negf %523 : vector<8x16xf32>
    %525 = math.exp %524 : vector<8x16xf32>
    %cst_124 = arith.constant 1.000000e+00 : f32
    %526 = vector.broadcast %cst_124 : f32 to vector<8x16xf32>
    %527 = arith.addf %526, %525 : vector<8x16xf32>
    %528 = arith.divf %526, %527 : vector<8x16xf32>
    %529 = vector.extract_strided_slice %510 {offsets = [0, 32], sizes = [8, 16], strides = [1, 1]} : vector<8x64xf32> to vector<8x16xf32>
    %530 = math.tanh %529 : vector<8x16xf32>
    %531 = vector.extract_strided_slice %510 {offsets = [0, 48], sizes = [8, 16], strides = [1, 1]} : vector<8x64xf32> to vector<8x16xf32>
    %532 = arith.negf %531 : vector<8x16xf32>
    %533 = math.exp %532 : vector<8x16xf32>
    %cst_125 = arith.constant 1.000000e+00 : f32
    %534 = vector.broadcast %cst_125 : f32 to vector<8x16xf32>
    %535 = arith.addf %534, %533 : vector<8x16xf32>
    %536 = arith.divf %534, %535 : vector<8x16xf32>
    %537 = arith.mulf %528, %462 : vector<8x16xf32>
    %538 = arith.mulf %522, %530 : vector<8x16xf32>
    %539 = arith.addf %537, %538 : vector<8x16xf32>
    %540 = vector.broadcast %516 : vector<8x1xf32> to vector<8x16xf32>
    %541 = arith.mulf %539, %540 : vector<8x16xf32>
    %542 = math.tanh %541 : vector<8x16xf32>
    %543 = arith.mulf %536, %542 : vector<8x16xf32>
    %544 = vector.broadcast %516 : vector<8x1xf32> to vector<8x16xf32>
    %545 = arith.mulf %543, %544 : vector<8x16xf32>
    %546 = arith.index_cast %506 : i32 to index
    %c0_126 = arith.constant 0 : index
    %547 = vector.load %arg2[%546, %c0_126] : memref<64x1xf32, #tpu.memory_space<vmem>>, vector<8x1xf32>
    %548 = vector.extract_strided_slice %514 {offsets = [0, 0], sizes = [8, 16], strides = [1, 1]} : vector<8x64xf32> to vector<8x16xf32>
    %549 = arith.negf %548 : vector<8x16xf32>
    %550 = math.exp %549 : vector<8x16xf32>
    %cst_127 = arith.constant 1.000000e+00 : f32
    %551 = vector.broadcast %cst_127 : f32 to vector<8x16xf32>
    %552 = arith.addf %551, %550 : vector<8x16xf32>
    %553 = arith.divf %551, %552 : vector<8x16xf32>
    %554 = vector.extract_strided_slice %514 {offsets = [0, 16], sizes = [8, 16], strides = [1, 1]} : vector<8x64xf32> to vector<8x16xf32>
    %555 = arith.negf %554 : vector<8x16xf32>
    %556 = math.exp %555 : vector<8x16xf32>
    %cst_128 = arith.constant 1.000000e+00 : f32
    %557 = vector.broadcast %cst_128 : f32 to vector<8x16xf32>
    %558 = arith.addf %557, %556 : vector<8x16xf32>
    %559 = arith.divf %557, %558 : vector<8x16xf32>
    %560 = vector.extract_strided_slice %514 {offsets = [0, 32], sizes = [8, 16], strides = [1, 1]} : vector<8x64xf32> to vector<8x16xf32>
    %561 = math.tanh %560 : vector<8x16xf32>
    %562 = vector.extract_strided_slice %514 {offsets = [0, 48], sizes = [8, 16], strides = [1, 1]} : vector<8x64xf32> to vector<8x16xf32>
    %563 = arith.negf %562 : vector<8x16xf32>
    %564 = math.exp %563 : vector<8x16xf32>
    %cst_129 = arith.constant 1.000000e+00 : f32
    %565 = vector.broadcast %cst_129 : f32 to vector<8x16xf32>
    %566 = arith.addf %565, %564 : vector<8x16xf32>
    %567 = arith.divf %565, %566 : vector<8x16xf32>
    %568 = arith.mulf %559, %493 : vector<8x16xf32>
    %569 = arith.mulf %553, %561 : vector<8x16xf32>
    %570 = arith.addf %568, %569 : vector<8x16xf32>
    %571 = vector.broadcast %547 : vector<8x1xf32> to vector<8x16xf32>
    %572 = arith.mulf %570, %571 : vector<8x16xf32>
    %573 = math.tanh %572 : vector<8x16xf32>
    %574 = arith.mulf %567, %573 : vector<8x16xf32>
    %575 = vector.broadcast %547 : vector<8x1xf32> to vector<8x16xf32>
    %576 = arith.mulf %574, %575 : vector<8x16xf32>
    %577 = arith.index_cast %503 : i32 to index
    %c0_130 = arith.constant 0 : index
    %578 = vector.load %arg10[%577, %c0_130] : memref<64x32xf32, #tpu.memory_space<vmem>>, vector<8x16xf32>
    tpu.vector_store %arg10[%577, %c0_130], %545 {strides = array<i32>} : memref<64x32xf32, #tpu.memory_space<vmem>>, vector<8x16xf32>,
    %579 = arith.index_cast %506 : i32 to index
    %c16_131 = arith.constant 16 : index
    %580 = vector.load %arg10[%579, %c16_131] : memref<64x32xf32, #tpu.memory_space<vmem>>, vector<8x16xf32>
    tpu.vector_store %arg10[%579, %c16_131], %576 {strides = array<i32>} : memref<64x32xf32, #tpu.memory_space<vmem>>, vector<8x16xf32>,
    %c7_i32_132 = arith.constant 7 : i32
    %c8_i32_133 = arith.constant 8 : i32
    %581 = arith.muli %c7_i32_132, %c8_i32_133 : i32
    %582 = tpu.assume_multiple %581, 8 : i32
    %c7_i32_134 = arith.constant 7 : i32
    %583 = arith.subi %c7_i32_134, %c7_i32_132 : i32
    %c8_i32_135 = arith.constant 8 : i32
    %584 = arith.muli %583, %c8_i32_135 : i32
    %585 = tpu.assume_multiple %584, 8 : i32
    %586 = arith.index_cast %582 : i32 to index
    %c0_136 = arith.constant 0 : index
    %587 = vector.load %arg12[%586, %c0_136] : memref<64x128xf32, #tpu.memory_space<vmem>>, vector<8x64xf32>
    %cst_137 = arith.constant dense<0.000000e+00> : vector<8x64xf32>
    %588 = tpu.matmul %545, %25, %cst_137 {dimension_numbers = #tpu.dot_dimension_numbers<[1], [0], [0], [1], [0, 0, 1, 1], [], []>} : vector<8x16xf32>, vector<16x64xf32>, vector<8x64xf32> -> vector<8x64xf32>
    %589 = arith.addf %587, %588 : vector<8x64xf32>
    %590 = arith.index_cast %585 : i32 to index
    %c64_138 = arith.constant 64 : index
    %591 = vector.load %arg12[%590, %c64_138] : memref<64x128xf32, #tpu.memory_space<vmem>>, vector<8x64xf32>
    %cst_139 = arith.constant dense<0.000000e+00> : vector<8x64xf32>
    %592 = tpu.matmul %576, %26, %cst_139 {dimension_numbers = #tpu.dot_dimension_numbers<[1], [0], [0], [1], [0, 0, 1, 1], [], []>} : vector<8x16xf32>, vector<16x64xf32>, vector<8x64xf32> -> vector<8x64xf32>
    %593 = arith.addf %591, %592 : vector<8x64xf32>
    %594 = arith.index_cast %582 : i32 to index
    %c0_140 = arith.constant 0 : index
    %595 = vector.load %arg2[%594, %c0_140] : memref<64x1xf32, #tpu.memory_space<vmem>>, vector<8x1xf32>
    %596 = vector.extract_strided_slice %589 {offsets = [0, 0], sizes = [8, 16], strides = [1, 1]} : vector<8x64xf32> to vector<8x16xf32>
    %597 = arith.negf %596 : vector<8x16xf32>
    %598 = math.exp %597 : vector<8x16xf32>
    %cst_141 = arith.constant 1.000000e+00 : f32
    %599 = vector.broadcast %cst_141 : f32 to vector<8x16xf32>
    %600 = arith.addf %599, %598 : vector<8x16xf32>
    %601 = arith.divf %599, %600 : vector<8x16xf32>
    %602 = vector.extract_strided_slice %589 {offsets = [0, 16], sizes = [8, 16], strides = [1, 1]} : vector<8x64xf32> to vector<8x16xf32>
    %603 = arith.negf %602 : vector<8x16xf32>
    %604 = math.exp %603 : vector<8x16xf32>
    %cst_142 = arith.constant 1.000000e+00 : f32
    %605 = vector.broadcast %cst_142 : f32 to vector<8x16xf32>
    %606 = arith.addf %605, %604 : vector<8x16xf32>
    %607 = arith.divf %605, %606 : vector<8x16xf32>
    %608 = vector.extract_strided_slice %589 {offsets = [0, 32], sizes = [8, 16], strides = [1, 1]} : vector<8x64xf32> to vector<8x16xf32>
    %609 = math.tanh %608 : vector<8x16xf32>
    %610 = vector.extract_strided_slice %589 {offsets = [0, 48], sizes = [8, 16], strides = [1, 1]} : vector<8x64xf32> to vector<8x16xf32>
    %611 = arith.negf %610 : vector<8x16xf32>
    %612 = math.exp %611 : vector<8x16xf32>
    %cst_143 = arith.constant 1.000000e+00 : f32
    %613 = vector.broadcast %cst_143 : f32 to vector<8x16xf32>
    %614 = arith.addf %613, %612 : vector<8x16xf32>
    %615 = arith.divf %613, %614 : vector<8x16xf32>
    %616 = arith.mulf %607, %541 : vector<8x16xf32>
    %617 = arith.mulf %601, %609 : vector<8x16xf32>
    %618 = arith.addf %616, %617 : vector<8x16xf32>
    %619 = vector.broadcast %595 : vector<8x1xf32> to vector<8x16xf32>
    %620 = arith.mulf %618, %619 : vector<8x16xf32>
    %621 = math.tanh %620 : vector<8x16xf32>
    %622 = arith.mulf %615, %621 : vector<8x16xf32>
    %623 = vector.broadcast %595 : vector<8x1xf32> to vector<8x16xf32>
    %624 = arith.mulf %622, %623 : vector<8x16xf32>
    %625 = arith.index_cast %585 : i32 to index
    %c0_144 = arith.constant 0 : index
    %626 = vector.load %arg2[%625, %c0_144] : memref<64x1xf32, #tpu.memory_space<vmem>>, vector<8x1xf32>
    %627 = vector.extract_strided_slice %593 {offsets = [0, 0], sizes = [8, 16], strides = [1, 1]} : vector<8x64xf32> to vector<8x16xf32>
    %628 = arith.negf %627 : vector<8x16xf32>
    %629 = math.exp %628 : vector<8x16xf32>
    %cst_145 = arith.constant 1.000000e+00 : f32
    %630 = vector.broadcast %cst_145 : f32 to vector<8x16xf32>
    %631 = arith.addf %630, %629 : vector<8x16xf32>
    %632 = arith.divf %630, %631 : vector<8x16xf32>
    %633 = vector.extract_strided_slice %593 {offsets = [0, 16], sizes = [8, 16], strides = [1, 1]} : vector<8x64xf32> to vector<8x16xf32>
    %634 = arith.negf %633 : vector<8x16xf32>
    %635 = math.exp %634 : vector<8x16xf32>
    %cst_146 = arith.constant 1.000000e+00 : f32
    %636 = vector.broadcast %cst_146 : f32 to vector<8x16xf32>
    %637 = arith.addf %636, %635 : vector<8x16xf32>
    %638 = arith.divf %636, %637 : vector<8x16xf32>
    %639 = vector.extract_strided_slice %593 {offsets = [0, 32], sizes = [8, 16], strides = [1, 1]} : vector<8x64xf32> to vector<8x16xf32>
    %640 = math.tanh %639 : vector<8x16xf32>
    %641 = vector.extract_strided_slice %593 {offsets = [0, 48], sizes = [8, 16], strides = [1, 1]} : vector<8x64xf32> to vector<8x16xf32>
    %642 = arith.negf %641 : vector<8x16xf32>
    %643 = math.exp %642 : vector<8x16xf32>
    %cst_147 = arith.constant 1.000000e+00 : f32
    %644 = vector.broadcast %cst_147 : f32 to vector<8x16xf32>
    %645 = arith.addf %644, %643 : vector<8x16xf32>
    %646 = arith.divf %644, %645 : vector<8x16xf32>
    %647 = arith.mulf %638, %572 : vector<8x16xf32>
    %648 = arith.mulf %632, %640 : vector<8x16xf32>
    %649 = arith.addf %647, %648 : vector<8x16xf32>
    %650 = vector.broadcast %626 : vector<8x1xf32> to vector<8x16xf32>
    %651 = arith.mulf %649, %650 : vector<8x16xf32>
    %652 = math.tanh %651 : vector<8x16xf32>
    %653 = arith.mulf %646, %652 : vector<8x16xf32>
    %654 = vector.broadcast %626 : vector<8x1xf32> to vector<8x16xf32>
    %655 = arith.mulf %653, %654 : vector<8x16xf32>
    %656 = arith.index_cast %582 : i32 to index
    %c0_148 = arith.constant 0 : index
    %657 = vector.load %arg10[%656, %c0_148] : memref<64x32xf32, #tpu.memory_space<vmem>>, vector<8x16xf32>
    tpu.vector_store %arg10[%656, %c0_148], %624 {strides = array<i32>} : memref<64x32xf32, #tpu.memory_space<vmem>>, vector<8x16xf32>,
    %658 = arith.index_cast %585 : i32 to index
    %c16_149 = arith.constant 16 : index
    %659 = vector.load %arg10[%658, %c16_149] : memref<64x32xf32, #tpu.memory_space<vmem>>, vector<8x16xf32>
    tpu.vector_store %arg10[%658, %c16_149], %655 {strides = array<i32>} : memref<64x32xf32, #tpu.memory_space<vmem>>, vector<8x16xf32>,
    %c8_i32_150 = arith.constant 8 : i32
    %c0_151 = arith.constant 0 : index
    %c0_152 = arith.constant 0 : index
    %660 = vector.load %arg10[%c0_151, %c0_152] : memref<64x32xf32, #tpu.memory_space<vmem>>, vector<64x32xf32>
    %661 = vector.extract_strided_slice %660 {offsets = [0, 0], sizes = [56, 32], strides = [1, 1]} : vector<64x32xf32> to vector<56x32xf32>
    %c0_153 = arith.constant 0 : index
    %c0_154 = arith.constant 0 : index
    %662 = vector.load %arg7[%c0_153, %c0_154] : memref<32x32xf32, #tpu.memory_space<vmem>>, vector<32x32xf32>
    %cst_155 = arith.constant dense<0.000000e+00> : vector<56x32xf32>
    %663 = tpu.matmul %661, %662, %cst_155 {dimension_numbers = #tpu.dot_dimension_numbers<[1], [0], [0], [1], [0, 0, 1, 1], [], []>} : vector<56x32xf32>, vector<32x32xf32>, vector<56x32xf32> -> vector<56x32xf32>
    %664 = vector.extract_strided_slice %660 {offsets = [8, 0], sizes = [56, 32], strides = [1, 1]} : vector<64x32xf32> to vector<56x32xf32>
    %c0_156 = arith.constant 0 : index
    %c0_157 = arith.constant 0 : index
    %665 = vector.load %arg8[%c0_156, %c0_157] : memref<32x32xf32, #tpu.memory_space<vmem>>, vector<32x32xf32>
    %cst_158 = arith.constant dense<0.000000e+00> : vector<56x32xf32>
    %666 = tpu.matmul %664, %665, %cst_158 {dimension_numbers = #tpu.dot_dimension_numbers<[1], [0], [0], [1], [0, 0, 1, 1], [], []>} : vector<56x32xf32>, vector<32x32xf32>, vector<56x32xf32> -> vector<56x32xf32>
    %667 = arith.addf %663, %666 : vector<56x32xf32>
    %c0_159 = arith.constant 0 : index
    %c0_160 = arith.constant 0 : index
    %668 = vector.load %arg9[%c0_159, %c0_160] : memref<1x32xf32, #tpu.memory_space<vmem>>, vector<1x32xf32>
    %669 = vector.broadcast %668 : vector<1x32xf32> to vector<56x32xf32>
    %670 = arith.addf %667, %669 : vector<56x32xf32>
    %c0_161 = arith.constant 0 : index
    %c0_162 = arith.constant 0 : index
    %671 = vector.load %arg11[%c0_161, %c0_162] : memref<56x32xf32, #tpu.memory_space<vmem>>, vector<56x32xf32>
    tpu.vector_store %arg11[%c0_161, %c0_162], %670 {strides = array<i32>} : memref<56x32xf32, #tpu.memory_space<vmem>>, vector<56x32xf32>,
    return
  }
  func.func @transform_0(%arg0: i32) -> (i32, i32) {
    %c0_i32 = arith.constant 0 : i32
    %c0_i32_0 = arith.constant 0 : i32
    %c0_i32_1 = arith.constant 0 : i32
    return %c0_i32, %c0_i32_0 : i32, i32
  }
  func.func @transform_1(%arg0: i32) -> (i32, i32) {
    %c0_i32 = arith.constant 0 : i32
    %c0_i32_0 = arith.constant 0 : i32
    %c0_i32_1 = arith.constant 0 : i32
    return %c0_i32, %c0_i32_0 : i32, i32
  }
  func.func @transform_2(%arg0: i32) -> (i32, i32) {
    %c0_i32 = arith.constant 0 : i32
    %c0_i32_0 = arith.constant 0 : i32
    %c0_i32_1 = arith.constant 0 : i32
    return %c0_i32, %c0_i32_0 : i32, i32
  }
  func.func @transform_3(%arg0: i32) -> (i32, i32) {
    %c0_i32 = arith.constant 0 : i32
    %c0_i32_0 = arith.constant 0 : i32
    %c0_i32_1 = arith.constant 0 : i32
    return %c0_i32, %c0_i32_0 : i32, i32
  }
  func.func @transform_4(%arg0: i32) -> (i32, i32) {
    %c0_i32 = arith.constant 0 : i32
    %c0_i32_0 = arith.constant 0 : i32
    %c0_i32_1 = arith.constant 0 : i32
    return %c0_i32, %c0_i32_0 : i32, i32
  }
  func.func @transform_5(%arg0: i32) -> (i32, i32) {
    %c0_i32 = arith.constant 0 : i32
    %c0_i32_0 = arith.constant 0 : i32
    %c0_i32_1 = arith.constant 0 : i32
    return %c0_i32, %c0_i32_0 : i32, i32
  }
  func.func @transform_6(%arg0: i32) -> (i32, i32) {
    %c0_i32 = arith.constant 0 : i32
    %c0_i32_0 = arith.constant 0 : i32
    %c0_i32_1 = arith.constant 0 : i32
    return %c0_i32, %c0_i32_0 : i32, i32
  }
  func.func @transform_7(%arg0: i32) -> (i32, i32) {
    %c0_i32 = arith.constant 0 : i32
    %c0_i32_0 = arith.constant 0 : i32
    %c0_i32_1 = arith.constant 0 : i32
    return %c0_i32, %c0_i32_0 : i32, i32
  }
  func.func @transform_8(%arg0: i32) -> (i32, i32) {
    %c0_i32 = arith.constant 0 : i32
    %c0_i32_0 = arith.constant 0 : i32
    %c0_i32_1 = arith.constant 0 : i32
    return %c0_i32, %c0_i32_0 : i32, i32
  }
  func.func @transform_9(%arg0: i32) -> (i32, i32) {
    %c0_i32 = arith.constant 0 : i32
    %c0_i32_0 = arith.constant 0 : i32
    %c0_i32_1 = arith.constant 0 : i32
    return %c0_i32, %c0_i32_0 : i32, i32
  }
  func.func @transform_10(%arg0: i32) -> (i32, i32) {
    %c0_i32 = arith.constant 0 : i32
    %c0_i32_0 = arith.constant 0 : i32
    %c0_i32_1 = arith.constant 0 : i32
    return %c0_i32, %c0_i32_0 : i32, i32
  }
}

</mosaic_0001>

<llo_original>
// kernel: tpu_custom_call.1
$region0: #{tpu_custom_call.1}
  #allocation0 [shape = 'u32[]', space=smem, size = 0x4, offset = 0x4, fixed_abs, tag = 'smem constant byte address 0x4 - core index']
  #allocation1 [shape = 'u32[144,128]{1,0:T(1,128)}', space=vmem, size = 0x12000, scoped, tag = 'internal scratch']
  #allocation2 [shape = 'f32[64,128]{1,0:T(8,128)}', space=vmem, size = 0x8000, scoped, tag = 'scratch operand']
  %s0 = inlined_call_operand.hbm [shape: f32[64,32], index: 0, kind: input, shape index: {}]
  %s1 = inlined_call_operand.hbm [shape: f32[64,1], index: 1, kind: input, shape index: {}]
  %s2 = inlined_call_operand.hbm [shape: f32[32,128], index: 2, kind: input, shape index: {}]
  %s3 = inlined_call_operand.hbm [shape: f32[1,128], index: 3, kind: input, shape index: {}]
  %s4 = inlined_call_operand.hbm [shape: f32[16,64], index: 4, kind: input, shape index: {}]
  %s5 = inlined_call_operand.hbm [shape: f32[16,64], index: 5, kind: input, shape index: {}]
  %s6 = inlined_call_operand.hbm [shape: f32[32,32], index: 6, kind: input, shape index: {}]
  %s7 = inlined_call_operand.hbm [shape: f32[32,32], index: 7, kind: input, shape index: {}]
  %s8 = inlined_call_operand.hbm [shape: f32[1,32], index: 8, kind: input, shape index: {}]
  %s9 = inlined_call_operand.hbm [shape: f32[64,32], index: 9, kind: output, shape index: {0}]
  %s10 = inlined_call_operand.hbm [shape: f32[56,32], index: 10, kind: output, shape index: {1}]
  %11 = xla_tuple %s9, %s10
  %s12 = sld [smem:[#allocation0]]
  $region90: #{tpu_custom_call.1} parent=0
    _
  %s14 = ssub.s32 1, %s12
  %s15 = scalar_select 0, %s14, %s12
  $region1: #{tpu_custom_call.1} parent=0
    #allocation3 [shape = 'u8[32768]{0}', space=vmem, size = 0x8000, scoped, tag = 'input window, operand 0, single buffered']
    #allocation4 [shape = 's32[1]{0}', space=sflag, size = 0x4, scoped, tag = 'scoped memory for tpu_custom_call.1']
    #allocation5 [shape = 's32[1]{0}', space=sflag, size = 0x4, scoped, tag = 'scoped memory for tpu_custom_call.1']
    #allocation6 [shape = 'u8[32768]{0}', space=vmem, size = 0x8000, scoped, tag = 'input window, operand 1, single buffered']
    #allocation7 [shape = 's32[1]{0}', space=sflag, size = 0x4, scoped, tag = 'scoped memory for tpu_custom_call.1']
    #allocation8 [shape = 'u8[16384]{0}', space=vmem, size = 0x4000, scoped, tag = 'input window, operand 2, single buffered']
    #allocation9 [shape = 'u8[512]{0}', space=vmem, size = 0x400, scoped, tag = 'input window, operand 3, single buffered']
    #allocation10 [shape = 's32[1]{0}', space=sflag, size = 0x4, scoped, tag = 'scoped memory for tpu_custom_call.1']
    #allocation11 [shape = 'u8[8192]{0}', space=vmem, size = 0x2000, scoped, tag = 'input window, operand 4, single buffered']
    #allocation12 [shape = 'u8[8192]{0}', space=vmem, size = 0x2000, scoped, tag = 'input window, operand 5, single buffered']
    #allocation13 [shape = 's32[1]{0}', space=sflag, size = 0x4, scoped, tag = 'scoped memory for tpu_custom_call.1']
    #allocation14 [shape = 'u8[16384]{0}', space=vmem, size = 0x4000, scoped, tag = 'input window, operand 6, single buffered']
    #allocation15 [shape = 'u8[16384]{0}', space=vmem, size = 0x4000, scoped, tag = 'input window, operand 7, single buffered']
    #allocation16 [shape = 's32[1]{0}', space=sflag, size = 0x4, scoped, tag = 'scoped memory for tpu_custom_call.1']
    #allocation17 [shape = 'u8[512]{0}', space=vmem, size = 0x400, scoped, tag = 'input window, operand 8, single buffered']
    #allocation18 [shape = 'u8[32768]{0}', space=vmem, size = 0x8000, scoped, tag = 'output window, operand 0, single buffered']
    #allocation19 [shape = 'u8[28672]{0}', space=vmem, size = 0x7000, scoped, tag = 'output window, operand 1, single buffered']
    #allocation20 [shape = 's32[1]{0}', space=sflag, size = 0x4, scoped, tag = 'scoped memory for tpu_custom_call.1']
    %16 = vsyncpa [#allocation4], 0
    %17 = vsyncpa [#allocation7], 0
    %18 = vsyncpa [#allocation10], 0
    %19 = vsyncpa [#allocation13], 0
    %20 = vsyncpa [#allocation16], 0
    %21 = vsyncpa [#allocation5], 0
    %22 = vsyncpa [#allocation20], 0
    // Predicated region
    $region2: #{tpu_custom_call.1} parent=1 // pred_check
      _
    $region3: #{tpu_custom_call.1} parent=1 // pred_check_branch
      %24 = sbr.rel (0) target = $region5
    $region4: #{tpu_custom_call.1} parent=1 // pred_region
      %s26 = ssub.s32 1024, 1024
      %27 = vsyncadd [#allocation4], %s26
      %s28 = sshll.u32 [#allocation3], 4
      %s29 = int_to_ptr.vmem [resolvable:$true] %s28
      %34 = dma.hbm_to_vmem [thread:$0]  %s0, 1024, %s29, [#allocation4], 128, 128, 8
    $region5: #{tpu_custom_call.1} parent=1 // pred_fallthru
      _
    // Predicated region
    $region6: #{tpu_custom_call.1} parent=1 // pred_check
      _
    $region7: #{tpu_custom_call.1} parent=1 // pred_check_branch
      %36 = sbr.rel (0) target = $region9
    $region8: #{tpu_custom_call.1} parent=1 // pred_region
      %s38 = ssub.s32 1024, 1024
      %39 = vsyncadd [#allocation7], %s38
      %s40 = sshll.u32 [#allocation6], 4
      %s41 = int_to_ptr.vmem [resolvable:$true] %s40
      %46 = dma.hbm_to_vmem [thread:$0]  %s1, 1024, %s41, [#allocation7], 128, 128, 8
    $region9: #{tpu_custom_call.1} parent=1 // pred_fallthru
      _
    // Predicated region
    $region10: #{tpu_custom_call.1} parent=1 // pred_check
      _
    $region11: #{tpu_custom_call.1} parent=1 // pred_check_branch
      %48 = sbr.rel (0) target = $region13
    $region12: #{tpu_custom_call.1} parent=1 // pred_region
      %s50 = ssub.s32 512, 512
      %51 = vsyncadd [#allocation7], %s50
      %s52 = sshll.u32 [#allocation8], 4
      %s53 = int_to_ptr.vmem [resolvable:$true] %s52
      %58 = dma.hbm_to_vmem [thread:$0]  %s2, 512, %s53, [#allocation7], 128, 128, 8
    $region13: #{tpu_custom_call.1} parent=1 // pred_fallthru
      _
    // Predicated region
    $region14: #{tpu_custom_call.1} parent=1 // pred_check
      _
    $region15: #{tpu_custom_call.1} parent=1 // pred_check_branch
      %60 = sbr.rel (0) target = $region17
    $region16: #{tpu_custom_call.1} parent=1 // pred_region
      %s62 = ssub.s32 16, 16
      %63 = vsyncadd [#allocation10], %s62
      %s65 = sshll.u32 [#allocation9], 4
      %s66 = int_to_ptr.vmem [resolvable:$true] %s65
      %68 = dma.hbm_to_vmem [thread:$0]  %s3, 16, %s66, [#allocation10]
    $region17: #{tpu_custom_call.1} parent=1 // pred_fallthru
      _
    // Predicated region
    $region18: #{tpu_custom_call.1} parent=1 // pred_check
      _
    $region19: #{tpu_custom_call.1} parent=1 // pred_check_branch
      %70 = sbr.rel (0) target = $region21
    $region20: #{tpu_custom_call.1} parent=1 // pred_region
      %s72 = ssub.s32 256, 256
      %73 = vsyncadd [#allocation10], %s72
      %s74 = sshll.u32 [#allocation11], 4
      %s75 = int_to_ptr.vmem [resolvable:$true] %s74
      %80 = dma.hbm_to_vmem [thread:$0]  %s4, 256, %s75, [#allocation10], 128, 128, 8
    $region21: #{tpu_custom_call.1} parent=1 // pred_fallthru
      _
    // Predicated region
    $region22: #{tpu_custom_call.1} parent=1 // pred_check
      _
    $region23: #{tpu_custom_call.1} parent=1 // pred_check_branch
      %82 = sbr.rel (0) target = $region25
    $region24: #{tpu_custom_call.1} parent=1 // pred_region
      %s84 = ssub.s32 256, 256
      %85 = vsyncadd [#allocation13], %s84
      %s86 = sshll.u32 [#allocation12], 4
      %s87 = int_to_ptr.vmem [resolvable:$true] %s86
      %92 = dma.hbm_to_vmem [thread:$0]  %s5, 256, %s87, [#allocation13], 128, 128, 8
    $region25: #{tpu_custom_call.1} parent=1 // pred_fallthru
      _
    // Predicated region
    $region26: #{tpu_custom_call.1} parent=1 // pred_check
      _
    $region27: #{tpu_custom_call.1} parent=1 // pred_check_branch
      %94 = sbr.rel (0) target = $region29
    $region28: #{tpu_custom_call.1} parent=1 // pred_region
      %s96 = ssub.s32 512, 512
      %97 = vsyncadd [#allocation13], %s96
      %s98 = sshll.u32 [#allocation14], 4
      %s99 = int_to_ptr.vmem [resolvable:$true] %s98
      %104 = dma.hbm_to_vmem [thread:$0]  %s6, 512, %s99, [#allocation13], 128, 128, 8
    $region29: #{tpu_custom_call.1} parent=1 // pred_fallthru
      _
    // Predicated region
    $region30: #{tpu_custom_call.1} parent=1 // pred_check
      _
    $region31: #{tpu_custom_call.1} parent=1 // pred_check_branch
      %106 = sbr.rel (0) target = $region33
    $region32: #{tpu_custom_call.1} parent=1 // pred_region
      %s108 = ssub.s32 512, 512
      %109 = vsyncadd [#allocation16], %s108
      %s110 = sshll.u32 [#allocation15], 4
      %s111 = int_to_ptr.vmem [resolvable:$true] %s110
      %116 = dma.hbm_to_vmem [thread:$0]  %s7, 512, %s111, [#allocation16], 128, 128, 8
    $region33: #{tpu_custom_call.1} parent=1 // pred_fallthru
      _
    // Predicated region
    $region34: #{tpu_custom_call.1} parent=1 // pred_check
      _
    $region35: #{tpu_custom_call.1} parent=1 // pred_check_branch
      %118 = sbr.rel (0) target = $region37
    $region36: #{tpu_custom_call.1} parent=1 // pred_region
      %s120 = ssub.s32 16, 16
      %121 = vsyncadd [#allocation16], %s120
      %s123 = sshll.u32 [#allocation17], 4
      %s124 = int_to_ptr.vmem [resolvable:$true] %s123
      %126 = dma.hbm_to_vmem [thread:$0]  %s8, 16, %s124, [#allocation16]
    $region37: #{tpu_custom_call.1} parent=1 // pred_fallthru
      _
    // Predicated region
    $region38: #{tpu_custom_call.1} parent=1 // pred_check
      _
    $region39: #{tpu_custom_call.1} parent=1 // pred_check_branch
      %128 = sbr.rel (0) target = $region41
    $region40: #{tpu_custom_call.1} parent=1 // pred_region
      %129 = dma.done [#allocation4], 1024
    $region41: #{tpu_custom_call.1} parent=1 // pred_fallthru
      _
    // Predicated region
    $region42: #{tpu_custom_call.1} parent=1 // pred_check
      _
    $region43: #{tpu_custom_call.1} parent=1 // pred_check_branch
      %131 = sbr.rel (0) target = $region45
    $region44: #{tpu_custom_call.1} parent=1 // pred_region
      %132 = dma.done [#allocation7], 1024
    $region45: #{tpu_custom_call.1} parent=1 // pred_fallthru
      _
    // Predicated region
    $region46: #{tpu_custom_call.1} parent=1 // pred_check
      _
    $region47: #{tpu_custom_call.1} parent=1 // pred_check_branch
      %134 = sbr.rel (0) target = $region49
    $region48: #{tpu_custom_call.1} parent=1 // pred_region
      %135 = dma.done [#allocation7], 512
    $region49: #{tpu_custom_call.1} parent=1 // pred_fallthru
      _
    // Predicated region
    $region50: #{tpu_custom_call.1} parent=1 // pred_check
      _
    $region51: #{tpu_custom_call.1} parent=1 // pred_check_branch
      %137 = sbr.rel (0) target = $region53
    $region52: #{tpu_custom_call.1} parent=1 // pred_region
      %138 = dma.done [#allocation10], 16
    $region53: #{tpu_custom_call.1} parent=1 // pred_fallthru
      _
    // Predicated region
    $region54: #{tpu_custom_call.1} parent=1 // pred_check
      _
    $region55: #{tpu_custom_call.1} parent=1 // pred_check_branch
      %140 = sbr.rel (0) target = $region57
    $region56: #{tpu_custom_call.1} parent=1 // pred_region
      %141 = dma.done [#allocation10], 256
    $region57: #{tpu_custom_call.1} parent=1 // pred_fallthru
      _
    // Predicated region
    $region58: #{tpu_custom_call.1} parent=1 // pred_check
      _
    $region59: #{tpu_custom_call.1} parent=1 // pred_check_branch
      %143 = sbr.rel (0) target = $region61
    $region60: #{tpu_custom_call.1} parent=1 // pred_region
      %144 = dma.done [#allocation13], 256
    $region61: #{tpu_custom_call.1} parent=1 // pred_fallthru
      _
    // Predicated region
    $region62: #{tpu_custom_call.1} parent=1 // pred_check
      _
    $region63: #{tpu_custom_call.1} parent=1 // pred_check_branch
      %146 = sbr.rel (0) target = $region65
    $region64: #{tpu_custom_call.1} parent=1 // pred_region
      %147 = dma.done [#allocation13], 512
    $region65: #{tpu_custom_call.1} parent=1 // pred_fallthru
      _
    // Predicated region
    $region66: #{tpu_custom_call.1} parent=1 // pred_check
      _
    $region67: #{tpu_custom_call.1} parent=1 // pred_check_branch
      %149 = sbr.rel (0) target = $region69
    $region68: #{tpu_custom_call.1} parent=1 // pred_region
      %150 = dma.done [#allocation16], 512
    $region69: #{tpu_custom_call.1} parent=1 // pred_fallthru
      _
    // Predicated region
    $region70: #{tpu_custom_call.1} parent=1 // pred_check
      _
    $region71: #{tpu_custom_call.1} parent=1 // pred_check_branch
      %152 = sbr.rel (0) target = $region73
    $region72: #{tpu_custom_call.1} parent=1 // pred_region
      %153 = dma.done [#allocation16], 16
    $region73: #{tpu_custom_call.1} parent=1 // pred_fallthru
      _
    %v154 = vld [vmem:[#allocation3] sm:$0xff]
    %v155 = vld [vmem:[#allocation3 + $0x8] sm:$0xff]
    %v156 = vld [vmem:[#allocation3 + $0x10] sm:$0xff]
    %v157 = vld [vmem:[#allocation3 + $0x18] sm:$0xff]
    %v158 = vld [vmem:[#allocation3 + $0x20] sm:$0xff]
    %v159 = vld [vmem:[#allocation3 + $0x28] sm:$0xff]
    %v160 = vld [vmem:[#allocation3 + $0x30] sm:$0xff]
    %v161 = vld [vmem:[#allocation3 + $0x38] sm:$0xff]
    %vm162 = vcmask 261120
    %v163 = vsel %vm162, %v154, 0.0
    %164 = vadd.xlane.f32.xlu0 %v163
    %v165 = vpop.xlane.xlu0 %164
    %v166 = vsel %vm162, %v155, 0.0
    %167 = vadd.xlane.f32.xlu0 %v166
    %v168 = vpop.xlane.xlu0 %167
    %v169 = vsel %vm162, %v156, 0.0
    %170 = vadd.xlane.f32.xlu0 %v169
    %v171 = vpop.xlane.xlu0 %170
    %v172 = vsel %vm162, %v157, 0.0
    %173 = vadd.xlane.f32.xlu0 %v172
    %v174 = vpop.xlane.xlu0 %173
    %v175 = vsel %vm162, %v158, 0.0
    %176 = vadd.xlane.f32.xlu0 %v175
    %v177 = vpop.xlane.xlu0 %176
    %v178 = vsel %vm162, %v159, 0.0
    %179 = vadd.xlane.f32.xlu0 %v178
    %v180 = vpop.xlane.xlu0 %179
    %v181 = vsel %vm162, %v160, 0.0
    %182 = vadd.xlane.f32.xlu0 %v181
    %v183 = vpop.xlane.xlu0 %182
    %v184 = vsel %vm162, %v161, 0.0
    %185 = vadd.xlane.f32.xlu0 %v184
    %v186 = vpop.xlane.xlu0 %185
    %v187 = vrcp.pop 32.0
    %v188 = vmul.f32 %v165, %v187
    %v189 = vmul.f32 %v168, %v187
    %v190 = vmul.f32 %v171, %v187
    %v191 = vmul.f32 %v174, %v187
    %v192 = vmul.f32 %v177, %v187
    %v193 = vmul.f32 %v180, %v187
    %v194 = vmul.f32 %v183, %v187
    %v195 = vmul.f32 %v186, %v187
    %v196 = vsub.f32 %v154, %v188
    %v197 = vsub.f32 %v155, %v189
    %v198 = vsub.f32 %v156, %v190
    %v199 = vsub.f32 %v157, %v191
    %v200 = vsub.f32 %v158, %v192
    %v201 = vsub.f32 %v159, %v193
    %v202 = vsub.f32 %v160, %v194
    %v203 = vsub.f32 %v161, %v195
    %v204 = vmul.f32 %v196, %v196
    %v205 = vmul.f32 %v197, %v197
    %v206 = vmul.f32 %v198, %v198
    %v207 = vmul.f32 %v199, %v199
    %v208 = vmul.f32 %v200, %v200
    %v209 = vmul.f32 %v201, %v201
    %v210 = vmul.f32 %v202, %v202
    %v211 = vmul.f32 %v203, %v203
    %v212 = vsel %vm162, %v204, 0.0
    %213 = vadd.xlane.f32.xlu0 %v212
    %v214 = vpop.xlane.xlu0 %213
    %v215 = vsel %vm162, %v205, 0.0
    %216 = vadd.xlane.f32.xlu0 %v215
    %v217 = vpop.xlane.xlu0 %216
    %v218 = vsel %vm162, %v206, 0.0
    %219 = vadd.xlane.f32.xlu0 %v218
    %v220 = vpop.xlane.xlu0 %219
    %v221 = vsel %vm162, %v207, 0.0
    %222 = vadd.xlane.f32.xlu0 %v221
    %v223 = vpop.xlane.xlu0 %222
    %v224 = vsel %vm162, %v208, 0.0
    %225 = vadd.xlane.f32.xlu0 %v224
    %v226 = vpop.xlane.xlu0 %225
    %v227 = vsel %vm162, %v209, 0.0
    %228 = vadd.xlane.f32.xlu0 %v227
    %v229 = vpop.xlane.xlu0 %228
    %v230 = vsel %vm162, %v210, 0.0
    %231 = vadd.xlane.f32.xlu0 %v230
    %v232 = vpop.xlane.xlu0 %231
    %v233 = vsel %vm162, %v211, 0.0
    %234 = vadd.xlane.f32.xlu0 %v233
    %v235 = vpop.xlane.xlu0 %234
    %v236 = vmul.f32 %v214, %v187
    %v237 = vmul.f32 %v217, %v187
    %v238 = vmul.f32 %v220, %v187
    %v239 = vmul.f32 %v223, %v187
    %v240 = vmul.f32 %v226, %v187
    %v241 = vmul.f32 %v229, %v187
    %v242 = vmul.f32 %v232, %v187
    %v243 = vmul.f32 %v235, %v187
    %v244 = vadd.f32 %v236, 1e-05
    %v245 = vadd.f32 %v237, 1e-05
    %v246 = vadd.f32 %v238, 1e-05
    %v247 = vadd.f32 %v239, 1e-05
    %v248 = vadd.f32 %v240, 1e-05
    %v249 = vadd.f32 %v241, 1e-05
    %v250 = vadd.f32 %v242, 1e-05
    %v251 = vadd.f32 %v243, 1e-05
    %v252 = vrsqrt.pop %v244
    %v253 = vrsqrt.pop %v245
    %v254 = vrsqrt.pop %v246
    %v255 = vrsqrt.pop %v247
    %v256 = vrsqrt.pop %v248
    %v257 = vrsqrt.pop %v249
    %v258 = vrsqrt.pop %v250
    %v259 = vrsqrt.pop %v251
    %v260 = vmul.f32 %v196, %v252
    %v261 = vmul.f32 %v197, %v253
    %v262 = vmul.f32 %v198, %v254
    %v263 = vmul.f32 %v199, %v255
    %v264 = vmul.f32 %v200, %v256
    %v265 = vmul.f32 %v201, %v257
    %v266 = vmul.f32 %v202, %v258
    %v267 = vmul.f32 %v203, %v259
    %v268 = vld [vmem:[#allocation8] sm:$0xff]
    %v269 = vld [vmem:[#allocation8 + $0x8] sm:$0xff]
    %v270 = vld [vmem:[#allocation8 + $0x10] sm:$0xff]
    %v271 = vld [vmem:[#allocation8 + $0x18] sm:$0xff]
    %v272 = vld [vmem:[#allocation9] sm:$0x1]
    %v274 = vlaneseq
    %v275 = vshrl.u32 %v274, 7
    %v276 = vsub.s32 0, %v275
    %v277 = vrot.slane %v272, %v276
    %v280 = vsel %vm162, %v260, 0
    %v283 = vsel %vm162, %v261, 0
    %v286 = vsel %vm162, %v262, 0
    %v289 = vsel %vm162, %v263, 0
    %v292 = vsel %vm162, %v264, 0
    %v295 = vsel %vm162, %v265, 0
    %v298 = vsel %vm162, %v266, 0
    %v301 = vsel %vm162, %v267, 0
    %303 = vmatprep.subr.mxu0 0.0
    %304 = vmatpush1.msra.mxu0 %v268
    %305 = vmatprep.subr.mxu0 0.0
    %306 = vmatpush1.msra.mxu0 %v269
    %307 = vmatprep.subr.mxu0 0.0
    %308 = vmatpush1.msra.mxu0 %v270
    %309 = vmatprep.subr.mxu0 0.0
    %310 = vmatpush1.msra.mxu0 %v271
    %311 = vmatprep.subr.mxu0 0.0
    %312 = vmatpush1.msra.mxu0 0.0
    %313 = vmatprep.subr.mxu0 0.0
    %314 = vmatpush1.msra.mxu0 0.0
    %315 = vmatprep.subr.mxu0 0.0
    %316 = vmatpush1.msra.mxu0 0.0
    %317 = vmatprep.subr.mxu0 0.0
    %318 = vmatpush1.msra.mxu0 0.0
    %319 = vmatprep.subr.mxu0 0.0
    %320 = vmatpush1.msra.mxu0 0.0
    %321 = vmatprep.subr.mxu0 0.0
    %322 = vmatpush1.msra.mxu0 0.0
    %323 = vmatprep.subr.mxu0 0.0
    %324 = vmatpush1.msra.mxu0 0.0
    %325 = vmatprep.subr.mxu0 0.0
    %326 = vmatpush1.msra.mxu0 0.0
    %327 = vmatprep.subr.mxu0 0.0
    %328 = vmatpush1.msra.mxu0 0.0
    %329 = vmatprep.subr.mxu0 0.0
    %330 = vmatpush1.msra.mxu0 0.0
    %331 = vmatprep.subr.mxu0 0.0
    %332 = vmatpush1.msra.mxu0 0.0
    %333 = vmatprep.subr.mxu0 0.0
    %334 = vmatpush1.msra.mxu0 0.0
    %335 = vmatprep.subr.mxu0 0.0
    %336 = vmatpush1.msra.mxu0 0.0
    %337 = vmatprep.subr.mxu0 0.0
    %338 = vmatpush1.msra.mxu0 0.0
    %339 = vmatprep.subr.mxu0 0.0
    %340 = vmatpush1.msra.mxu0 0.0
    %341 = vmatprep.subr.mxu0 0.0
    %342 = vmatpush1.msra.mxu0 0.0
    %343 = vmatprep.subr.mxu0 0.0
    %344 = vmatpush1.msra.mxu0 0.0
    %345 = vmatprep.subr.mxu0 0.0
    %346 = vmatpush1.msra.mxu0 0.0
    %347 = vmatprep.subr.mxu0 0.0
    %348 = vmatpush1.msra.mxu0 0.0
    %349 = vmatprep.subr.mxu0 0.0
    %350 = vmatpush1.msra.mxu0 0.0
    %351 = vmatprep.subr.mxu0 0.0
    %352 = vmatpush1.msra.mxu0 0.0
    %353 = vmatprep.subr.mxu0 0.0
    %354 = vmatpush1.msra.mxu0 0.0
    %355 = vmatprep.subr.mxu0 0.0
    %356 = vmatpush1.msra.mxu0 0.0
    %357 = vmatprep.subr.mxu0 0.0
    %358 = vmatpush1.msra.mxu0 0.0
    %359 = vmatprep.subr.mxu0 0.0
    %360 = vmatpush1.msra.mxu0 0.0
    %361 = vmatprep.subr.mxu0 0.0
    %362 = vmatpush1.msra.mxu0 0.0
    %363 = vmatprep.subr.mxu0 0.0
    %364 = vmatpush1.msra.mxu0 0.0
    %365 = vmatprep.subr.mxu0 0.0
    %366 = vmatpush1.msra.mxu0 0.0
    %367 = vmatprep.mubr.f32.mxu0 0.0
    %368 = vmatmul.mubr.f32.gmra.mrb[0].mxu0 %v280
    %v369 = vpop.f32.mrb[0].mxu0
    %v370 = vadd.f32 %v277, %v369
    %v371 = vpop.f32.mrb[0].mxu0
    %372 = vmatprep.mubr.f32.mxu0 0.0
    %373 = vmatmul.mubr.f32.gmra.mrb[0].mxu0 %v283
    %v374 = vpop.f32.mrb[0].mxu0
    %v375 = vadd.f32 %v277, %v374
    %v376 = vpop.f32.mrb[0].mxu0
    %377 = vmatprep.mubr.f32.mxu0 0.0
    %378 = vmatmul.mubr.f32.gmra.mrb[0].mxu0 %v286
    %v379 = vpop.f32.mrb[0].mxu0
    %v380 = vadd.f32 %v277, %v379
    %v381 = vpop.f32.mrb[0].mxu0
    %382 = vmatprep.mubr.f32.mxu0 0.0
    %383 = vmatmul.mubr.f32.gmra.mrb[0].mxu0 %v289
    %v384 = vpop.f32.mrb[0].mxu0
    %v385 = vadd.f32 %v277, %v384
    %v386 = vpop.f32.mrb[0].mxu0
    %387 = vmatprep.mubr.f32.mxu0 0.0
    %388 = vmatmul.mubr.f32.gmra.mrb[0].mxu0 %v292
    %v389 = vpop.f32.mrb[0].mxu0
    %v390 = vadd.f32 %v277, %v389
    %v391 = vpop.f32.mrb[0].mxu0
    %392 = vmatprep.mubr.f32.mxu0 0.0
    %393 = vmatmul.mubr.f32.gmra.mrb[0].mxu0 %v295
    %v394 = vpop.f32.mrb[0].mxu0
    %v395 = vadd.f32 %v277, %v394
    %v396 = vpop.f32.mrb[0].mxu0
    %397 = vmatprep.mubr.f32.mxu0 0.0
    %398 = vmatmul.mubr.f32.gmra.mrb[0].mxu0 %v298
    %v399 = vpop.f32.mrb[0].mxu0
    %v400 = vadd.f32 %v277, %v399
    %v401 = vpop.f32.mrb[0].mxu0
    %402 = vmatprep.mubr.f32.mxu0 0.0
    %403 = vmatmul.mubr.f32.gmra.mrb[0].mxu0 %v301
    %v404 = vpop.f32.mrb[0].mxu0
    %v405 = vadd.f32 %v277, %v404
    %v406 = vpop.f32.mrb[0].mxu0
    %407 = vdwg.mxu0
    %408 = vst [vmem:[#allocation2] sm:$0xff] %v370
    %409 = vst [vmem:[#allocation2 + $0x8] sm:$0xff] %v375
    %410 = vst [vmem:[#allocation2 + $0x10] sm:$0xff] %v380
    %411 = vst [vmem:[#allocation2 + $0x18] sm:$0xff] %v385
    %412 = vst [vmem:[#allocation2 + $0x20] sm:$0xff] %v390
    %413 = vst [vmem:[#allocation2 + $0x28] sm:$0xff] %v395
    %414 = vst [vmem:[#allocation2 + $0x30] sm:$0xff] %v400
    %415 = vst [vmem:[#allocation2 + $0x38] sm:$0xff] %v405
    %v416 = vld [vmem:[#allocation11] sm:$0xff]
    %v417 = vld [vmem:[#allocation11 + $0x8] sm:$0xff]
    %v418 = vld [vmem:[#allocation12] sm:$0xff]
    %v419 = vld [vmem:[#allocation12 + $0x8] sm:$0xff]
    %v420 = vld [vmem:[#allocation2] sm:$0xff]
    %vm421 = vcmask 130048
    %v423 = vsel %vm421, 0.0, 0
    %425 = vmatprep.subr.mxu0 0.0
    %426 = vmatpush1.msra.mxu0 %v416
    %427 = vmatprep.subr.mxu0 0.0
    %428 = vmatpush1.msra.mxu0 %v417
    %429 = vmatprep.subr.mxu0 0.0
    %430 = vmatpush1.msra.mxu0 0.0
    %431 = vmatprep.subr.mxu0 0.0
    %432 = vmatpush1.msra.mxu0 0.0
    %433 = vmatprep.subr.mxu0 0.0
    %434 = vmatpush1.msra.mxu0 0.0
    %435 = vmatprep.subr.mxu0 0.0
    %436 = vmatpush1.msra.mxu0 0.0
    %437 = vmatprep.subr.mxu0 0.0
    %438 = vmatpush1.msra.mxu0 0.0
    %439 = vmatprep.subr.mxu0 0.0
    %440 = vmatpush1.msra.mxu0 0.0
    %441 = vmatprep.subr.mxu0 0.0
    %442 = vmatpush1.msra.mxu0 0.0
    %443 = vmatprep.subr.mxu0 0.0
    %444 = vmatpush1.msra.mxu0 0.0
    %445 = vmatprep.subr.mxu0 0.0
    %446 = vmatpush1.msra.mxu0 0.0
    %447 = vmatprep.subr.mxu0 0.0
    %448 = vmatpush1.msra.mxu0 0.0
    %449 = vmatprep.subr.mxu0 0.0
    %450 = vmatpush1.msra.mxu0 0.0
    %451 = vmatprep.subr.mxu0 0.0
    %452 = vmatpush1.msra.mxu0 0.0
    %453 = vmatprep.subr.mxu0 0.0
    %454 = vmatpush1.msra.mxu0 0.0
    %455 = vmatprep.subr.mxu0 0.0
    %456 = vmatpush1.msra.mxu0 0.0
    %457 = vmatprep.subr.mxu0 0.0
    %458 = vmatpush1.msra.mxu0 0.0
    %459 = vmatprep.subr.mxu0 0.0
    %460 = vmatpush1.msra.mxu0 0.0
    %461 = vmatprep.subr.mxu0 0.0
    %462 = vmatpush1.msra.mxu0 0.0
    %463 = vmatprep.subr.mxu0 0.0
    %464 = vmatpush1.msra.mxu0 0.0
    %465 = vmatprep.subr.mxu0 0.0
    %466 = vmatpush1.msra.mxu0 0.0
    %467 = vmatprep.subr.mxu0 0.0
    %468 = vmatpush1.msra.mxu0 0.0
    %469 = vmatprep.subr.mxu0 0.0
    %470 = vmatpush1.msra.mxu0 0.0
    %471 = vmatprep.subr.mxu0 0.0
    %472 = vmatpush1.msra.mxu0 0.0
    %473 = vmatprep.subr.mxu0 0.0
    %474 = vmatpush1.msra.mxu0 0.0
    %475 = vmatprep.subr.mxu0 0.0
    %476 = vmatpush1.msra.mxu0 0.0
    %477 = vmatprep.subr.mxu0 0.0
    %478 = vmatpush1.msra.mxu0 0.0
    %479 = vmatprep.subr.mxu0 0.0
    %480 = vmatpush1.msra.mxu0 0.0
    %481 = vmatprep.subr.mxu0 0.0
    %482 = vmatpush1.msra.mxu0 0.0
    %483 = vmatprep.subr.mxu0 0.0
    %484 = vmatpush1.msra.mxu0 0.0
    %485 = vmatprep.subr.mxu0 0.0
    %486 = vmatpush1.msra.mxu0 0.0
    %487 = vmatprep.subr.mxu0 0.0
    %488 = vmatpush1.msra.mxu0 0.0
    %489 = vmatprep.mubr.f32.mxu0 0.0
    %490 = vmatmul.mubr.f32.gmra.mrb[0].mxu0 %v423
    %v491 = vpop.f32.mrb[0].mxu0
    %v492 = vadd.f32 0.0, %v491
    %v493 = vpop.f32.mrb[0].mxu0
    %494 = vdwg.mxu0
    %v495 = vadd.f32 %v420, %v492
    %s496 = scalar_lea.vmem [#allocation2], 56
    %v497 = vld [vmem:[%s496] sm:$0xff]
    %498 = vmatprep.subr.mxu0 0.0
    %499 = vmatpush1.msra.mxu0 %v418
    %500 = vmatprep.subr.mxu0 0.0
    %501 = vmatpush1.msra.mxu0 %v419
    %502 = vmatprep.subr.mxu0 0.0
    %503 = vmatpush1.msra.mxu0 0.0
    %504 = vmatprep.subr.mxu0 0.0
    %505 = vmatpush1.msra.mxu0 0.0
    %506 = vmatprep.subr.mxu0 0.0
    %507 = vmatpush1.msra.mxu0 0.0
    %508 = vmatprep.subr.mxu0 0.0
    %509 = vmatpush1.msra.mxu0 0.0
    %510 = vmatprep.subr.mxu0 0.0
    %511 = vmatpush1.msra.mxu0 0.0
    %512 = vmatprep.subr.mxu0 0.0
    %513 = vmatpush1.msra.mxu0 0.0
    %514 = vmatprep.subr.mxu0 0.0
    %515 = vmatpush1.msra.mxu0 0.0
    %516 = vmatprep.subr.mxu0 0.0
    %517 = vmatpush1.msra.mxu0 0.0
    %518 = vmatprep.subr.mxu0 0.0
    %519 = vmatpush1.msra.mxu0 0.0
    %520 = vmatprep.subr.mxu0 0.0
    %521 = vmatpush1.msra.mxu0 0.0
    %522 = vmatprep.subr.mxu0 0.0
    %523 = vmatpush1.msra.mxu0 0.0
    %524 = vmatprep.subr.mxu0 0.0
    %525 = vmatpush1.msra.mxu0 0.0
    %526 = vmatprep.subr.mxu0 0.0
    %527 = vmatpush1.msra.mxu0 0.0
    %528 = vmatprep.subr.mxu0 0.0
    %529 = vmatpush1.msra.mxu0 0.0
    %530 = vmatprep.subr.mxu0 0.0
    %531 = vmatpush1.msra.mxu0 0.0
    %532 = vmatprep.subr.mxu0 0.0
    %533 = vmatpush1.msra.mxu0 0.0
    %534 = vmatprep.subr.mxu0 0.0
    %535 = vmatpush1.msra.mxu0 0.0
    %536 = vmatprep.subr.mxu0 0.0
    %537 = vmatpush1.msra.mxu0 0.0
    %538 = vmatprep.subr.mxu0 0.0
    %539 = vmatpush1.msra.mxu0 0.0
    %540 = vmatprep.subr.mxu0 0.0
    %541 = vmatpush1.msra.mxu0 0.0
    %542 = vmatprep.subr.mxu0 0.0
    %543 = vmatpush1.msra.mxu0 0.0
    %544 = vmatprep.subr.mxu0 0.0
    %545 = vmatpush1.msra.mxu0 0.0
    %546 = vmatprep.subr.mxu0 0.0
    %547 = vmatpush1.msra.mxu0 0.0
    %548 = vmatprep.subr.mxu0 0.0
    %549 = vmatpush1.msra.mxu0 0.0
    %550 = vmatprep.subr.mxu0 0.0
    %551 = vmatpush1.msra.mxu0 0.0
    %552 = vmatprep.subr.mxu0 0.0
    %553 = vmatpush1.msra.mxu0 0.0
    %554 = vmatprep.subr.mxu0 0.0
    %555 = vmatpush1.msra.mxu0 0.0
    %556 = vmatprep.subr.mxu0 0.0
    %557 = vmatpush1.msra.mxu0 0.0
    %558 = vmatprep.subr.mxu0 0.0
    %559 = vmatpush1.msra.mxu0 0.0
    %560 = vmatprep.subr.mxu0 0.0
    %561 = vmatpush1.msra.mxu0 0.0
    %562 = vmatprep.mubr.f32.mxu0 0.0
    %563 = vmatmul.mubr.f32.gmra.mrb[0].mxu0 %v423
    %v564 = vpop.f32.mrb[0].mxu0
    %v565 = vadd.f32 0.0, %v564
    %v566 = vpop.f32.mrb[0].mxu0
    %567 = vdwg.mxu0
    %569 = vrot.lane.b32.xlu0 %v565, 64
    %v570 = vpop.permute.xlu0 %569
    %v572 = vadd.f32 %v497, %v570
    %v573 = vld [vmem:[#allocation6] sm:$0xff]
    %v574 = vxor.u32 %v495, 2147483648
    %v575 = vmul.f32 %v574, 1.442695
    %v576 = vpow.pop %v575
    %v577 = vadd.f32 %v576, 1.0
    %v578 = vrcp.pop %v577
    %v579 = vmul.f32 1.0, %v578
    %v580 = vtanh.pop %v495
    %v581 = vmul.f32 %v579, 0.0
    %583 = vrot.lane.b32.xlu0 %v580, 96
    %v584 = vpop.permute.xlu0 %583
    %v586 = vmul.f32 %v579, %v584
    %588 = vrot.lane.b32.xlu0 %v586, 16
    %v589 = vpop.permute.xlu0 %588
    %v591 = vadd.f32 %v581, %v589
    %593 = vset.pattern.permute.xlu0 0
    %594 = vperm.xlu0 %593, %v573
    %v595 = vpop.permute.xlu0 %594
    %v597 = vmul.f32 %v591, %v595
    %v598 = vtanh.pop %v597
    %600 = vrot.lane.b32.xlu0 %v598, 32
    %v601 = vpop.permute.xlu0 %600
    %v603 = vmul.f32 %v579, %v601
    %v604 = vmul.f32 %v603, %v595
    %s605 = scalar_lea.vmem [#allocation6], 56
    %v606 = vld [vmem:[%s605] sm:$0xff]
    %v607 = vxor.u32 %v572, 2147483648
    %v608 = vmul.f32 %v607, 1.442695
    %v609 = vpow.pop %v608
    %v610 = vadd.f32 %v609, 1.0
    %v611 = vrcp.pop %v610
    %v612 = vmul.f32 1.0, %v611
    %v613 = vtanh.pop %v572
    %v614 = vmul.f32 %v612, 0.0
    %616 = vrot.lane.b32.xlu0 %v613, 96
    %v617 = vpop.permute.xlu0 %616
    %v619 = vmul.f32 %v612, %v617
    %621 = vrot.lane.b32.xlu0 %v619, 16
    %v622 = vpop.permute.xlu0 %621
    %v624 = vadd.f32 %v614, %v622
    %626 = vset.pattern.permute.xlu0 0
    %627 = vperm.xlu0 %626, %v606
    %v628 = vpop.permute.xlu0 %627
    %v630 = vmul.f32 %v624, %v628
    %v631 = vtanh.pop %v630
    %633 = vrot.lane.b32.xlu0 %v631, 32
    %v634 = vpop.permute.xlu0 %633
    %v636 = vmul.f32 %v612, %v634
    %v637 = vmul.f32 %v636, %v628
    %639 = vrot.lane.b32.xlu0 %v604, 80
    %v640 = vpop.permute.xlu0 %639
    %642 = vst.msk [vmem:[#allocation18] sm:$0xff] %vm421, %v640
    %644 = vrot.lane.b32.xlu0 %v637, 32
    %v645 = vpop.permute.xlu0 %644
    %s647 = scalar_lea.vmem [#allocation18], 56
    %vm648 = vcmask 261248
    %649 = vst.msk [vmem:[%s647] sm:$0xff] %vm648, %v645
    %s650 = scalar_lea.vmem [#allocation2], 8
    %v651 = vld [vmem:[%s650] sm:$0xff]
    %v652 = vsel %vm421, %v640, 0
    %654 = vmatprep.subr.mxu0 0.0
    %655 = vmatpush1.msra.mxu0 %v416
    %656 = vmatprep.subr.mxu0 0.0
    %657 = vmatpush1.msra.mxu0 %v417
    %658 = vmatprep.subr.mxu0 0.0
    %659 = vmatpush1.msra.mxu0 0.0
    %660 = vmatprep.subr.mxu0 0.0
    %661 = vmatpush1.msra.mxu0 0.0
    %662 = vmatprep.subr.mxu0 0.0
    %663 = vmatpush1.msra.mxu0 0.0
    %664 = vmatprep.subr.mxu0 0.0
    %665 = vmatpush1.msra.mxu0 0.0
    %666 = vmatprep.subr.mxu0 0.0
    %667 = vmatpush1.msra.mxu0 0.0
    %668 = vmatprep.subr.mxu0 0.0
    %669 = vmatpush1.msra.mxu0 0.0
    %670 = vmatprep.subr.mxu0 0.0
    %671 = vmatpush1.msra.mxu0 0.0
    %672 = vmatprep.subr.mxu0 0.0
    %673 = vmatpush1.msra.mxu0 0.0
    %674 = vmatprep.subr.mxu0 0.0
    %675 = vmatpush1.msra.mxu0 0.0
    %676 = vmatprep.subr.mxu0 0.0
    %677 = vmatpush1.msra.mxu0 0.0
    %678 = vmatprep.subr.mxu0 0.0
    %679 = vmatpush1.msra.mxu0 0.0
    %680 = vmatprep.subr.mxu0 0.0
    %681 = vmatpush1.msra.mxu0 0.0
    %682 = vmatprep.subr.mxu0 0.0
    %683 = vmatpush1.msra.mxu0 0.0
    %684 = vmatprep.subr.mxu0 0.0
    %685 = vmatpush1.msra.mxu0 0.0
    %686 = vmatprep.subr.mxu0 0.0
    %687 = vmatpush1.msra.mxu0 0.0
    %688 = vmatprep.subr.mxu0 0.0
    %689 = vmatpush1.msra.mxu0 0.0
    %690 = vmatprep.subr.mxu0 0.0
    %691 = vmatpush1.msra.mxu0 0.0
    %692 = vmatprep.subr.mxu0 0.0
    %693 = vmatpush1.msra.mxu0 0.0
    %694 = vmatprep.subr.mxu0 0.0
    %695 = vmatpush1.msra.mxu0 0.0
    %696 = vmatprep.subr.mxu0 0.0
    %697 = vmatpush1.msra.mxu0 0.0
    %698 = vmatprep.subr.mxu0 0.0
    %699 = vmatpush1.msra.mxu0 0.0
    %700 = vmatprep.subr.mxu0 0.0
    %701 = vmatpush1.msra.mxu0 0.0
    %702 = vmatprep.subr.mxu0 0.0
    %703 = vmatpush1.msra.mxu0 0.0
    %704 = vmatprep.subr.mxu0 0.0
    %705 = vmatpush1.msra.mxu0 0.0
    %706 = vmatprep.subr.mxu0 0.0
    %707 = vmatpush1.msra.mxu0 0.0
    %708 = vmatprep.subr.mxu0 0.0
    %709 = vmatpush1.msra.mxu0 0.0
    %710 = vmatprep.subr.mxu0 0.0
    %711 = vmatpush1.msra.mxu0 0.0
    %712 = vmatprep.subr.mxu0 0.0
    %713 = vmatpush1.msra.mxu0 0.0
    %714 = vmatprep.subr.mxu0 0.0
    %715 = vmatpush1.msra.mxu0 0.0
    %716 = vmatprep.subr.mxu0 0.0
    %717 = vmatpush1.msra.mxu0 0.0
    %718 = vmatprep.mubr.f32.mxu0 0.0
    %719 = vmatmul.mubr.f32.gmra.mrb[0].mxu0 %v652
    %v720 = vpop.f32.mrb[0].mxu0
    %v721 = vadd.f32 0.0, %v720
    %v722 = vpop.f32.mrb[0].mxu0
    %723 = vdwg.mxu0
    %v724 = vadd.f32 %v651, %v721
    %s725 = scalar_lea.vmem [#allocation2], 48
    %v726 = vld [vmem:[%s725] sm:$0xff]
    %727 = vrot.lane.b32.xlu0 %v637, 16
    %v728 = vpop.permute.xlu0 %727
    %v729 = vsel %vm421, %v728, 0
    %731 = vmatprep.subr.mxu0 0.0
    %732 = vmatpush1.msra.mxu0 %v418
    %733 = vmatprep.subr.mxu0 0.0
    %734 = vmatpush1.msra.mxu0 %v419
    %735 = vmatprep.subr.mxu0 0.0
    %736 = vmatpush1.msra.mxu0 0.0
    %737 = vmatprep.subr.mxu0 0.0
    %738 = vmatpush1.msra.mxu0 0.0
    %739 = vmatprep.subr.mxu0 0.0
    %740 = vmatpush1.msra.mxu0 0.0
    %741 = vmatprep.subr.mxu0 0.0
    %742 = vmatpush1.msra.mxu0 0.0
    %743 = vmatprep.subr.mxu0 0.0
    %744 = vmatpush1.msra.mxu0 0.0
    %745 = vmatprep.subr.mxu0 0.0
    %746 = vmatpush1.msra.mxu0 0.0
    %747 = vmatprep.subr.mxu0 0.0
    %748 = vmatpush1.msra.mxu0 0.0
    %749 = vmatprep.subr.mxu0 0.0
    %750 = vmatpush1.msra.mxu0 0.0
    %751 = vmatprep.subr.mxu0 0.0
    %752 = vmatpush1.msra.mxu0 0.0
    %753 = vmatprep.subr.mxu0 0.0
    %754 = vmatpush1.msra.mxu0 0.0
    %755 = vmatprep.subr.mxu0 0.0
    %756 = vmatpush1.msra.mxu0 0.0
    %757 = vmatprep.subr.mxu0 0.0
    %758 = vmatpush1.msra.mxu0 0.0
    %759 = vmatprep.subr.mxu0 0.0
    %760 = vmatpush1.msra.mxu0 0.0
    %761 = vmatprep.subr.mxu0 0.0
    %762 = vmatpush1.msra.mxu0 0.0
    %763 = vmatprep.subr.mxu0 0.0
    %764 = vmatpush1.msra.mxu0 0.0
    %765 = vmatprep.subr.mxu0 0.0
    %766 = vmatpush1.msra.mxu0 0.0
    %767 = vmatprep.subr.mxu0 0.0
    %768 = vmatpush1.msra.mxu0 0.0
    %769 = vmatprep.subr.mxu0 0.0
    %770 = vmatpush1.msra.mxu0 0.0
    %771 = vmatprep.subr.mxu0 0.0
    %772 = vmatpush1.msra.mxu0 0.0
    %773 = vmatprep.subr.mxu0 0.0
    %774 = vmatpush1.msra.mxu0 0.0
    %775 = vmatprep.subr.mxu0 0.0
    %776 = vmatpush1.msra.mxu0 0.0
    %777 = vmatprep.subr.mxu0 0.0
    %778 = vmatpush1.msra.mxu0 0.0
    %779 = vmatprep.subr.mxu0 0.0
    %780 = vmatpush1.msra.mxu0 0.0
    %781 = vmatprep.subr.mxu0 0.0
    %782 = vmatpush1.msra.mxu0 0.0
    %783 = vmatprep.subr.mxu0 0.0
    %784 = vmatpush1.msra.mxu0 0.0
    %785 = vmatprep.subr.mxu0 0.0
    %786 = vmatpush1.msra.mxu0 0.0
    %787 = vmatprep.subr.mxu0 0.0
    %788 = vmatpush1.msra.mxu0 0.0
    %789 = vmatprep.subr.mxu0 0.0
    %790 = vmatpush1.msra.mxu0 0.0
    %791 = vmatprep.subr.mxu0 0.0
    %792 = vmatpush1.msra.mxu0 0.0
    %793 = vmatprep.subr.mxu0 0.0
    %794 = vmatpush1.msra.mxu0 0.0
    %795 = vmatprep.mubr.f32.mxu0 0.0
    %796 = vmatmul.mubr.f32.gmra.mrb[0].mxu0 %v729
    %v797 = vpop.f32.mrb[0].mxu0
    %v798 = vadd.f32 0.0, %v797
    %v799 = vpop.f32.mrb[0].mxu0
    %800 = vdwg.mxu0
    %802 = vrot.lane.b32.xlu0 %v798, 64
    %v803 = vpop.permute.xlu0 %802
    %v805 = vadd.f32 %v726, %v803
    %s806 = scalar_lea.vmem [#allocation6], 8
    %v807 = vld [vmem:[%s806] sm:$0xff]
    %v808 = vxor.u32 %v724, 2147483648
    %v809 = vmul.f32 %v808, 1.442695
    %v810 = vpow.pop %v809
    %v811 = vadd.f32 %v810, 1.0
    %v812 = vrcp.pop %v811
    %v813 = vmul.f32 1.0, %v812
    %v814 = vtanh.pop %v724
    %v815 = vmul.f32 %v813, %v597
    %817 = vrot.lane.b32.xlu0 %v814, 96
    %v818 = vpop.permute.xlu0 %817
    %v820 = vmul.f32 %v813, %v818
    %822 = vrot.lane.b32.xlu0 %v820, 16
    %v823 = vpop.permute.xlu0 %822
    %v825 = vadd.f32 %v815, %v823
    %827 = vset.pattern.permute.xlu0 0
    %828 = vperm.xlu0 %827, %v807
    %v829 = vpop.permute.xlu0 %828
    %v831 = vmul.f32 %v825, %v829
    %v832 = vtanh.pop %v831
    %834 = vrot.lane.b32.xlu0 %v832, 32
    %v835 = vpop.permute.xlu0 %834
    %v837 = vmul.f32 %v813, %v835
    %v838 = vmul.f32 %v837, %v829
    %s839 = scalar_lea.vmem [#allocation6], 48
    %v840 = vld [vmem:[%s839] sm:$0xff]
    %v841 = vxor.u32 %v805, 2147483648
    %v842 = vmul.f32 %v841, 1.442695
    %v843 = vpow.pop %v842
    %v844 = vadd.f32 %v843, 1.0
    %v845 = vrcp.pop %v844
    %v846 = vmul.f32 1.0, %v845
    %v847 = vtanh.pop %v805
    %v848 = vmul.f32 %v846, %v630
    %850 = vrot.lane.b32.xlu0 %v847, 96
    %v851 = vpop.permute.xlu0 %850
    %v853 = vmul.f32 %v846, %v851
    %855 = vrot.lane.b32.xlu0 %v853, 16
    %v856 = vpop.permute.xlu0 %855
    %v858 = vadd.f32 %v848, %v856
    %860 = vset.pattern.permute.xlu0 0
    %861 = vperm.xlu0 %860, %v840
    %v862 = vpop.permute.xlu0 %861
    %v864 = vmul.f32 %v858, %v862
    %v865 = vtanh.pop %v864
    %867 = vrot.lane.b32.xlu0 %v865, 32
    %v868 = vpop.permute.xlu0 %867
    %v870 = vmul.f32 %v846, %v868
    %v871 = vmul.f32 %v870, %v862
    %873 = vrot.lane.b32.xlu0 %v838, 80
    %v874 = vpop.permute.xlu0 %873
    %s876 = scalar_lea.vmem [#allocation18], 8
    %877 = vst.msk [vmem:[%s876] sm:$0xff] %vm421, %v874
    %879 = vrot.lane.b32.xlu0 %v871, 32
    %v880 = vpop.permute.xlu0 %879
    %s882 = scalar_lea.vmem [#allocation18], 48
    %883 = vst.msk [vmem:[%s882] sm:$0xff] %vm648, %v880
    %s884 = scalar_lea.vmem [#allocation2], 16
    %v885 = vld [vmem:[%s884] sm:$0xff]
    %v886 = vsel %vm421, %v874, 0
    %888 = vmatprep.subr.mxu0 0.0
    %889 = vmatpush1.msra.mxu0 %v416
    %890 = vmatprep.subr.mxu0 0.0
    %891 = vmatpush1.msra.mxu0 %v417
    %892 = vmatprep.subr.mxu0 0.0
    %893 = vmatpush1.msra.mxu0 0.0
    %894 = vmatprep.subr.mxu0 0.0
    %895 = vmatpush1.msra.mxu0 0.0
    %896 = vmatprep.subr.mxu0 0.0
    %897 = vmatpush1.msra.mxu0 0.0
    %898 = vmatprep.subr.mxu0 0.0
    %899 = vmatpush1.msra.mxu0 0.0
    %900 = vmatprep.subr.mxu0 0.0
    %901 = vmatpush1.msra.mxu0 0.0
    %902 = vmatprep.subr.mxu0 0.0
    %903 = vmatpush1.msra.mxu0 0.0
    %904 = vmatprep.subr.mxu0 0.0
    %905 = vmatpush1.msra.mxu0 0.0
    %906 = vmatprep.subr.mxu0 0.0
    %907 = vmatpush1.msra.mxu0 0.0
    %908 = vmatprep.subr.mxu0 0.0
    %909 = vmatpush1.msra.mxu0 0.0
    %910 = vmatprep.subr.mxu0 0.0
    %911 = vmatpush1.msra.mxu0 0.0
    %912 = vmatprep.subr.mxu0 0.0
    %913 = vmatpush1.msra.mxu0 0.0
    %914 = vmatprep.subr.mxu0 0.0
    %915 = vmatpush1.msra.mxu0 0.0
    %916 = vmatprep.subr.mxu0 0.0
    %917 = vmatpush1.msra.mxu0 0.0
    %918 = vmatprep.subr.mxu0 0.0
    %919 = vmatpush1.msra.mxu0 0.0
    %920 = vmatprep.subr.mxu0 0.0
    %921 = vmatpush1.msra.mxu0 0.0
    %922 = vmatprep.subr.mxu0 0.0
    %923 = vmatpush1.msra.mxu0 0.0
    %924 = vmatprep.subr.mxu0 0.0
    %925 = vmatpush1.msra.mxu0 0.0
    %926 = vmatprep.subr.mxu0 0.0
    %927 = vmatpush1.msra.mxu0 0.0
    %928 = vmatprep.subr.mxu0 0.0
    %929 = vmatpush1.msra.mxu0 0.0
    %930 = vmatprep.subr.mxu0 0.0
    %931 = vmatpush1.msra.mxu0 0.0
    %932 = vmatprep.subr.mxu0 0.0
    %933 = vmatpush1.msra.mxu0 0.0
    %934 = vmatprep.subr.mxu0 0.0
    %935 = vmatpush1.msra.mxu0 0.0
    %936 = vmatprep.subr.mxu0 0.0
    %937 = vmatpush1.msra.mxu0 0.0
    %938 = vmatprep.subr.mxu0 0.0
    %939 = vmatpush1.msra.mxu0 0.0
    %940 = vmatprep.subr.mxu0 0.0
    %941 = vmatpush1.msra.mxu0 0.0
    %942 = vmatprep.subr.mxu0 0.0
    %943 = vmatpush1.msra.mxu0 0.0
    %944 = vmatprep.subr.mxu0 0.0
    %945 = vmatpush1.msra.mxu0 0.0
    %946 = vmatprep.subr.mxu0 0.0
    %947 = vmatpush1.msra.mxu0 0.0
    %948 = vmatprep.subr.mxu0 0.0
    %949 = vmatpush1.msra.mxu0 0.0
    %950 = vmatprep.subr.mxu0 0.0
    %951 = vmatpush1.msra.mxu0 0.0
    %952 = vmatprep.mubr.f32.mxu0 0.0
    %953 = vmatmul.mubr.f32.gmra.mrb[0].mxu0 %v886
    %v954 = vpop.f32.mrb[0].mxu0
    %v955 = vadd.f32 0.0, %v954
    %v956 = vpop.f32.mrb[0].mxu0
    %957 = vdwg.mxu0
    %v958 = vadd.f32 %v885, %v955
    %s959 = scalar_lea.vmem [#allocation2], 40
    %v960 = vld [vmem:[%s959] sm:$0xff]
    %961 = vrot.lane.b32.xlu0 %v871, 16
    %v962 = vpop.permute.xlu0 %961
    %v963 = vsel %vm421, %v962, 0
    %965 = vmatprep.subr.mxu0 0.0
    %966 = vmatpush1.msra.mxu0 %v418
    %967 = vmatprep.subr.mxu0 0.0
    %968 = vmatpush1.msra.mxu0 %v419
    %969 = vmatprep.subr.mxu0 0.0
    %970 = vmatpush1.msra.mxu0 0.0
    %971 = vmatprep.subr.mxu0 0.0
    %972 = vmatpush1.msra.mxu0 0.0
    %973 = vmatprep.subr.mxu0 0.0
    %974 = vmatpush1.msra.mxu0 0.0
    %975 = vmatprep.subr.mxu0 0.0
    %976 = vmatpush1.msra.mxu0 0.0
    %977 = vmatprep.subr.mxu0 0.0
    %978 = vmatpush1.msra.mxu0 0.0
    %979 = vmatprep.subr.mxu0 0.0
    %980 = vmatpush1.msra.mxu0 0.0
    %981 = vmatprep.subr.mxu0 0.0
    %982 = vmatpush1.msra.mxu0 0.0
    %983 = vmatprep.subr.mxu0 0.0
    %984 = vmatpush1.msra.mxu0 0.0
    %985 = vmatprep.subr.mxu0 0.0
    %986 = vmatpush1.msra.mxu0 0.0
    %987 = vmatprep.subr.mxu0 0.0
    %988 = vmatpush1.msra.mxu0 0.0
    %989 = vmatprep.subr.mxu0 0.0
    %990 = vmatpush1.msra.mxu0 0.0
    %991 = vmatprep.subr.mxu0 0.0
    %992 = vmatpush1.msra.mxu0 0.0
    %993 = vmatprep.subr.mxu0 0.0
    %994 = vmatpush1.msra.mxu0 0.0
    %995 = vmatprep.subr.mxu0 0.0
    %996 = vmatpush1.msra.mxu0 0.0
    %997 = vmatprep.subr.mxu0 0.0
    %998 = vmatpush1.msra.mxu0 0.0
    %999 = vmatprep.subr.mxu0 0.0
    %1000 = vmatpush1.msra.mxu0 0.0
    %1001 = vmatprep.subr.mxu0 0.0
    %1002 = vmatpush1.msra.mxu0 0.0
    %1003 = vmatprep.subr.mxu0 0.0
    %1004 = vmatpush1.msra.mxu0 0.0
    %1005 = vmatprep.subr.mxu0 0.0
    %1006 = vmatpush1.msra.mxu0 0.0
    %1007 = vmatprep.subr.mxu0 0.0
    %1008 = vmatpush1.msra.mxu0 0.0
    %1009 = vmatprep.subr.mxu0 0.0
    %1010 = vmatpush1.msra.mxu0 0.0
    %1011 = vmatprep.subr.mxu0 0.0
    %1012 = vmatpush1.msra.mxu0 0.0
    %1013 = vmatprep.subr.mxu0 0.0
    %1014 = vmatpush1.msra.mxu0 0.0
    %1015 = vmatprep.subr.mxu0 0.0
    %1016 = vmatpush1.msra.mxu0 0.0
    %1017 = vmatprep.subr.mxu0 0.0
    %1018 = vmatpush1.msra.mxu0 0.0
    %1019 = vmatprep.subr.mxu0 0.0
    %1020 = vmatpush1.msra.mxu0 0.0
    %1021 = vmatprep.subr.mxu0 0.0
    %1022 = vmatpush1.msra.mxu0 0.0
    %1023 = vmatprep.subr.mxu0 0.0
    %1024 = vmatpush1.msra.mxu0 0.0
    %1025 = vmatprep.subr.mxu0 0.0
    %1026 = vmatpush1.msra.mxu0 0.0
    %1027 = vmatprep.subr.mxu0 0.0
    %1028 = vmatpush1.msra.mxu0 0.0
    %1029 = vmatprep.mubr.f32.mxu0 0.0
    %1030 = vmatmul.mubr.f32.gmra.mrb[0].mxu0 %v963
    %v1031 = vpop.f32.mrb[0].mxu0
    %v1032 = vadd.f32 0.0, %v1031
    %v1033 = vpop.f32.mrb[0].mxu0
    %1034 = vdwg.mxu0
    %1036 = vrot.lane.b32.xlu0 %v1032, 64
    %v1037 = vpop.permute.xlu0 %1036
    %v1039 = vadd.f32 %v960, %v1037
    %s1040 = scalar_lea.vmem [#allocation6], 16
    %v1041 = vld [vmem:[%s1040] sm:$0xff]
    %v1042 = vxor.u32 %v958, 2147483648
    %v1043 = vmul.f32 %v1042, 1.442695
    %v1044 = vpow.pop %v1043
    %v1045 = vadd.f32 %v1044, 1.0
    %v1046 = vrcp.pop %v1045
    %v1047 = vmul.f32 1.0, %v1046
    %v1048 = vtanh.pop %v958
    %v1049 = vmul.f32 %v1047, %v831
    %1051 = vrot.lane.b32.xlu0 %v1048, 96
    %v1052 = vpop.permute.xlu0 %1051
    %v1054 = vmul.f32 %v1047, %v1052
    %1056 = vrot.lane.b32.xlu0 %v1054, 16
    %v1057 = vpop.permute.xlu0 %1056
    %v1059 = vadd.f32 %v1049, %v1057
    %1061 = vset.pattern.permute.xlu0 0
    %1062 = vperm.xlu0 %1061, %v1041
    %v1063 = vpop.permute.xlu0 %1062
    %v1065 = vmul.f32 %v1059, %v1063
    %v1066 = vtanh.pop %v1065
    %1068 = vrot.lane.b32.xlu0 %v1066, 32
    %v1069 = vpop.permute.xlu0 %1068
    %v1071 = vmul.f32 %v1047, %v1069
    %v1072 = vmul.f32 %v1071, %v1063
    %s1073 = scalar_lea.vmem [#allocation6], 40
    %v1074 = vld [vmem:[%s1073] sm:$0xff]
    %v1075 = vxor.u32 %v1039, 2147483648
    %v1076 = vmul.f32 %v1075, 1.442695
    %v1077 = vpow.pop %v1076
    %v1078 = vadd.f32 %v1077, 1.0
    %v1079 = vrcp.pop %v1078
    %v1080 = vmul.f32 1.0, %v1079
    %v1081 = vtanh.pop %v1039
    %v1082 = vmul.f32 %v1080, %v864
    %1084 = vrot.lane.b32.xlu0 %v1081, 96
    %v1085 = vpop.permute.xlu0 %1084
    %v1087 = vmul.f32 %v1080, %v1085
    %1089 = vrot.lane.b32.xlu0 %v1087, 16
    %v1090 = vpop.permute.xlu0 %1089
    %v1092 = vadd.f32 %v1082, %v1090
    %1094 = vset.pattern.permute.xlu0 0
    %1095 = vperm.xlu0 %1094, %v1074
    %v1096 = vpop.permute.xlu0 %1095
    %v1098 = vmul.f32 %v1092, %v1096
    %v1099 = vtanh.pop %v1098
    %1101 = vrot.lane.b32.xlu0 %v1099, 32
    %v1102 = vpop.permute.xlu0 %1101
    %v1104 = vmul.f32 %v1080, %v1102
    %v1105 = vmul.f32 %v1104, %v1096
    %1107 = vrot.lane.b32.xlu0 %v1072, 80
    %v1108 = vpop.permute.xlu0 %1107
    %s1110 = scalar_lea.vmem [#allocation18], 16
    %1111 = vst.msk [vmem:[%s1110] sm:$0xff] %vm421, %v1108
    %1113 = vrot.lane.b32.xlu0 %v1105, 32
    %v1114 = vpop.permute.xlu0 %1113
    %s1116 = scalar_lea.vmem [#allocation18], 40
    %1117 = vst.msk [vmem:[%s1116] sm:$0xff] %vm648, %v1114
    %s1118 = scalar_lea.vmem [#allocation2], 24
    %v1119 = vld [vmem:[%s1118] sm:$0xff]
    %v1120 = vsel %vm421, %v1108, 0
    %1122 = vmatprep.subr.mxu0 0.0
    %1123 = vmatpush1.msra.mxu0 %v416
    %1124 = vmatprep.subr.mxu0 0.0
    %1125 = vmatpush1.msra.mxu0 %v417
    %1126 = vmatprep.subr.mxu0 0.0
    %1127 = vmatpush1.msra.mxu0 0.0
    %1128 = vmatprep.subr.mxu0 0.0
    %1129 = vmatpush1.msra.mxu0 0.0
    %1130 = vmatprep.subr.mxu0 0.0
    %1131 = vmatpush1.msra.mxu0 0.0
    %1132 = vmatprep.subr.mxu0 0.0
    %1133 = vmatpush1.msra.mxu0 0.0
    %1134 = vmatprep.subr.mxu0 0.0
    %1135 = vmatpush1.msra.mxu0 0.0
    %1136 = vmatprep.subr.mxu0 0.0
    %1137 = vmatpush1.msra.mxu0 0.0
    %1138 = vmatprep.subr.mxu0 0.0
    %1139 = vmatpush1.msra.mxu0 0.0
    %1140 = vmatprep.subr.mxu0 0.0
    %1141 = vmatpush1.msra.mxu0 0.0
    %1142 = vmatprep.subr.mxu0 0.0
    %1143 = vmatpush1.msra.mxu0 0.0
    %1144 = vmatprep.subr.mxu0 0.0
    %1145 = vmatpush1.msra.mxu0 0.0
    %1146 = vmatprep.subr.mxu0 0.0
    %1147 = vmatpush1.msra.mxu0 0.0
    %1148 = vmatprep.subr.mxu0 0.0
    %1149 = vmatpush1.msra.mxu0 0.0
    %1150 = vmatprep.subr.mxu0 0.0
    %1151 = vmatpush1.msra.mxu0 0.0
    %1152 = vmatprep.subr.mxu0 0.0
    %1153 = vmatpush1.msra.mxu0 0.0
    %1154 = vmatprep.subr.mxu0 0.0
    %1155 = vmatpush1.msra.mxu0 0.0
    %1156 = vmatprep.subr.mxu0 0.0
    %1157 = vmatpush1.msra.mxu0 0.0
    %1158 = vmatprep.subr.mxu0 0.0
    %1159 = vmatpush1.msra.mxu0 0.0
    %1160 = vmatprep.subr.mxu0 0.0
    %1161 = vmatpush1.msra.mxu0 0.0
    %1162 = vmatprep.subr.mxu0 0.0
    %1163 = vmatpush1.msra.mxu0 0.0
    %1164 = vmatprep.subr.mxu0 0.0
    %1165 = vmatpush1.msra.mxu0 0.0
    %1166 = vmatprep.subr.mxu0 0.0
    %1167 = vmatpush1.msra.mxu0 0.0
    %1168 = vmatprep.subr.mxu0 0.0
    %1169 = vmatpush1.msra.mxu0 0.0
    %1170 = vmatprep.subr.mxu0 0.0
    %1171 = vmatpush1.msra.mxu0 0.0
    %1172 = vmatprep.subr.mxu0 0.0
    %1173 = vmatpush1.msra.mxu0 0.0
    %1174 = vmatprep.subr.mxu0 0.0
    %1175 = vmatpush1.msra.mxu0 0.0
    %1176 = vmatprep.subr.mxu0 0.0
    %1177 = vmatpush1.msra.mxu0 0.0
    %1178 = vmatprep.subr.mxu0 0.0
    %1179 = vmatpush1.msra.mxu0 0.0
    %1180 = vmatprep.subr.mxu0 0.0
    %1181 = vmatpush1.msra.mxu0 0.0
    %1182 = vmatprep.subr.mxu0 0.0
    %1183 = vmatpush1.msra.mxu0 0.0
    %1184 = vmatprep.subr.mxu0 0.0
    %1185 = vmatpush1.msra.mxu0 0.0
    %1186 = vmatprep.mubr.f32.mxu0 0.0
    %1187 = vmatmul.mubr.f32.gmra.mrb[0].mxu0 %v1120
    %v1188 = vpop.f32.mrb[0].mxu0
    %v1189 = vadd.f32 0.0, %v1188
    %v1190 = vpop.f32.mrb[0].mxu0
    %1191 = vdwg.mxu0
    %v1192 = vadd.f32 %v1119, %v1189
    %s1193 = scalar_lea.vmem [#allocation2], 32
    %v1194 = vld [vmem:[%s1193] sm:$0xff]
    %1195 = vrot.lane.b32.xlu0 %v1105, 16
    %v1196 = vpop.permute.xlu0 %1195
    %v1197 = vsel %vm421, %v1196, 0
    %1199 = vmatprep.subr.mxu0 0.0
    %1200 = vmatpush1.msra.mxu0 %v418
    %1201 = vmatprep.subr.mxu0 0.0
    %1202 = vmatpush1.msra.mxu0 %v419
    %1203 = vmatprep.subr.mxu0 0.0
    %1204 = vmatpush1.msra.mxu0 0.0
    %1205 = vmatprep.subr.mxu0 0.0
    %1206 = vmatpush1.msra.mxu0 0.0
    %1207 = vmatprep.subr.mxu0 0.0
    %1208 = vmatpush1.msra.mxu0 0.0
    %1209 = vmatprep.subr.mxu0 0.0
    %1210 = vmatpush1.msra.mxu0 0.0
    %1211 = vmatprep.subr.mxu0 0.0
    %1212 = vmatpush1.msra.mxu0 0.0
    %1213 = vmatprep.subr.mxu0 0.0
    %1214 = vmatpush1.msra.mxu0 0.0
    %1215 = vmatprep.subr.mxu0 0.0
    %1216 = vmatpush1.msra.mxu0 0.0
    %1217 = vmatprep.subr.mxu0 0.0
    %1218 = vmatpush1.msra.mxu0 0.0
    %1219 = vmatprep.subr.mxu0 0.0
    %1220 = vmatpush1.msra.mxu0 0.0
    %1221 = vmatprep.subr.mxu0 0.0
    %1222 = vmatpush1.msra.mxu0 0.0
    %1223 = vmatprep.subr.mxu0 0.0
    %1224 = vmatpush1.msra.mxu0 0.0
    %1225 = vmatprep.subr.mxu0 0.0
    %1226 = vmatpush1.msra.mxu0 0.0
    %1227 = vmatprep.subr.mxu0 0.0
    %1228 = vmatpush1.msra.mxu0 0.0
    %1229 = vmatprep.subr.mxu0 0.0
    %1230 = vmatpush1.msra.mxu0 0.0
    %1231 = vmatprep.subr.mxu0 0.0
    %1232 = vmatpush1.msra.mxu0 0.0
    %1233 = vmatprep.subr.mxu0 0.0
    %1234 = vmatpush1.msra.mxu0 0.0
    %1235 = vmatprep.subr.mxu0 0.0
    %1236 = vmatpush1.msra.mxu0 0.0
    %1237 = vmatprep.subr.mxu0 0.0
    %1238 = vmatpush1.msra.mxu0 0.0
    %1239 = vmatprep.subr.mxu0 0.0
    %1240 = vmatpush1.msra.mxu0 0.0
    %1241 = vmatprep.subr.mxu0 0.0
    %1242 = vmatpush1.msra.mxu0 0.0
    %1243 = vmatprep.subr.mxu0 0.0
    %1244 = vmatpush1.msra.mxu0 0.0
    %1245 = vmatprep.subr.mxu0 0.0
    %1246 = vmatpush1.msra.mxu0 0.0
    %1247 = vmatprep.subr.mxu0 0.0
    %1248 = vmatpush1.msra.mxu0 0.0
    %1249 = vmatprep.subr.mxu0 0.0
    %1250 = vmatpush1.msra.mxu0 0.0
    %1251 = vmatprep.subr.mxu0 0.0
    %1252 = vmatpush1.msra.mxu0 0.0
    %1253 = vmatprep.subr.mxu0 0.0
    %1254 = vmatpush1.msra.mxu0 0.0
    %1255 = vmatprep.subr.mxu0 0.0
    %1256 = vmatpush1.msra.mxu0 0.0
    %1257 = vmatprep.subr.mxu0 0.0
    %1258 = vmatpush1.msra.mxu0 0.0
    %1259 = vmatprep.subr.mxu0 0.0
    %1260 = vmatpush1.msra.mxu0 0.0
    %1261 = vmatprep.subr.mxu0 0.0
    %1262 = vmatpush1.msra.mxu0 0.0
    %1263 = vmatprep.mubr.f32.mxu0 0.0
    %1264 = vmatmul.mubr.f32.gmra.mrb[0].mxu0 %v1197
    %v1265 = vpop.f32.mrb[0].mxu0
    %v1266 = vadd.f32 0.0, %v1265
    %v1267 = vpop.f32.mrb[0].mxu0
    %1268 = vdwg.mxu0
    %1270 = vrot.lane.b32.xlu0 %v1266, 64
    %v1271 = vpop.permute.xlu0 %1270
    %v1273 = vadd.f32 %v1194, %v1271
    %s1274 = scalar_lea.vmem [#allocation6], 24
    %v1275 = vld [vmem:[%s1274] sm:$0xff]
    %v1276 = vxor.u32 %v1192, 2147483648
    %v1277 = vmul.f32 %v1276, 1.442695
    %v1278 = vpow.pop %v1277
    %v1279 = vadd.f32 %v1278, 1.0
    %v1280 = vrcp.pop %v1279
    %v1281 = vmul.f32 1.0, %v1280
    %v1282 = vtanh.pop %v1192
    %v1283 = vmul.f32 %v1281, %v1065
    %1285 = vrot.lane.b32.xlu0 %v1282, 96
    %v1286 = vpop.permute.xlu0 %1285
    %v1288 = vmul.f32 %v1281, %v1286
    %1290 = vrot.lane.b32.xlu0 %v1288, 16
    %v1291 = vpop.permute.xlu0 %1290
    %v1293 = vadd.f32 %v1283, %v1291
    %1295 = vset.pattern.permute.xlu0 0
    %1296 = vperm.xlu0 %1295, %v1275
    %v1297 = vpop.permute.xlu0 %1296
    %v1299 = vmul.f32 %v1293, %v1297
    %v1300 = vtanh.pop %v1299
    %1302 = vrot.lane.b32.xlu0 %v1300, 32
    %v1303 = vpop.permute.xlu0 %1302
    %v1305 = vmul.f32 %v1281, %v1303
    %v1306 = vmul.f32 %v1305, %v1297
    %s1307 = scalar_lea.vmem [#allocation6], 32
    %v1308 = vld [vmem:[%s1307] sm:$0xff]
    %v1309 = vxor.u32 %v1273, 2147483648
    %v1310 = vmul.f32 %v1309, 1.442695
    %v1311 = vpow.pop %v1310
    %v1312 = vadd.f32 %v1311, 1.0
    %v1313 = vrcp.pop %v1312
    %v1314 = vmul.f32 1.0, %v1313
    %v1315 = vtanh.pop %v1273
    %v1316 = vmul.f32 %v1314, %v1098
    %1318 = vrot.lane.b32.xlu0 %v1315, 96
    %v1319 = vpop.permute.xlu0 %1318
    %v1321 = vmul.f32 %v1314, %v1319
    %1323 = vrot.lane.b32.xlu0 %v1321, 16
    %v1324 = vpop.permute.xlu0 %1323
    %v1326 = vadd.f32 %v1316, %v1324
    %1328 = vset.pattern.permute.xlu0 0
    %1329 = vperm.xlu0 %1328, %v1308
    %v1330 = vpop.permute.xlu0 %1329
    %v1332 = vmul.f32 %v1326, %v1330
    %v1333 = vtanh.pop %v1332
    %1335 = vrot.lane.b32.xlu0 %v1333, 32
    %v1336 = vpop.permute.xlu0 %1335
    %v1338 = vmul.f32 %v1314, %v1336
    %v1339 = vmul.f32 %v1338, %v1330
    %1341 = vrot.lane.b32.xlu0 %v1306, 80
    %v1342 = vpop.permute.xlu0 %1341
    %s1344 = scalar_lea.vmem [#allocation18], 24
    %1345 = vst.msk [vmem:[%s1344] sm:$0xff] %vm421, %v1342
    %1347 = vrot.lane.b32.xlu0 %v1339, 32
    %v1348 = vpop.permute.xlu0 %1347
    %s1350 = scalar_lea.vmem [#allocation18], 32
    %1351 = vst.msk [vmem:[%s1350] sm:$0xff] %vm648, %v1348
    %v1352 = vld [vmem:[%s1193] sm:$0xff]
    %v1353 = vsel %vm421, %v1342, 0
    %1355 = vmatprep.subr.mxu0 0.0
    %1356 = vmatpush1.msra.mxu0 %v416
    %1357 = vmatprep.subr.mxu0 0.0
    %1358 = vmatpush1.msra.mxu0 %v417
    %1359 = vmatprep.subr.mxu0 0.0
    %1360 = vmatpush1.msra.mxu0 0.0
    %1361 = vmatprep.subr.mxu0 0.0
    %1362 = vmatpush1.msra.mxu0 0.0
    %1363 = vmatprep.subr.mxu0 0.0
    %1364 = vmatpush1.msra.mxu0 0.0
    %1365 = vmatprep.subr.mxu0 0.0
    %1366 = vmatpush1.msra.mxu0 0.0
    %1367 = vmatprep.subr.mxu0 0.0
    %1368 = vmatpush1.msra.mxu0 0.0
    %1369 = vmatprep.subr.mxu0 0.0
    %1370 = vmatpush1.msra.mxu0 0.0
    %1371 = vmatprep.subr.mxu0 0.0
    %1372 = vmatpush1.msra.mxu0 0.0
    %1373 = vmatprep.subr.mxu0 0.0
    %1374 = vmatpush1.msra.mxu0 0.0
    %1375 = vmatprep.subr.mxu0 0.0
    %1376 = vmatpush1.msra.mxu0 0.0
    %1377 = vmatprep.subr.mxu0 0.0
    %1378 = vmatpush1.msra.mxu0 0.0
    %1379 = vmatprep.subr.mxu0 0.0
    %1380 = vmatpush1.msra.mxu0 0.0
    %1381 = vmatprep.subr.mxu0 0.0
    %1382 = vmatpush1.msra.mxu0 0.0
    %1383 = vmatprep.subr.mxu0 0.0
    %1384 = vmatpush1.msra.mxu0 0.0
    %1385 = vmatprep.subr.mxu0 0.0
    %1386 = vmatpush1.msra.mxu0 0.0
    %1387 = vmatprep.subr.mxu0 0.0
    %1388 = vmatpush1.msra.mxu0 0.0
    %1389 = vmatprep.subr.mxu0 0.0
    %1390 = vmatpush1.msra.mxu0 0.0
    %1391 = vmatprep.subr.mxu0 0.0
    %1392 = vmatpush1.msra.mxu0 0.0
    %1393 = vmatprep.subr.mxu0 0.0
    %1394 = vmatpush1.msra.mxu0 0.0
    %1395 = vmatprep.subr.mxu0 0.0
    %1396 = vmatpush1.msra.mxu0 0.0
    %1397 = vmatprep.subr.mxu0 0.0
    %1398 = vmatpush1.msra.mxu0 0.0
    %1399 = vmatprep.subr.mxu0 0.0
    %1400 = vmatpush1.msra.mxu0 0.0
    %1401 = vmatprep.subr.mxu0 0.0
    %1402 = vmatpush1.msra.mxu0 0.0
    %1403 = vmatprep.subr.mxu0 0.0
    %1404 = vmatpush1.msra.mxu0 0.0
    %1405 = vmatprep.subr.mxu0 0.0
    %1406 = vmatpush1.msra.mxu0 0.0
    %1407 = vmatprep.subr.mxu0 0.0
    %1408 = vmatpush1.msra.mxu0 0.0
    %1409 = vmatprep.subr.mxu0 0.0
    %1410 = vmatpush1.msra.mxu0 0.0
    %1411 = vmatprep.subr.mxu0 0.0
    %1412 = vmatpush1.msra.mxu0 0.0
    %1413 = vmatprep.subr.mxu0 0.0
    %1414 = vmatpush1.msra.mxu0 0.0
    %1415 = vmatprep.subr.mxu0 0.0
    %1416 = vmatpush1.msra.mxu0 0.0
    %1417 = vmatprep.subr.mxu0 0.0
    %1418 = vmatpush1.msra.mxu0 0.0
    %1419 = vmatprep.mubr.f32.mxu0 0.0
    %1420 = vmatmul.mubr.f32.gmra.mrb[0].mxu0 %v1353
    %v1421 = vpop.f32.mrb[0].mxu0
    %v1422 = vadd.f32 0.0, %v1421
    %v1423 = vpop.f32.mrb[0].mxu0
    %1424 = vdwg.mxu0
    %v1425 = vadd.f32 %v1352, %v1422
    %v1426 = vld [vmem:[%s1118] sm:$0xff]
    %1427 = vrot.lane.b32.xlu0 %v1339, 16
    %v1428 = vpop.permute.xlu0 %1427
    %v1429 = vsel %vm421, %v1428, 0
    %1431 = vmatprep.subr.mxu0 0.0
    %1432 = vmatpush1.msra.mxu0 %v418
    %1433 = vmatprep.subr.mxu0 0.0
    %1434 = vmatpush1.msra.mxu0 %v419
    %1435 = vmatprep.subr.mxu0 0.0
    %1436 = vmatpush1.msra.mxu0 0.0
    %1437 = vmatprep.subr.mxu0 0.0
    %1438 = vmatpush1.msra.mxu0 0.0
    %1439 = vmatprep.subr.mxu0 0.0
    %1440 = vmatpush1.msra.mxu0 0.0
    %1441 = vmatprep.subr.mxu0 0.0
    %1442 = vmatpush1.msra.mxu0 0.0
    %1443 = vmatprep.subr.mxu0 0.0
    %1444 = vmatpush1.msra.mxu0 0.0
    %1445 = vmatprep.subr.mxu0 0.0
    %1446 = vmatpush1.msra.mxu0 0.0
    %1447 = vmatprep.subr.mxu0 0.0
    %1448 = vmatpush1.msra.mxu0 0.0
    %1449 = vmatprep.subr.mxu0 0.0
    %1450 = vmatpush1.msra.mxu0 0.0
    %1451 = vmatprep.subr.mxu0 0.0
    %1452 = vmatpush1.msra.mxu0 0.0
    %1453 = vmatprep.subr.mxu0 0.0
    %1454 = vmatpush1.msra.mxu0 0.0
    %1455 = vmatprep.subr.mxu0 0.0
    %1456 = vmatpush1.msra.mxu0 0.0
    %1457 = vmatprep.subr.mxu0 0.0
    %1458 = vmatpush1.msra.mxu0 0.0
    %1459 = vmatprep.subr.mxu0 0.0
    %1460 = vmatpush1.msra.mxu0 0.0
    %1461 = vmatprep.subr.mxu0 0.0
    %1462 = vmatpush1.msra.mxu0 0.0
    %1463 = vmatprep.subr.mxu0 0.0
    %1464 = vmatpush1.msra.mxu0 0.0
    %1465 = vmatprep.subr.mxu0 0.0
    %1466 = vmatpush1.msra.mxu0 0.0
    %1467 = vmatprep.subr.mxu0 0.0
    %1468 = vmatpush1.msra.mxu0 0.0
    %1469 = vmatprep.subr.mxu0 0.0
    %1470 = vmatpush1.msra.mxu0 0.0
    %1471 = vmatprep.subr.mxu0 0.0
    %1472 = vmatpush1.msra.mxu0 0.0
    %1473 = vmatprep.subr.mxu0 0.0
    %1474 = vmatpush1.msra.mxu0 0.0
    %1475 = vmatprep.subr.mxu0 0.0
    %1476 = vmatpush1.msra.mxu0 0.0
    %1477 = vmatprep.subr.mxu0 0.0
    %1478 = vmatpush1.msra.mxu0 0.0
    %1479 = vmatprep.subr.mxu0 0.0
    %1480 = vmatpush1.msra.mxu0 0.0
    %1481 = vmatprep.subr.mxu0 0.0
    %1482 = vmatpush1.msra.mxu0 0.0
    %1483 = vmatprep.subr.mxu0 0.0
    %1484 = vmatpush1.msra.mxu0 0.0
    %1485 = vmatprep.subr.mxu0 0.0
    %1486 = vmatpush1.msra.mxu0 0.0
    %1487 = vmatprep.subr.mxu0 0.0
    %1488 = vmatpush1.msra.mxu0 0.0
    %1489 = vmatprep.subr.mxu0 0.0
    %1490 = vmatpush1.msra.mxu0 0.0
    %1491 = vmatprep.subr.mxu0 0.0
    %1492 = vmatpush1.msra.mxu0 0.0
    %1493 = vmatprep.subr.mxu0 0.0
    %1494 = vmatpush1.msra.mxu0 0.0
    %1495 = vmatprep.mubr.f32.mxu0 0.0
    %1496 = vmatmul.mubr.f32.gmra.mrb[0].mxu0 %v1429
    %v1497 = vpop.f32.mrb[0].mxu0
    %v1498 = vadd.f32 0.0, %v1497
    %v1499 = vpop.f32.mrb[0].mxu0
    %1500 = vdwg.mxu0
    %1502 = vrot.lane.b32.xlu0 %v1498, 64
    %v1503 = vpop.permute.xlu0 %1502
    %v1505 = vadd.f32 %v1426, %v1503
    %v1506 = vld [vmem:[%s1307] sm:$0xff]
    %v1507 = vxor.u32 %v1425, 2147483648
    %v1508 = vmul.f32 %v1507, 1.442695
    %v1509 = vpow.pop %v1508
    %v1510 = vadd.f32 %v1509, 1.0
    %v1511 = vrcp.pop %v1510
    %v1512 = vmul.f32 1.0, %v1511
    %v1513 = vtanh.pop %v1425
    %v1514 = vmul.f32 %v1512, %v1299
    %1516 = vrot.lane.b32.xlu0 %v1513, 96
    %v1517 = vpop.permute.xlu0 %1516
    %v1519 = vmul.f32 %v1512, %v1517
    %1521 = vrot.lane.b32.xlu0 %v1519, 16
    %v1522 = vpop.permute.xlu0 %1521
    %v1524 = vadd.f32 %v1514, %v1522
    %1526 = vset.pattern.permute.xlu0 0
    %1527 = vperm.xlu0 %1526, %v1506
    %v1528 = vpop.permute.xlu0 %1527
    %v1530 = vmul.f32 %v1524, %v1528
    %v1531 = vtanh.pop %v1530
    %1533 = vrot.lane.b32.xlu0 %v1531, 32
    %v1534 = vpop.permute.xlu0 %1533
    %v1536 = vmul.f32 %v1512, %v1534
    %v1537 = vmul.f32 %v1536, %v1528
    %v1538 = vld [vmem:[%s1274] sm:$0xff]
    %v1539 = vxor.u32 %v1505, 2147483648
    %v1540 = vmul.f32 %v1539, 1.442695
    %v1541 = vpow.pop %v1540
    %v1542 = vadd.f32 %v1541, 1.0
    %v1543 = vrcp.pop %v1542
    %v1544 = vmul.f32 1.0, %v1543
    %v1545 = vtanh.pop %v1505
    %v1546 = vmul.f32 %v1544, %v1332
    %1548 = vrot.lane.b32.xlu0 %v1545, 96
    %v1549 = vpop.permute.xlu0 %1548
    %v1551 = vmul.f32 %v1544, %v1549
    %1553 = vrot.lane.b32.xlu0 %v1551, 16
    %v1554 = vpop.permute.xlu0 %1553
    %v1556 = vadd.f32 %v1546, %v1554
    %1558 = vset.pattern.permute.xlu0 0
    %1559 = vperm.xlu0 %1558, %v1538
    %v1560 = vpop.permute.xlu0 %1559
    %v1562 = vmul.f32 %v1556, %v1560
    %v1563 = vtanh.pop %v1562
    %1565 = vrot.lane.b32.xlu0 %v1563, 32
    %v1566 = vpop.permute.xlu0 %1565
    %v1568 = vmul.f32 %v1544, %v1566
    %v1569 = vmul.f32 %v1568, %v1560
    %1571 = vrot.lane.b32.xlu0 %v1537, 80
    %v1572 = vpop.permute.xlu0 %1571
    %1574 = vst.msk [vmem:[%s1350] sm:$0xff] %vm421, %v1572
    %1576 = vrot.lane.b32.xlu0 %v1569, 32
    %v1577 = vpop.permute.xlu0 %1576
    %1579 = vst.msk [vmem:[%s1344] sm:$0xff] %vm648, %v1577
    %v1580 = vld [vmem:[%s959] sm:$0xff]
    %v1581 = vsel %vm421, %v1572, 0
    %1583 = vmatprep.subr.mxu0 0.0
    %1584 = vmatpush1.msra.mxu0 %v416
    %1585 = vmatprep.subr.mxu0 0.0
    %1586 = vmatpush1.msra.mxu0 %v417
    %1587 = vmatprep.subr.mxu0 0.0
    %1588 = vmatpush1.msra.mxu0 0.0
    %1589 = vmatprep.subr.mxu0 0.0
    %1590 = vmatpush1.msra.mxu0 0.0
    %1591 = vmatprep.subr.mxu0 0.0
    %1592 = vmatpush1.msra.mxu0 0.0
    %1593 = vmatprep.subr.mxu0 0.0
    %1594 = vmatpush1.msra.mxu0 0.0
    %1595 = vmatprep.subr.mxu0 0.0
    %1596 = vmatpush1.msra.mxu0 0.0
    %1597 = vmatprep.subr.mxu0 0.0
    %1598 = vmatpush1.msra.mxu0 0.0
    %1599 = vmatprep.subr.mxu0 0.0
    %1600 = vmatpush1.msra.mxu0 0.0
    %1601 = vmatprep.subr.mxu0 0.0
    %1602 = vmatpush1.msra.mxu0 0.0
    %1603 = vmatprep.subr.mxu0 0.0
    %1604 = vmatpush1.msra.mxu0 0.0
    %1605 = vmatprep.subr.mxu0 0.0
    %1606 = vmatpush1.msra.mxu0 0.0
    %1607 = vmatprep.subr.mxu0 0.0
    %1608 = vmatpush1.msra.mxu0 0.0
    %1609 = vmatprep.subr.mxu0 0.0
    %1610 = vmatpush1.msra.mxu0 0.0
    %1611 = vmatprep.subr.mxu0 0.0
    %1612 = vmatpush1.msra.mxu0 0.0
    %1613 = vmatprep.subr.mxu0 0.0
    %1614 = vmatpush1.msra.mxu0 0.0
    %1615 = vmatprep.subr.mxu0 0.0
    %1616 = vmatpush1.msra.mxu0 0.0
    %1617 = vmatprep.subr.mxu0 0.0
    %1618 = vmatpush1.msra.mxu0 0.0
    %1619 = vmatprep.subr.mxu0 0.0
    %1620 = vmatpush1.msra.mxu0 0.0
    %1621 = vmatprep.subr.mxu0 0.0
    %1622 = vmatpush1.msra.mxu0 0.0
    %1623 = vmatprep.subr.mxu0 0.0
    %1624 = vmatpush1.msra.mxu0 0.0
    %1625 = vmatprep.subr.mxu0 0.0
    %1626 = vmatpush1.msra.mxu0 0.0
    %1627 = vmatprep.subr.mxu0 0.0
    %1628 = vmatpush1.msra.mxu0 0.0
    %1629 = vmatprep.subr.mxu0 0.0
    %1630 = vmatpush1.msra.mxu0 0.0
    %1631 = vmatprep.subr.mxu0 0.0
    %1632 = vmatpush1.msra.mxu0 0.0
    %1633 = vmatprep.subr.mxu0 0.0
    %1634 = vmatpush1.msra.mxu0 0.0
    %1635 = vmatprep.subr.mxu0 0.0
    %1636 = vmatpush1.msra.mxu0 0.0
    %1637 = vmatprep.subr.mxu0 0.0
    %1638 = vmatpush1.msra.mxu0 0.0
    %1639 = vmatprep.subr.mxu0 0.0
    %1640 = vmatpush1.msra.mxu0 0.0
    %1641 = vmatprep.subr.mxu0 0.0
    %1642 = vmatpush1.msra.mxu0 0.0
    %1643 = vmatprep.subr.mxu0 0.0
    %1644 = vmatpush1.msra.mxu0 0.0
    %1645 = vmatprep.subr.mxu0 0.0
    %1646 = vmatpush1.msra.mxu0 0.0
    %1647 = vmatprep.mubr.f32.mxu0 0.0
    %1648 = vmatmul.mubr.f32.gmra.mrb[0].mxu0 %v1581
    %v1649 = vpop.f32.mrb[0].mxu0
    %v1650 = vadd.f32 0.0, %v1649
    %v1651 = vpop.f32.mrb[0].mxu0
    %1652 = vdwg.mxu0
    %v1653 = vadd.f32 %v1580, %v1650
    %v1654 = vld [vmem:[%s884] sm:$0xff]
    %1655 = vrot.lane.b32.xlu0 %v1569, 16
    %v1656 = vpop.permute.xlu0 %1655
    %v1657 = vsel %vm421, %v1656, 0
    %1659 = vmatprep.subr.mxu0 0.0
    %1660 = vmatpush1.msra.mxu0 %v418
    %1661 = vmatprep.subr.mxu0 0.0
    %1662 = vmatpush1.msra.mxu0 %v419
    %1663 = vmatprep.subr.mxu0 0.0
    %1664 = vmatpush1.msra.mxu0 0.0
    %1665 = vmatprep.subr.mxu0 0.0
    %1666 = vmatpush1.msra.mxu0 0.0
    %1667 = vmatprep.subr.mxu0 0.0
    %1668 = vmatpush1.msra.mxu0 0.0
    %1669 = vmatprep.subr.mxu0 0.0
    %1670 = vmatpush1.msra.mxu0 0.0
    %1671 = vmatprep.subr.mxu0 0.0
    %1672 = vmatpush1.msra.mxu0 0.0
    %1673 = vmatprep.subr.mxu0 0.0
    %1674 = vmatpush1.msra.mxu0 0.0
    %1675 = vmatprep.subr.mxu0 0.0
    %1676 = vmatpush1.msra.mxu0 0.0
    %1677 = vmatprep.subr.mxu0 0.0
    %1678 = vmatpush1.msra.mxu0 0.0
    %1679 = vmatprep.subr.mxu0 0.0
    %1680 = vmatpush1.msra.mxu0 0.0
    %1681 = vmatprep.subr.mxu0 0.0
    %1682 = vmatpush1.msra.mxu0 0.0
    %1683 = vmatprep.subr.mxu0 0.0
    %1684 = vmatpush1.msra.mxu0 0.0
    %1685 = vmatprep.subr.mxu0 0.0
    %1686 = vmatpush1.msra.mxu0 0.0
    %1687 = vmatprep.subr.mxu0 0.0
    %1688 = vmatpush1.msra.mxu0 0.0
    %1689 = vmatprep.subr.mxu0 0.0
    %1690 = vmatpush1.msra.mxu0 0.0
    %1691 = vmatprep.subr.mxu0 0.0
    %1692 = vmatpush1.msra.mxu0 0.0
    %1693 = vmatprep.subr.mxu0 0.0
    %1694 = vmatpush1.msra.mxu0 0.0
    %1695 = vmatprep.subr.mxu0 0.0
    %1696 = vmatpush1.msra.mxu0 0.0
    %1697 = vmatprep.subr.mxu0 0.0
    %1698 = vmatpush1.msra.mxu0 0.0
    %1699 = vmatprep.subr.mxu0 0.0
    %1700 = vmatpush1.msra.mxu0 0.0
    %1701 = vmatprep.subr.mxu0 0.0
    %1702 = vmatpush1.msra.mxu0 0.0
    %1703 = vmatprep.subr.mxu0 0.0
    %1704 = vmatpush1.msra.mxu0 0.0
    %1705 = vmatprep.subr.mxu0 0.0
    %1706 = vmatpush1.msra.mxu0 0.0
    %1707 = vmatprep.subr.mxu0 0.0
    %1708 = vmatpush1.msra.mxu0 0.0
    %1709 = vmatprep.subr.mxu0 0.0
    %1710 = vmatpush1.msra.mxu0 0.0
    %1711 = vmatprep.subr.mxu0 0.0
    %1712 = vmatpush1.msra.mxu0 0.0
    %1713 = vmatprep.subr.mxu0 0.0
    %1714 = vmatpush1.msra.mxu0 0.0
    %1715 = vmatprep.subr.mxu0 0.0
    %1716 = vmatpush1.msra.mxu0 0.0
    %1717 = vmatprep.subr.mxu0 0.0
    %1718 = vmatpush1.msra.mxu0 0.0
    %1719 = vmatprep.subr.mxu0 0.0
    %1720 = vmatpush1.msra.mxu0 0.0
    %1721 = vmatprep.subr.mxu0 0.0
    %1722 = vmatpush1.msra.mxu0 0.0
    %1723 = vmatprep.mubr.f32.mxu0 0.0
    %1724 = vmatmul.mubr.f32.gmra.mrb[0].mxu0 %v1657
    %v1725 = vpop.f32.mrb[0].mxu0
    %v1726 = vadd.f32 0.0, %v1725
    %v1727 = vpop.f32.mrb[0].mxu0
    %1728 = vdwg.mxu0
    %1730 = vrot.lane.b32.xlu0 %v1726, 64
    %v1731 = vpop.permute.xlu0 %1730
    %v1733 = vadd.f32 %v1654, %v1731
    %v1734 = vld [vmem:[%s1073] sm:$0xff]
    %v1735 = vxor.u32 %v1653, 2147483648
    %v1736 = vmul.f32 %v1735, 1.442695
    %v1737 = vpow.pop %v1736
    %v1738 = vadd.f32 %v1737, 1.0
    %v1739 = vrcp.pop %v1738
    %v1740 = vmul.f32 1.0, %v1739
    %v1741 = vtanh.pop %v1653
    %v1742 = vmul.f32 %v1740, %v1530
    %1744 = vrot.lane.b32.xlu0 %v1741, 96
    %v1745 = vpop.permute.xlu0 %1744
    %v1747 = vmul.f32 %v1740, %v1745
    %1749 = vrot.lane.b32.xlu0 %v1747, 16
    %v1750 = vpop.permute.xlu0 %1749
    %v1752 = vadd.f32 %v1742, %v1750
    %1754 = vset.pattern.permute.xlu0 0
    %1755 = vperm.xlu0 %1754, %v1734
    %v1756 = vpop.permute.xlu0 %1755
    %v1758 = vmul.f32 %v1752, %v1756
    %v1759 = vtanh.pop %v1758
    %1761 = vrot.lane.b32.xlu0 %v1759, 32
    %v1762 = vpop.permute.xlu0 %1761
    %v1764 = vmul.f32 %v1740, %v1762
    %v1765 = vmul.f32 %v1764, %v1756
    %v1766 = vld [vmem:[%s1040] sm:$0xff]
    %v1767 = vxor.u32 %v1733, 2147483648
    %v1768 = vmul.f32 %v1767, 1.442695
    %v1769 = vpow.pop %v1768
    %v1770 = vadd.f32 %v1769, 1.0
    %v1771 = vrcp.pop %v1770
    %v1772 = vmul.f32 1.0, %v1771
    %v1773 = vtanh.pop %v1733
    %v1774 = vmul.f32 %v1772, %v1562
    %1776 = vrot.lane.b32.xlu0 %v1773, 96
    %v1777 = vpop.permute.xlu0 %1776
    %v1779 = vmul.f32 %v1772, %v1777
    %1781 = vrot.lane.b32.xlu0 %v1779, 16
    %v1782 = vpop.permute.xlu0 %1781
    %v1784 = vadd.f32 %v1774, %v1782
    %1786 = vset.pattern.permute.xlu0 0
    %1787 = vperm.xlu0 %1786, %v1766
    %v1788 = vpop.permute.xlu0 %1787
    %v1790 = vmul.f32 %v1784, %v1788
    %v1791 = vtanh.pop %v1790
    %1793 = vrot.lane.b32.xlu0 %v1791, 32
    %v1794 = vpop.permute.xlu0 %1793
    %v1796 = vmul.f32 %v1772, %v1794
    %v1797 = vmul.f32 %v1796, %v1788
    %1799 = vrot.lane.b32.xlu0 %v1765, 80
    %v1800 = vpop.permute.xlu0 %1799
    %1802 = vst.msk [vmem:[%s1116] sm:$0xff] %vm421, %v1800
    %1804 = vrot.lane.b32.xlu0 %v1797, 32
    %v1805 = vpop.permute.xlu0 %1804
    %1807 = vst.msk [vmem:[%s1110] sm:$0xff] %vm648, %v1805
    %v1808 = vld [vmem:[%s725] sm:$0xff]
    %v1809 = vsel %vm421, %v1800, 0
    %1811 = vmatprep.subr.mxu0 0.0
    %1812 = vmatpush1.msra.mxu0 %v416
    %1813 = vmatprep.subr.mxu0 0.0
    %1814 = vmatpush1.msra.mxu0 %v417
    %1815 = vmatprep.subr.mxu0 0.0
    %1816 = vmatpush1.msra.mxu0 0.0
    %1817 = vmatprep.subr.mxu0 0.0
    %1818 = vmatpush1.msra.mxu0 0.0
    %1819 = vmatprep.subr.mxu0 0.0
    %1820 = vmatpush1.msra.mxu0 0.0
    %1821 = vmatprep.subr.mxu0 0.0
    %1822 = vmatpush1.msra.mxu0 0.0
    %1823 = vmatprep.subr.mxu0 0.0
    %1824 = vmatpush1.msra.mxu0 0.0
    %1825 = vmatprep.subr.mxu0 0.0
    %1826 = vmatpush1.msra.mxu0 0.0
    %1827 = vmatprep.subr.mxu0 0.0
    %1828 = vmatpush1.msra.mxu0 0.0
    %1829 = vmatprep.subr.mxu0 0.0
    %1830 = vmatpush1.msra.mxu0 0.0
    %1831 = vmatprep.subr.mxu0 0.0
    %1832 = vmatpush1.msra.mxu0 0.0
    %1833 = vmatprep.subr.mxu0 0.0
    %1834 = vmatpush1.msra.mxu0 0.0
    %1835 = vmatprep.subr.mxu0 0.0
    %1836 = vmatpush1.msra.mxu0 0.0
    %1837 = vmatprep.subr.mxu0 0.0
    %1838 = vmatpush1.msra.mxu0 0.0
    %1839 = vmatprep.subr.mxu0 0.0
    %1840 = vmatpush1.msra.mxu0 0.0
    %1841 = vmatprep.subr.mxu0 0.0
    %1842 = vmatpush1.msra.mxu0 0.0
    %1843 = vmatprep.subr.mxu0 0.0
    %1844 = vmatpush1.msra.mxu0 0.0
    %1845 = vmatprep.subr.mxu0 0.0
    %1846 = vmatpush1.msra.mxu0 0.0
    %1847 = vmatprep.subr.mxu0 0.0
    %1848 = vmatpush1.msra.mxu0 0.0
    %1849 = vmatprep.subr.mxu0 0.0
    %1850 = vmatpush1.msra.mxu0 0.0
    %1851 = vmatprep.subr.mxu0 0.0
    %1852 = vmatpush1.msra.mxu0 0.0
    %1853 = vmatprep.subr.mxu0 0.0
    %1854 = vmatpush1.msra.mxu0 0.0
    %1855 = vmatprep.subr.mxu0 0.0
    %1856 = vmatpush1.msra.mxu0 0.0
    %1857 = vmatprep.subr.mxu0 0.0
    %1858 = vmatpush1.msra.mxu0 0.0
    %1859 = vmatprep.subr.mxu0 0.0
    %1860 = vmatpush1.msra.mxu0 0.0
    %1861 = vmatprep.subr.mxu0 0.0
    %1862 = vmatpush1.msra.mxu0 0.0
    %1863 = vmatprep.subr.mxu0 0.0
    %1864 = vmatpush1.msra.mxu0 0.0
    %1865 = vmatprep.subr.mxu0 0.0
    %1866 = vmatpush1.msra.mxu0 0.0
    %1867 = vmatprep.subr.mxu0 0.0
    %1868 = vmatpush1.msra.mxu0 0.0
    %1869 = vmatprep.subr.mxu0 0.0
    %1870 = vmatpush1.msra.mxu0 0.0
    %1871 = vmatprep.subr.mxu0 0.0
    %1872 = vmatpush1.msra.mxu0 0.0
    %1873 = vmatprep.subr.mxu0 0.0
    %1874 = vmatpush1.msra.mxu0 0.0
    %1875 = vmatprep.mubr.f32.mxu0 0.0
    %1876 = vmatmul.mubr.f32.gmra.mrb[0].mxu0 %v1809
    %v1877 = vpop.f32.mrb[0].mxu0
    %v1878 = vadd.f32 0.0, %v1877
    %v1879 = vpop.f32.mrb[0].mxu0
    %1880 = vdwg.mxu0
    %v1881 = vadd.f32 %v1808, %v1878
    %v1882 = vld [vmem:[%s650] sm:$0xff]
    %1883 = vrot.lane.b32.xlu0 %v1797, 16
    %v1884 = vpop.permute.xlu0 %1883
    %v1885 = vsel %vm421, %v1884, 0
    %1887 = vmatprep.subr.mxu0 0.0
    %1888 = vmatpush1.msra.mxu0 %v418
    %1889 = vmatprep.subr.mxu0 0.0
    %1890 = vmatpush1.msra.mxu0 %v419
    %1891 = vmatprep.subr.mxu0 0.0
    %1892 = vmatpush1.msra.mxu0 0.0
    %1893 = vmatprep.subr.mxu0 0.0
    %1894 = vmatpush1.msra.mxu0 0.0
    %1895 = vmatprep.subr.mxu0 0.0
    %1896 = vmatpush1.msra.mxu0 0.0
    %1897 = vmatprep.subr.mxu0 0.0
    %1898 = vmatpush1.msra.mxu0 0.0
    %1899 = vmatprep.subr.mxu0 0.0
    %1900 = vmatpush1.msra.mxu0 0.0
    %1901 = vmatprep.subr.mxu0 0.0
    %1902 = vmatpush1.msra.mxu0 0.0
    %1903 = vmatprep.subr.mxu0 0.0
    %1904 = vmatpush1.msra.mxu0 0.0
    %1905 = vmatprep.subr.mxu0 0.0
    %1906 = vmatpush1.msra.mxu0 0.0
    %1907 = vmatprep.subr.mxu0 0.0
    %1908 = vmatpush1.msra.mxu0 0.0
    %1909 = vmatprep.subr.mxu0 0.0
    %1910 = vmatpush1.msra.mxu0 0.0
    %1911 = vmatprep.subr.mxu0 0.0
    %1912 = vmatpush1.msra.mxu0 0.0
    %1913 = vmatprep.subr.mxu0 0.0
    %1914 = vmatpush1.msra.mxu0 0.0
    %1915 = vmatprep.subr.mxu0 0.0
    %1916 = vmatpush1.msra.mxu0 0.0
    %1917 = vmatprep.subr.mxu0 0.0
    %1918 = vmatpush1.msra.mxu0 0.0
    %1919 = vmatprep.subr.mxu0 0.0
    %1920 = vmatpush1.msra.mxu0 0.0
    %1921 = vmatprep.subr.mxu0 0.0
    %1922 = vmatpush1.msra.mxu0 0.0
    %1923 = vmatprep.subr.mxu0 0.0
    %1924 = vmatpush1.msra.mxu0 0.0
    %1925 = vmatprep.subr.mxu0 0.0
    %1926 = vmatpush1.msra.mxu0 0.0
    %1927 = vmatprep.subr.mxu0 0.0
    %1928 = vmatpush1.msra.mxu0 0.0
    %1929 = vmatprep.subr.mxu0 0.0
    %1930 = vmatpush1.msra.mxu0 0.0
    %1931 = vmatprep.subr.mxu0 0.0
    %1932 = vmatpush1.msra.mxu0 0.0
    %1933 = vmatprep.subr.mxu0 0.0
    %1934 = vmatpush1.msra.mxu0 0.0
    %1935 = vmatprep.subr.mxu0 0.0
    %1936 = vmatpush1.msra.mxu0 0.0
    %1937 = vmatprep.subr.mxu0 0.0
    %1938 = vmatpush1.msra.mxu0 0.0
    %1939 = vmatprep.subr.mxu0 0.0
    %1940 = vmatpush1.msra.mxu0 0.0
    %1941 = vmatprep.subr.mxu0 0.0
    %1942 = vmatpush1.msra.mxu0 0.0
    %1943 = vmatprep.subr.mxu0 0.0
    %1944 = vmatpush1.msra.mxu0 0.0
    %1945 = vmatprep.subr.mxu0 0.0
    %1946 = vmatpush1.msra.mxu0 0.0
    %1947 = vmatprep.subr.mxu0 0.0
    %1948 = vmatpush1.msra.mxu0 0.0
    %1949 = vmatprep.subr.mxu0 0.0
    %1950 = vmatpush1.msra.mxu0 0.0
    %1951 = vmatprep.mubr.f32.mxu0 0.0
    %1952 = vmatmul.mubr.f32.gmra.mrb[0].mxu0 %v1885
    %v1953 = vpop.f32.mrb[0].mxu0
    %v1954 = vadd.f32 0.0, %v1953
    %v1955 = vpop.f32.mrb[0].mxu0
    %1956 = vdwg.mxu0
    %1958 = vrot.lane.b32.xlu0 %v1954, 64
    %v1959 = vpop.permute.xlu0 %1958
    %v1961 = vadd.f32 %v1882, %v1959
    %v1962 = vld [vmem:[%s839] sm:$0xff]
    %v1963 = vxor.u32 %v1881, 2147483648
    %v1964 = vmul.f32 %v1963, 1.442695
    %v1965 = vpow.pop %v1964
    %v1966 = vadd.f32 %v1965, 1.0
    %v1967 = vrcp.pop %v1966
    %v1968 = vmul.f32 1.0, %v1967
    %v1969 = vtanh.pop %v1881
    %v1970 = vmul.f32 %v1968, %v1758
    %1972 = vrot.lane.b32.xlu0 %v1969, 96
    %v1973 = vpop.permute.xlu0 %1972
    %v1975 = vmul.f32 %v1968, %v1973
    %1977 = vrot.lane.b32.xlu0 %v1975, 16
    %v1978 = vpop.permute.xlu0 %1977
    %v1980 = vadd.f32 %v1970, %v1978
    %1982 = vset.pattern.permute.xlu0 0
    %1983 = vperm.xlu0 %1982, %v1962
    %v1984 = vpop.permute.xlu0 %1983
    %v1986 = vmul.f32 %v1980, %v1984
    %v1987 = vtanh.pop %v1986
    %1989 = vrot.lane.b32.xlu0 %v1987, 32
    %v1990 = vpop.permute.xlu0 %1989
    %v1992 = vmul.f32 %v1968, %v1990
    %v1993 = vmul.f32 %v1992, %v1984
    %v1994 = vld [vmem:[%s806] sm:$0xff]
    %v1995 = vxor.u32 %v1961, 2147483648
    %v1996 = vmul.f32 %v1995, 1.442695
    %v1997 = vpow.pop %v1996
    %v1998 = vadd.f32 %v1997, 1.0
    %v1999 = vrcp.pop %v1998
    %v2000 = vmul.f32 1.0, %v1999
    %v2001 = vtanh.pop %v1961
    %v2002 = vmul.f32 %v2000, %v1790
    %2004 = vrot.lane.b32.xlu0 %v2001, 96
    %v2005 = vpop.permute.xlu0 %2004
    %v2007 = vmul.f32 %v2000, %v2005
    %2009 = vrot.lane.b32.xlu0 %v2007, 16
    %v2010 = vpop.permute.xlu0 %2009
    %v2012 = vadd.f32 %v2002, %v2010
    %2014 = vset.pattern.permute.xlu0 0
    %2015 = vperm.xlu0 %2014, %v1994
    %v2016 = vpop.permute.xlu0 %2015
    %v2018 = vmul.f32 %v2012, %v2016
    %v2019 = vtanh.pop %v2018
    %2021 = vrot.lane.b32.xlu0 %v2019, 32
    %v2022 = vpop.permute.xlu0 %2021
    %v2024 = vmul.f32 %v2000, %v2022
    %v2025 = vmul.f32 %v2024, %v2016
    %2027 = vrot.lane.b32.xlu0 %v1993, 80
    %v2028 = vpop.permute.xlu0 %2027
    %2030 = vst.msk [vmem:[%s882] sm:$0xff] %vm421, %v2028
    %2032 = vrot.lane.b32.xlu0 %v2025, 32
    %v2033 = vpop.permute.xlu0 %2032
    %2035 = vst.msk [vmem:[%s876] sm:$0xff] %vm648, %v2033
    %v2036 = vld [vmem:[%s496] sm:$0xff]
    %v2037 = vsel %vm421, %v2028, 0
    %2039 = vmatprep.subr.mxu0 0.0
    %2040 = vmatpush1.msra.mxu0 %v416
    %2041 = vmatprep.subr.mxu0 0.0
    %2042 = vmatpush1.msra.mxu0 %v417
    %2043 = vmatprep.subr.mxu0 0.0
    %2044 = vmatpush1.msra.mxu0 0.0
    %2045 = vmatprep.subr.mxu0 0.0
    %2046 = vmatpush1.msra.mxu0 0.0
    %2047 = vmatprep.subr.mxu0 0.0
    %2048 = vmatpush1.msra.mxu0 0.0
    %2049 = vmatprep.subr.mxu0 0.0
    %2050 = vmatpush1.msra.mxu0 0.0
    %2051 = vmatprep.subr.mxu0 0.0
    %2052 = vmatpush1.msra.mxu0 0.0
    %2053 = vmatprep.subr.mxu0 0.0
    %2054 = vmatpush1.msra.mxu0 0.0
    %2055 = vmatprep.subr.mxu0 0.0
    %2056 = vmatpush1.msra.mxu0 0.0
    %2057 = vmatprep.subr.mxu0 0.0
    %2058 = vmatpush1.msra.mxu0 0.0
    %2059 = vmatprep.subr.mxu0 0.0
    %2060 = vmatpush1.msra.mxu0 0.0
    %2061 = vmatprep.subr.mxu0 0.0
    %2062 = vmatpush1.msra.mxu0 0.0
    %2063 = vmatprep.subr.mxu0 0.0
    %2064 = vmatpush1.msra.mxu0 0.0
    %2065 = vmatprep.subr.mxu0 0.0
    %2066 = vmatpush1.msra.mxu0 0.0
    %2067 = vmatprep.subr.mxu0 0.0
    %2068 = vmatpush1.msra.mxu0 0.0
    %2069 = vmatprep.subr.mxu0 0.0
    %2070 = vmatpush1.msra.mxu0 0.0
    %2071 = vmatprep.subr.mxu0 0.0
    %2072 = vmatpush1.msra.mxu0 0.0
    %2073 = vmatprep.subr.mxu0 0.0
    %2074 = vmatpush1.msra.mxu0 0.0
    %2075 = vmatprep.subr.mxu0 0.0
    %2076 = vmatpush1.msra.mxu0 0.0
    %2077 = vmatprep.subr.mxu0 0.0
    %2078 = vmatpush1.msra.mxu0 0.0
    %2079 = vmatprep.subr.mxu0 0.0
    %2080 = vmatpush1.msra.mxu0 0.0
    %2081 = vmatprep.subr.mxu0 0.0
    %2082 = vmatpush1.msra.mxu0 0.0
    %2083 = vmatprep.subr.mxu0 0.0
    %2084 = vmatpush1.msra.mxu0 0.0
    %2085 = vmatprep.subr.mxu0 0.0
    %2086 = vmatpush1.msra.mxu0 0.0
    %2087 = vmatprep.subr.mxu0 0.0
    %2088 = vmatpush1.msra.mxu0 0.0
    %2089 = vmatprep.subr.mxu0 0.0
    %2090 = vmatpush1.msra.mxu0 0.0
    %2091 = vmatprep.subr.mxu0 0.0
    %2092 = vmatpush1.msra.mxu0 0.0
    %2093 = vmatprep.subr.mxu0 0.0
    %2094 = vmatpush1.msra.mxu0 0.0
    %2095 = vmatprep.subr.mxu0 0.0
    %2096 = vmatpush1.msra.mxu0 0.0
    %2097 = vmatprep.subr.mxu0 0.0
    %2098 = vmatpush1.msra.mxu0 0.0
    %2099 = vmatprep.subr.mxu0 0.0
    %2100 = vmatpush1.msra.mxu0 0.0
    %2101 = vmatprep.subr.mxu0 0.0
    %2102 = vmatpush1.msra.mxu0 0.0
    %2103 = vmatprep.mubr.f32.mxu0 0.0
    %2104 = vmatmul.mubr.f32.gmra.mrb[0].mxu0 %v2037
    %v2105 = vpop.f32.mrb[0].mxu0
    %v2106 = vadd.f32 0.0, %v2105
    %v2107 = vpop.f32.mrb[0].mxu0
    %2108 = vdwg.mxu0
    %v2109 = vadd.f32 %v2036, %v2106
    %v2110 = vld [vmem:[#allocation2] sm:$0xff]
    %2111 = vrot.lane.b32.xlu0 %v2025, 16
    %v2112 = vpop.permute.xlu0 %2111
    %v2113 = vsel %vm421, %v2112, 0
    %2115 = vmatprep.subr.mxu0 0.0
    %2116 = vmatpush1.msra.mxu0 %v418
    %2117 = vmatprep.subr.mxu0 0.0
    %2118 = vmatpush1.msra.mxu0 %v419
    %2119 = vmatprep.subr.mxu0 0.0
    %2120 = vmatpush1.msra.mxu0 0.0
    %2121 = vmatprep.subr.mxu0 0.0
    %2122 = vmatpush1.msra.mxu0 0.0
    %2123 = vmatprep.subr.mxu0 0.0
    %2124 = vmatpush1.msra.mxu0 0.0
    %2125 = vmatprep.subr.mxu0 0.0
    %2126 = vmatpush1.msra.mxu0 0.0
    %2127 = vmatprep.subr.mxu0 0.0
    %2128 = vmatpush1.msra.mxu0 0.0
    %2129 = vmatprep.subr.mxu0 0.0
    %2130 = vmatpush1.msra.mxu0 0.0
    %2131 = vmatprep.subr.mxu0 0.0
    %2132 = vmatpush1.msra.mxu0 0.0
    %2133 = vmatprep.subr.mxu0 0.0
    %2134 = vmatpush1.msra.mxu0 0.0
    %2135 = vmatprep.subr.mxu0 0.0
    %2136 = vmatpush1.msra.mxu0 0.0
    %2137 = vmatprep.subr.mxu0 0.0
    %2138 = vmatpush1.msra.mxu0 0.0
    %2139 = vmatprep.subr.mxu0 0.0
    %2140 = vmatpush1.msra.mxu0 0.0
    %2141 = vmatprep.subr.mxu0 0.0
    %2142 = vmatpush1.msra.mxu0 0.0
    %2143 = vmatprep.subr.mxu0 0.0
    %2144 = vmatpush1.msra.mxu0 0.0
    %2145 = vmatprep.subr.mxu0 0.0
    %2146 = vmatpush1.msra.mxu0 0.0
    %2147 = vmatprep.subr.mxu0 0.0
    %2148 = vmatpush1.msra.mxu0 0.0
    %2149 = vmatprep.subr.mxu0 0.0
    %2150 = vmatpush1.msra.mxu0 0.0
    %2151 = vmatprep.subr.mxu0 0.0
    %2152 = vmatpush1.msra.mxu0 0.0
    %2153 = vmatprep.subr.mxu0 0.0
    %2154 = vmatpush1.msra.mxu0 0.0
    %2155 = vmatprep.subr.mxu0 0.0
    %2156 = vmatpush1.msra.mxu0 0.0
    %2157 = vmatprep.subr.mxu0 0.0
    %2158 = vmatpush1.msra.mxu0 0.0
    %2159 = vmatprep.subr.mxu0 0.0
    %2160 = vmatpush1.msra.mxu0 0.0
    %2161 = vmatprep.subr.mxu0 0.0
    %2162 = vmatpush1.msra.mxu0 0.0
    %2163 = vmatprep.subr.mxu0 0.0
    %2164 = vmatpush1.msra.mxu0 0.0
    %2165 = vmatprep.subr.mxu0 0.0
    %2166 = vmatpush1.msra.mxu0 0.0
    %2167 = vmatprep.subr.mxu0 0.0
    %2168 = vmatpush1.msra.mxu0 0.0
    %2169 = vmatprep.subr.mxu0 0.0
    %2170 = vmatpush1.msra.mxu0 0.0
    %2171 = vmatprep.subr.mxu0 0.0
    %2172 = vmatpush1.msra.mxu0 0.0
    %2173 = vmatprep.subr.mxu0 0.0
    %2174 = vmatpush1.msra.mxu0 0.0
    %2175 = vmatprep.subr.mxu0 0.0
    %2176 = vmatpush1.msra.mxu0 0.0
    %2177 = vmatprep.subr.mxu0 0.0
    %2178 = vmatpush1.msra.mxu0 0.0
    %2179 = vmatprep.mubr.f32.mxu0 0.0
    %2180 = vmatmul.mubr.f32.gmra.mrb[0].mxu0 %v2113
    %v2181 = vpop.f32.mrb[0].mxu0
    %v2182 = vadd.f32 0.0, %v2181
    %v2183 = vpop.f32.mrb[0].mxu0
    %2184 = vdwg.mxu0
    %2186 = vrot.lane.b32.xlu0 %v2182, 64
    %v2187 = vpop.permute.xlu0 %2186
    %v2189 = vadd.f32 %v2110, %v2187
    %v2190 = vld [vmem:[%s605] sm:$0xff]
    %v2191 = vxor.u32 %v2109, 2147483648
    %v2192 = vmul.f32 %v2191, 1.442695
    %v2193 = vpow.pop %v2192
    %v2194 = vadd.f32 %v2193, 1.0
    %v2195 = vrcp.pop %v2194
    %v2196 = vmul.f32 1.0, %v2195
    %v2197 = vtanh.pop %v2109
    %v2198 = vmul.f32 %v2196, %v1986
    %2200 = vrot.lane.b32.xlu0 %v2197, 96
    %v2201 = vpop.permute.xlu0 %2200
    %v2203 = vmul.f32 %v2196, %v2201
    %2205 = vrot.lane.b32.xlu0 %v2203, 16
    %v2206 = vpop.permute.xlu0 %2205
    %v2208 = vadd.f32 %v2198, %v2206
    %2210 = vset.pattern.permute.xlu0 0
    %2211 = vperm.xlu0 %2210, %v2190
    %v2212 = vpop.permute.xlu0 %2211
    %v2214 = vmul.f32 %v2208, %v2212
    %v2215 = vtanh.pop %v2214
    %2217 = vrot.lane.b32.xlu0 %v2215, 32
    %v2218 = vpop.permute.xlu0 %2217
    %v2220 = vmul.f32 %v2196, %v2218
    %v2221 = vmul.f32 %v2220, %v2212
    %v2222 = vld [vmem:[#allocation6] sm:$0xff]
    %v2223 = vxor.u32 %v2189, 2147483648
    %v2224 = vmul.f32 %v2223, 1.442695
    %v2225 = vpow.pop %v2224
    %v2226 = vadd.f32 %v2225, 1.0
    %v2227 = vrcp.pop %v2226
    %v2228 = vmul.f32 1.0, %v2227
    %v2229 = vtanh.pop %v2189
    %v2230 = vmul.f32 %v2228, %v2018
    %2232 = vrot.lane.b32.xlu0 %v2229, 96
    %v2233 = vpop.permute.xlu0 %2232
    %v2235 = vmul.f32 %v2228, %v2233
    %2237 = vrot.lane.b32.xlu0 %v2235, 16
    %v2238 = vpop.permute.xlu0 %2237
    %v2240 = vadd.f32 %v2230, %v2238
    %2242 = vset.pattern.permute.xlu0 0
    %2243 = vperm.xlu0 %2242, %v2222
    %v2244 = vpop.permute.xlu0 %2243
    %v2246 = vmul.f32 %v2240, %v2244
    %v2247 = vtanh.pop %v2246
    %2249 = vrot.lane.b32.xlu0 %v2247, 32
    %v2250 = vpop.permute.xlu0 %2249
    %v2252 = vmul.f32 %v2228, %v2250
    %v2253 = vmul.f32 %v2252, %v2244
    %2255 = vrot.lane.b32.xlu0 %v2221, 80
    %v2256 = vpop.permute.xlu0 %2255
    %2258 = vst.msk [vmem:[%s647] sm:$0xff] %vm421, %v2256
    %2260 = vrot.lane.b32.xlu0 %v2253, 32
    %v2261 = vpop.permute.xlu0 %2260
    %2263 = vst.msk [vmem:[#allocation18] sm:$0xff] %vm648, %v2261
    %v2264 = vld [vmem:[#allocation18] sm:$0xff]
    %v2265 = vld [vmem:[#allocation18 + $0x8] sm:$0xff]
    %v2266 = vld [vmem:[#allocation18 + $0x10] sm:$0xff]
    %v2267 = vld [vmem:[#allocation18 + $0x18] sm:$0xff]
    %v2268 = vld [vmem:[#allocation18 + $0x20] sm:$0xff]
    %v2269 = vld [vmem:[#allocation18 + $0x28] sm:$0xff]
    %v2270 = vld [vmem:[#allocation18 + $0x30] sm:$0xff]
    %v2271 = vld [vmem:[#allocation18 + $0x38] sm:$0xff]
    %v2272 = vld [vmem:[#allocation14] sm:$0xff]
    %v2273 = vld [vmem:[#allocation14 + $0x8] sm:$0xff]
    %v2274 = vld [vmem:[#allocation14 + $0x10] sm:$0xff]
    %v2275 = vld [vmem:[#allocation14 + $0x18] sm:$0xff]
    %v2276 = vld [vmem:[#allocation15] sm:$0xff]
    %v2277 = vld [vmem:[#allocation15 + $0x8] sm:$0xff]
    %v2278 = vld [vmem:[#allocation15 + $0x10] sm:$0xff]
    %v2279 = vld [vmem:[#allocation15 + $0x18] sm:$0xff]
    %v2281 = vsel %vm162, %v2265, 0
    %v2284 = vsel %vm162, %v2266, 0
    %v2287 = vsel %vm162, %v2267, 0
    %v2290 = vsel %vm162, %v2268, 0
    %v2293 = vsel %vm162, %v2269, 0
    %v2296 = vsel %vm162, %v2270, 0
    %v2299 = vsel %vm162, %v2271, 0
    %2301 = vmatprep.subr.mxu0 0.0
    %2302 = vmatpush1.msra.mxu0 %v2276
    %2303 = vmatprep.subr.mxu0 0.0
    %2304 = vmatpush1.msra.mxu0 %v2277
    %2305 = vmatprep.subr.mxu0 0.0
    %2306 = vmatpush1.msra.mxu0 %v2278
    %2307 = vmatprep.subr.mxu0 0.0
    %2308 = vmatpush1.msra.mxu0 %v2279
    %2309 = vmatprep.subr.mxu0 0.0
    %2310 = vmatpush1.msra.mxu0 0.0
    %2311 = vmatprep.subr.mxu0 0.0
    %2312 = vmatpush1.msra.mxu0 0.0
    %2313 = vmatprep.subr.mxu0 0.0
    %2314 = vmatpush1.msra.mxu0 0.0
    %2315 = vmatprep.subr.mxu0 0.0
    %2316 = vmatpush1.msra.mxu0 0.0
    %2317 = vmatprep.subr.mxu0 0.0
    %2318 = vmatpush1.msra.mxu0 0.0
    %2319 = vmatprep.subr.mxu0 0.0
    %2320 = vmatpush1.msra.mxu0 0.0
    %2321 = vmatprep.subr.mxu0 0.0
    %2322 = vmatpush1.msra.mxu0 0.0
    %2323 = vmatprep.subr.mxu0 0.0
    %2324 = vmatpush1.msra.mxu0 0.0
    %2325 = vmatprep.subr.mxu0 0.0
    %2326 = vmatpush1.msra.mxu0 0.0
    %2327 = vmatprep.subr.mxu0 0.0
    %2328 = vmatpush1.msra.mxu0 0.0
    %2329 = vmatprep.subr.mxu0 0.0
    %2330 = vmatpush1.msra.mxu0 0.0
    %2331 = vmatprep.subr.mxu0 0.0
    %2332 = vmatpush1.msra.mxu0 0.0
    %2333 = vmatprep.subr.mxu0 0.0
    %2334 = vmatpush1.msra.mxu0 0.0
    %2335 = vmatprep.subr.mxu0 0.0
    %2336 = vmatpush1.msra.mxu0 0.0
    %2337 = vmatprep.subr.mxu0 0.0
    %2338 = vmatpush1.msra.mxu0 0.0
    %2339 = vmatprep.subr.mxu0 0.0
    %2340 = vmatpush1.msra.mxu0 0.0
    %2341 = vmatprep.subr.mxu0 0.0
    %2342 = vmatpush1.msra.mxu0 0.0
    %2343 = vmatprep.subr.mxu0 0.0
    %2344 = vmatpush1.msra.mxu0 0.0
    %2345 = vmatprep.subr.mxu0 0.0
    %2346 = vmatpush1.msra.mxu0 0.0
    %2347 = vmatprep.subr.mxu0 0.0
    %2348 = vmatpush1.msra.mxu0 0.0
    %2349 = vmatprep.subr.mxu0 0.0
    %2350 = vmatpush1.msra.mxu0 0.0
    %2351 = vmatprep.subr.mxu0 0.0
    %2352 = vmatpush1.msra.mxu0 0.0
    %2353 = vmatprep.subr.mxu0 0.0
    %2354 = vmatpush1.msra.mxu0 0.0
    %2355 = vmatprep.subr.mxu0 0.0
    %2356 = vmatpush1.msra.mxu0 0.0
    %2357 = vmatprep.subr.mxu0 0.0
    %2358 = vmatpush1.msra.mxu0 0.0
    %2359 = vmatprep.subr.mxu0 0.0
    %2360 = vmatpush1.msra.mxu0 0.0
    %2361 = vmatprep.subr.mxu0 0.0
    %2362 = vmatpush1.msra.mxu0 0.0
    %2363 = vmatprep.subr.mxu0 0.0
    %2364 = vmatpush1.msra.mxu0 0.0
    %2365 = vmatprep.mubr.f32.mxu0 0.0
    %2366 = vmatmul.mubr.f32.gmra.mrb[0].mxu0 %v2281
    %v2367 = vpop.f32.mrb[0].mxu0
    %v2368 = vadd.f32 0.0, %v2367
    %v2369 = vpop.f32.mrb[0].mxu0
    %2370 = vmatprep.mubr.f32.mxu0 0.0
    %2371 = vmatmul.mubr.f32.gmra.mrb[0].mxu0 %v2284
    %v2372 = vpop.f32.mrb[0].mxu0
    %v2373 = vadd.f32 0.0, %v2372
    %v2374 = vpop.f32.mrb[0].mxu0
    %2375 = vmatprep.mubr.f32.mxu0 0.0
    %2376 = vmatmul.mubr.f32.gmra.mrb[0].mxu0 %v2287
    %v2377 = vpop.f32.mrb[0].mxu0
    %v2378 = vadd.f32 0.0, %v2377
    %v2379 = vpop.f32.mrb[0].mxu0
    %2380 = vmatprep.mubr.f32.mxu0 0.0
    %2381 = vmatmul.mubr.f32.gmra.mrb[0].mxu0 %v2290
    %v2382 = vpop.f32.mrb[0].mxu0
    %v2383 = vadd.f32 0.0, %v2382
    %v2384 = vpop.f32.mrb[0].mxu0
    %2385 = vmatprep.mubr.f32.mxu0 0.0
    %2386 = vmatmul.mubr.f32.gmra.mrb[0].mxu0 %v2293
    %v2387 = vpop.f32.mrb[0].mxu0
    %v2388 = vadd.f32 0.0, %v2387
    %v2389 = vpop.f32.mrb[0].mxu0
    %2390 = vmatprep.mubr.f32.mxu0 0.0
    %2391 = vmatmul.mubr.f32.gmra.mrb[0].mxu0 %v2296
    %v2392 = vpop.f32.mrb[0].mxu0
    %v2393 = vadd.f32 0.0, %v2392
    %v2394 = vpop.f32.mrb[0].mxu0
    %2395 = vmatprep.mubr.f32.mxu0 0.0
    %2396 = vmatmul.mubr.f32.gmra.mrb[0].mxu0 %v2299
    %v2397 = vpop.f32.mrb[0].mxu0
    %v2398 = vadd.f32 0.0, %v2397
    %v2399 = vpop.f32.mrb[0].mxu0
    %2400 = vdwg.mxu0
    %v2402 = vsel %vm162, %v2264, 0
    %2404 = vmatprep.subr.mxu0 0.0
    %2405 = vmatpush1.msra.mxu0 %v2272
    %2406 = vmatprep.subr.mxu0 0.0
    %2407 = vmatpush1.msra.mxu0 %v2273
    %2408 = vmatprep.subr.mxu0 0.0
    %2409 = vmatpush1.msra.mxu0 %v2274
    %2410 = vmatprep.subr.mxu0 0.0
    %2411 = vmatpush1.msra.mxu0 %v2275
    %2412 = vmatprep.subr.mxu0 0.0
    %2413 = vmatpush1.msra.mxu0 0.0
    %2414 = vmatprep.subr.mxu0 0.0
    %2415 = vmatpush1.msra.mxu0 0.0
    %2416 = vmatprep.subr.mxu0 0.0
    %2417 = vmatpush1.msra.mxu0 0.0
    %2418 = vmatprep.subr.mxu0 0.0
    %2419 = vmatpush1.msra.mxu0 0.0
    %2420 = vmatprep.subr.mxu0 0.0
    %2421 = vmatpush1.msra.mxu0 0.0
    %2422 = vmatprep.subr.mxu0 0.0
    %2423 = vmatpush1.msra.mxu0 0.0
    %2424 = vmatprep.subr.mxu0 0.0
    %2425 = vmatpush1.msra.mxu0 0.0
    %2426 = vmatprep.subr.mxu0 0.0
    %2427 = vmatpush1.msra.mxu0 0.0
    %2428 = vmatprep.subr.mxu0 0.0
    %2429 = vmatpush1.msra.mxu0 0.0
    %2430 = vmatprep.subr.mxu0 0.0
    %2431 = vmatpush1.msra.mxu0 0.0
    %2432 = vmatprep.subr.mxu0 0.0
    %2433 = vmatpush1.msra.mxu0 0.0
    %2434 = vmatprep.subr.mxu0 0.0
    %2435 = vmatpush1.msra.mxu0 0.0
    %2436 = vmatprep.subr.mxu0 0.0
    %2437 = vmatpush1.msra.mxu0 0.0
    %2438 = vmatprep.subr.mxu0 0.0
    %2439 = vmatpush1.msra.mxu0 0.0
    %2440 = vmatprep.subr.mxu0 0.0
    %2441 = vmatpush1.msra.mxu0 0.0
    %2442 = vmatprep.subr.mxu0 0.0
    %2443 = vmatpush1.msra.mxu0 0.0
    %2444 = vmatprep.subr.mxu0 0.0
    %2445 = vmatpush1.msra.mxu0 0.0
    %2446 = vmatprep.subr.mxu0 0.0
    %2447 = vmatpush1.msra.mxu0 0.0
    %2448 = vmatprep.subr.mxu0 0.0
    %2449 = vmatpush1.msra.mxu0 0.0
    %2450 = vmatprep.subr.mxu0 0.0
    %2451 = vmatpush1.msra.mxu0 0.0
    %2452 = vmatprep.subr.mxu0 0.0
    %2453 = vmatpush1.msra.mxu0 0.0
    %2454 = vmatprep.subr.mxu0 0.0
    %2455 = vmatpush1.msra.mxu0 0.0
    %2456 = vmatprep.subr.mxu0 0.0
    %2457 = vmatpush1.msra.mxu0 0.0
    %2458 = vmatprep.subr.mxu0 0.0
    %2459 = vmatpush1.msra.mxu0 0.0
    %2460 = vmatprep.subr.mxu0 0.0
    %2461 = vmatpush1.msra.mxu0 0.0
    %2462 = vmatprep.subr.mxu0 0.0
    %2463 = vmatpush1.msra.mxu0 0.0
    %2464 = vmatprep.subr.mxu0 0.0
    %2465 = vmatpush1.msra.mxu0 0.0
    %2466 = vmatprep.subr.mxu0 0.0
    %2467 = vmatpush1.msra.mxu0 0.0
    %2468 = vmatprep.mubr.f32.mxu0 0.0
    %2469 = vmatmul.mubr.f32.gmra.mrb[0].mxu0 %v2402
    %v2470 = vpop.f32.mrb[0].mxu0
    %v2471 = vadd.f32 %v2368, %v2470
    %v2472 = vpop.f32.mrb[0].mxu0
    %2473 = vmatprep.mubr.f32.mxu0 0.0
    %2474 = vmatmul.mubr.f32.gmra.mrb[0].mxu0 %v2281
    %v2475 = vpop.f32.mrb[0].mxu0
    %v2476 = vadd.f32 %v2373, %v2475
    %v2477 = vpop.f32.mrb[0].mxu0
    %2478 = vmatprep.mubr.f32.mxu0 0.0
    %2479 = vmatmul.mubr.f32.gmra.mrb[0].mxu0 %v2284
    %v2480 = vpop.f32.mrb[0].mxu0
    %v2481 = vadd.f32 %v2378, %v2480
    %v2482 = vpop.f32.mrb[0].mxu0
    %2483 = vmatprep.mubr.f32.mxu0 0.0
    %2484 = vmatmul.mubr.f32.gmra.mrb[0].mxu0 %v2287
    %v2485 = vpop.f32.mrb[0].mxu0
    %v2486 = vadd.f32 %v2383, %v2485
    %v2487 = vpop.f32.mrb[0].mxu0
    %2488 = vmatprep.mubr.f32.mxu0 0.0
    %2489 = vmatmul.mubr.f32.gmra.mrb[0].mxu0 %v2290
    %v2490 = vpop.f32.mrb[0].mxu0
    %v2491 = vadd.f32 %v2388, %v2490
    %v2492 = vpop.f32.mrb[0].mxu0
    %2493 = vmatprep.mubr.f32.mxu0 0.0
    %2494 = vmatmul.mubr.f32.gmra.mrb[0].mxu0 %v2293
    %v2495 = vpop.f32.mrb[0].mxu0
    %v2496 = vadd.f32 %v2393, %v2495
    %v2497 = vpop.f32.mrb[0].mxu0
    %2498 = vmatprep.mubr.f32.mxu0 0.0
    %2499 = vmatmul.mubr.f32.gmra.mrb[0].mxu0 %v2296
    %v2500 = vpop.f32.mrb[0].mxu0
    %v2501 = vadd.f32 %v2398, %v2500
    %v2502 = vpop.f32.mrb[0].mxu0
    %2503 = vdwg.mxu0
    %v2504 = vld [vmem:[#allocation17] sm:$0x1]
    %v2506 = vlaneseq
    %v2507 = vshrl.u32 %v2506, 7
    %v2508 = vsub.s32 0, %v2507
    %v2509 = vrot.slane %v2504, %v2508
    %v2511 = vadd.f32 %v2471, %v2509
    %v2512 = vadd.f32 %v2476, %v2509
    %v2513 = vadd.f32 %v2481, %v2509
    %v2514 = vadd.f32 %v2486, %v2509
    %v2515 = vadd.f32 %v2491, %v2509
    %v2516 = vadd.f32 %v2496, %v2509
    %v2517 = vadd.f32 %v2501, %v2509
    %2518 = vst.msk [vmem:[#allocation19] sm:$0xff] %vm162, %v2511
    %2519 = vst.msk [vmem:[#allocation19 + $0x8] sm:$0xff] %vm162, %v2512
    %2520 = vst.msk [vmem:[#allocation19 + $0x10] sm:$0xff] %vm162, %v2513
    %2521 = vst.msk [vmem:[#allocation19 + $0x18] sm:$0xff] %vm162, %v2514
    %2522 = vst.msk [vmem:[#allocation19 + $0x20] sm:$0xff] %vm162, %v2515
    %2523 = vst.msk [vmem:[#allocation19 + $0x28] sm:$0xff] %vm162, %v2516
    %2524 = vst.msk [vmem:[#allocation19 + $0x30] sm:$0xff] %vm162, %v2517
    // Predicated region
    $region74: #{tpu_custom_call.1} parent=1 // pred_check
      _
    $region75: #{tpu_custom_call.1} parent=1 // pred_check_branch
      %2526 = sbr.rel (0) target = $region77
    $region76: #{tpu_custom_call.1} parent=1 // pred_region
      %s2528 = ssub.s32 1024, 1024
      %2529 = vsyncadd [#allocation5], %s2528
      %s2530 = sshll.u32 [#allocation18], 4
      %s2531 = int_to_ptr.vmem [resolvable:$true] %s2530
      %2536 = dma.vmem_to_hbm [thread:$0]  %s2531, 1024, %s9, [#allocation5], 128, 128, 8
    $region77: #{tpu_custom_call.1} parent=1 // pred_fallthru
      _
    // Predicated region
    $region78: #{tpu_custom_call.1} parent=1 // pred_check
      _
    $region79: #{tpu_custom_call.1} parent=1 // pred_check_branch
      %2538 = sbr.rel (0) target = $region81
    $region80: #{tpu_custom_call.1} parent=1 // pred_region
      %s2540 = ssub.s32 896, 896
      %2541 = vsyncadd [#allocation20], %s2540
      %s2542 = sshll.u32 [#allocation19], 4
      %s2543 = int_to_ptr.vmem [resolvable:$true] %s2542
      %2548 = dma.vmem_to_hbm [thread:$0]  %s2543, 896, %s10, [#allocation20], 128, 128, 8
    $region81: #{tpu_custom_call.1} parent=1 // pred_fallthru
      _
    // Predicated region
    $region82: #{tpu_custom_call.1} parent=1 // pred_check
      _
    $region83: #{tpu_custom_call.1} parent=1 // pred_check_branch
      %2550 = sbr.rel (0) target = $region85
    $region84: #{tpu_custom_call.1} parent=1 // pred_region
      %2551 = dma.done [#allocation5], 1024
    $region85: #{tpu_custom_call.1} parent=1 // pred_fallthru
      _
    // Predicated region
    $region86: #{tpu_custom_call.1} parent=1 // pred_check
      _
    $region87: #{tpu_custom_call.1} parent=1 // pred_check_branch
      %2553 = sbr.rel (0) target = $region89
    $region88: #{tpu_custom_call.1} parent=1 // pred_region
      %2554 = dma.done [#allocation20], 896
    $region89: #{tpu_custom_call.1} parent=1 // pred_fallthru
      _
    %2555 = vsyncpa [#allocation4], 1
    %2556 = vsyncpa [#allocation7], 1
    %2557 = vsyncpa [#allocation10], 1
    %2558 = vsyncpa [#allocation13], 1
    %2559 = vsyncpa [#allocation16], 1
    %2560 = vsyncpa [#allocation5], 1
    %2561 = vsyncpa [#allocation20], 1

</llo_original>
